<compile_context>
chip_gen: v7x
topology: tpu7x:2x2x1
jax: 0.10.0
libtpu: 0.0.40
codegen_flags: <defaults>
</compile_context>

<pallas_src>
import math

import jax
import jax.numpy as jnp
from jax import lax
from jax.experimental import pallas as pl
from jax.experimental.pallas import tpu as pltpu

_NEG_LARGE = -1e30  # finite mask value


def _make_cross_attn_kernel(nhead):
    def kernel(lens_ref,                          # VMEM (bt, 1, 1) int32
               q_ref,                             # VMEM (bt, n_q, d)   f32  (query + pe)
               src_ref,                           # VMEM (bt, N_max, d) bf16 (padded source)
               wq_ref, wkv_ref, wo_ref,           # VMEM (d, d), (d, 2d), (d, d) bf16
               bq_ref, bkv_ref, bo_ref,           # VMEM (1, d), (1, 2d), (1, d) f32
               out_ref):                          # VMEM (bt, n_q, d)
        bt, n_q, d = q_ref.shape
        n_k = src_ref.shape[1]
        hd = d // nhead

        q_in = q_ref[...]                                         # (bt, n_q, d) f32

        # ---- fused input projections over the whole tile (big-M MXU matmuls) ----
        # 1/sqrt(hd) is already folded into wq/bq.
        x_q = q_in.reshape(bt * n_q, d).astype(jnp.bfloat16)
        x_s = src_ref[...].reshape(bt * n_k, d)                   # already bf16
        q = jnp.dot(x_q, wq_ref[...], preferred_element_type=jnp.float32) + bq_ref[...]
        kv = jnp.dot(x_s, wkv_ref[...], preferred_element_type=jnp.float32) + bkv_ref[...]

        # single tile-wide bf16 casts; (bt*nhead) becomes the leading batch dim
        qh = q.astype(jnp.bfloat16).reshape(bt, n_q, nhead, hd)
        qh = jnp.transpose(qh, (0, 2, 1, 3)).reshape(bt * nhead, n_q, hd)
        kh = kv[:, :d].astype(jnp.bfloat16).reshape(bt, n_k, nhead, hd)
        kh = jnp.transpose(kh, (0, 2, 1, 3)).reshape(bt * nhead, n_k, hd)
        vh = kv[:, d:].astype(jnp.bfloat16).reshape(bt, n_k, nhead, hd)
        vh = jnp.transpose(vh, (0, 2, 1, 3)).reshape(bt * nhead, n_k, hd)

        # ---- attention core: ONE einsum per stage for the whole (bt, nhead) tile ----
        # TODO(synk): the per-batch attn_masks argument (None in this use case) is not implemented.
        s = jnp.einsum("gqd,gkd->gqk", qh, kh,
                       preferred_element_type=jnp.float32)        # (bt*nhead, n_q, n_k)
        s = s.reshape(bt, nhead, n_q, n_k)

        # vectorised padding mask: single hoisted iota vs the (bt,1,1) length vector
        lens = lens_ref[...].reshape(bt, 1, 1, 1)
        key_idx = lax.broadcasted_iota(jnp.int32, (1, 1, 1, n_k), 3)
        s = jnp.where(key_idx < lens, s, _NEG_LARGE)

        # numerically stable softmax in f32; divide -> EUP approx reciprocal
        s = s - jnp.max(s, axis=-1, keepdims=True)
        p = jnp.exp(s)
        p = p * pl.reciprocal(jnp.sum(p, axis=-1, keepdims=True), approx=True)
        p = p.reshape(bt * nhead, n_q, n_k).astype(jnp.bfloat16)

        o = jnp.einsum("gqk,gkd->gqd", p, vh,
                       preferred_element_type=jnp.float32)        # (bt*nhead, n_q, hd)

        # ---- output projection, hoisted & batched: ONE (bt*n_q, d) @ (d, d) matmul ----
        o = jnp.transpose(o.reshape(bt, nhead, n_q, hd), (0, 2, 1, 3))   # merge heads back
        attn = o.reshape(bt * n_q, d).astype(jnp.bfloat16)
        out = jnp.dot(attn, wo_ref[...], preferred_element_type=jnp.float32) + bo_ref[...]

        out = out.reshape(bt, n_q, d) + q_in                      # residual (pos-embedded query)
        out_ref[...] = out.astype(out_ref.dtype)                  # lane-dense store (last dim = d)

    return kernel


def _pick_batch_tile(B, n_q, N_max, d, nhead, src_itemsize):
    """Largest divisor of B that (a) fits a conservative VMEM estimate (safe for
    v7x's 32 MiB default scoped limit), (b) keeps >= 2 grid steps when B > 1
    (pipelining + v7x megacore), (c) stops growing once bt*n_q >= 256 MXU rows."""
    def vmem_est(bt):
        q_b = bt * n_q * d * 4
        src_b = bt * N_max * d * src_itemsize
        out_b = bt * n_q * d * 4
        io = 2 * (q_b + src_b + out_b)                    # double-buffered in/out
        kv_b = bt * N_max * 2 * d * (4 + 2)               # f32 kv + bf16 k/v copies
        sc_b = bt * nhead * n_q * N_max * 4 * 2           # f32 scores + probs
        w_b = (2 * d * d + d * 2 * d) * 2 + 4 * d * 4     # resident weights + biases
        return io + kv_b + sc_b + w_b

    budget = 20 << 20
    best = 1
    for t in range(1, B + 1):
        if B % t:
            continue
        if vmem_est(t) > budget:
            break
        if B > 1 and B // t < 2:
            break
        best = t
        if t * n_q >= 256:
            break
    return best


def cross_attention_layer(query, pe, source_padded, kv_lens, params, *, batch_tile=None):
    """query/pe: (B, n_q, d) f32; source_padded: (B, N_max, d) (bf16 preferred,
    N_max a multiple of 16); kv_lens: (B,) int32 valid key counts per batch."""
    B, n_q, d = query.shape
    N_max = source_padded.shape[1]
    nhead = params["nhead"]

    q_in = query if pe is None else query + pe             # with_pos_embed (f32)
    if source_padded.dtype != jnp.bfloat16:
        source_padded = source_padded.astype(jnp.bfloat16)  # halve source HBM traffic
    lens3 = kv_lens.astype(jnp.int32).reshape(B, 1, 1)

    if batch_tile is None:
        batch_tile = _pick_batch_tile(B, n_q, N_max, d, nhead, 2)
    assert B % batch_tile == 0
    bt = batch_tile

    grid_spec = pltpu.PrefetchScalarGridSpec(
        num_scalar_prefetch=0,
        grid=(B // bt,),
        in_specs=[
            pl.BlockSpec((bt, 1, 1), lambda g: (g, 0, 0)),        # kv_lens (per-tile)
            pl.BlockSpec((bt, n_q, d), lambda g: (g, 0, 0)),      # query (+pe), f32
            # TODO(synk): for heavily ragged sources, fetch only [off, off+len) from a flat
            # source via scalar-prefetched offsets / manual DMA instead of DMA-ing padding.
            pl.BlockSpec((bt, N_max, d), lambda g: (g, 0, 0)),    # padded source, bf16
            pl.BlockSpec((d, d), lambda g: (0, 0)),               # Wq^T * scale (resident)
            pl.BlockSpec((d, 2 * d), lambda g: (0, 0)),           # [Wk^T | Wv^T] (resident)
            pl.BlockSpec((d, d), lambda g: (0, 0)),               # Wo^T (resident)
            pl.BlockSpec((1, d), lambda g: (0, 0)),               # bq * scale
            pl.BlockSpec((1, 2 * d), lambda g: (0, 0)),           # [bk | bv]
            pl.BlockSpec((1, d), lambda g: (0, 0)),               # bo
        ],
        out_specs=pl.BlockSpec((bt, n_q, d), lambda g: (g, 0, 0)),
    )

    return pl.pallas_call(
        _make_cross_attn_kernel(nhead),
        out_shape=jax.ShapeDtypeStruct((B, n_q, d), query.dtype),
        grid_spec=grid_spec,
        compiler_params=pltpu.CompilerParams(dimension_semantics=("parallel",)),
    )(lens3, q_in, source_padded,
      params["wq_t"], params["wkv_t"], params["wo_t"],
      params["bq"], params["bkv"], params["bo"])


def init_params(key, d_model):
    """Raw params matching the torch module init: xavier_uniform on the (3d, d)
    in_proj weight and the (d, d) out_proj weight, zero biases."""
    k1, k2 = jax.random.split(key)
    a_in = math.sqrt(6.0 / (d_model + 3 * d_model))
    in_proj = jax.random.uniform(k1, (3 * d_model, d_model), jnp.float32, -a_in, a_in)
    a_out = math.sqrt(6.0 / (2 * d_model))
    out_proj = jax.random.uniform(k2, (d_model, d_model), jnp.float32, -a_out, a_out)
    return {
        "in_proj_weight": in_proj,
        "in_proj_bias": jnp.zeros((3 * d_model,), jnp.float32),
        "out_proj_weight": out_proj,
        "out_proj_bias": jnp.zeros((d_model,), jnp.float32),
    }


def prepare_params(raw, d_model, nhead):
    """One-time weight transform: fold 1/sqrt(head_dim) into Wq/bq, fuse K|V,
    pre-transpose to (d_in, d_out), cast MXU operands to bf16."""
    hd = d_model // nhead
    scale = 1.0 / math.sqrt(hd)
    wq = raw["in_proj_weight"][:d_model]
    wk = raw["in_proj_weight"][d_model:2 * d_model]
    wv = raw["in_proj_weight"][2 * d_model:]
    bq, bk, bv = jnp.split(raw["in_proj_bias"], 3)
    return {
        "nhead": nhead,
        "wq_t": (wq.T * scale).astype(jnp.bfloat16),
        "wkv_t": jnp.concatenate([wk.T, wv.T], axis=1).astype(jnp.bfloat16),
        "wo_t": raw["out_proj_weight"].T.astype(jnp.bfloat16),
        "bq": (bq * scale).reshape(1, d_model).astype(jnp.float32),
        "bkv": jnp.concatenate([bk, bv]).reshape(1, 2 * d_model).astype(jnp.float32),
        "bo": raw["out_proj_bias"].reshape(1, d_model).astype(jnp.float32),
    }


def reference(query, pe, source_flat, batch_offsets, params, nhead):
    """Plain-JAX replica of the torch forward on the ragged source, mirroring the
    kernel's precision policy (bf16 MXU operands, f32 accumulation, f32 softmax)."""
    q_all = query + pe
    d = query.shape[-1]
    hd = d // nhead
    f32 = jnp.float32
    wq, wkv, wo = params["wq_t"], params["wkv_t"], params["wo_t"]
    outs = []
    for i in range(len(batch_offsets) - 1):
        s = source_flat[batch_offsets[i]:batch_offsets[i + 1]]
        q_in = q_all[i]
        q = jnp.dot(q_in.astype(jnp.bfloat16), wq, preferred_element_type=f32) + params["bq"]
        kv = jnp.dot(s.astype(jnp.bfloat16), wkv, preferred_element_type=f32) + params["bkv"]
        k, v = kv[:, :d], kv[:, d:]
        n_q = q.shape[0]
        qh = q.reshape(n_q, nhead, hd).transpose(1, 0, 2).astype(jnp.bfloat16)
        kh = k.reshape(-1, nhead, hd).transpose(1, 0, 2).astype(jnp.bfloat16)
        vh = v.reshape(-1, nhead, hd).transpose(1, 0, 2).astype(jnp.bfloat16)
        sc = jnp.einsum("hqd,hkd->hqk", qh, kh, preferred_element_type=f32)
        p = jax.nn.softmax(sc, axis=-1)
        o = jnp.einsum("hqk,hkd->hqd", p.astype(jnp.bfloat16), vh, preferred_element_type=f32)
        attn = o.transpose(1, 0, 2).reshape(n_q, d)
        out = jnp.dot(attn.astype(jnp.bfloat16), wo, preferred_element_type=f32) + params["bo"]
        outs.append(out + q_in)
    return jnp.stack(outs, axis=0)


if __name__ == "__main__":
    d_model, nhead = 256, 8                 # module defaults
    B, n_q = 2, 8
    lengths = [12, 20]                      # ragged source lengths
    batch_offsets = [0]
    for n in lengths:
        batch_offsets.append(batch_offsets[-1] + n)

    key = jax.random.PRNGKey(0)
    kp, kq, ks, kpe = jax.random.split(key, 4)

    raw = init_params(kp, d_model)
    params = prepare_params(raw, d_model, nhead)

    query = jax.random.normal(kq, (B, n_q, d_model), jnp.float32)
    source_flat = jax.random.normal(ks, (batch_offsets[-1], d_model), jnp.float32)
    pe = jax.random.normal(kpe, (B, n_q, d_model), jnp.float32)

    # Pad the ragged source batch-major in bf16; round N_max up to a multiple of 16
    # (bf16 sublane packing).
    N_max = ((max(lengths) + 15) // 16) * 16
    kv_lens = jnp.array(lengths, dtype=jnp.int32)
    source_padded = jnp.zeros((B, N_max, d_model), jnp.bfloat16)
    for i in range(B):
        source_padded = source_padded.at[i, :lengths[i]].set(
            source_flat[batch_offsets[i]:batch_offsets[i + 1]].astype(jnp.bfloat16))

    out = cross_attention_layer(query, pe, source_padded, kv_lens, params)
    out = jax.block_until_ready(out)

    ref = reference(query, pe, source_flat, batch_offsets, params, nhead)
    assert out.shape == (B, n_q, d_model)
    err = float(jnp.max(jnp.abs(out - ref)))
    # approx-reciprocal softmax + bf16 MXU operands introduce a small systematic
    # difference vs the exact-softmax reference; 1e-2 comfortably bounds it.
    assert jnp.allclose(out, ref, rtol=1e-2, atol=1e-2), f"max abs err {err}"

    print("KERNEL_OK")
</pallas_src>

<mosaic_0001>
module attributes {stable_mosaic.version = 11 : i64} {
  func.func @kernel(%arg0: i32, %arg1: memref<1x1x1xi32, #tpu.memory_space<vmem>>, %arg2: memref<1x8x256xf32, #tpu.memory_space<vmem>>, %arg3: memref<1x32x256xbf16, #tpu.memory_space<vmem>>, %arg4: memref<256x256xbf16, #tpu.memory_space<vmem>>, %arg5: memref<256x512xbf16, #tpu.memory_space<vmem>>, %arg6: memref<256x256xbf16, #tpu.memory_space<vmem>>, %arg7: memref<1x256xf32, #tpu.memory_space<vmem>>, %arg8: memref<1x512xf32, #tpu.memory_space<vmem>>, %arg9: memref<1x256xf32, #tpu.memory_space<vmem>>, %arg10: memref<1x8x256xf32, #tpu.memory_space<vmem>>) attributes {dimension_semantics = [#tpu.dimension_semantics<parallel>], iteration_bounds = array<i64: 2>, scalar_prefetch = 0 : i64, scratch_operands = 0 : i64, tpu.core_type = #tpu.core_type<tc>, window_params = [{transform_indices = @transform_0, window_bounds = array<i64: 1, 1, 1>}, {transform_indices = @transform_1, window_bounds = array<i64: 1, 8, 256>}, {transform_indices = @transform_2, window_bounds = array<i64: 1, 32, 256>}, {pipeline_mode = #tpu.pipeline_mode<synchronous>, transform_indices = @transform_3, window_bounds = array<i64: 256, 256>}, {pipeline_mode = #tpu.pipeline_mode<synchronous>, transform_indices = @transform_4, window_bounds = array<i64: 256, 512>}, {pipeline_mode = #tpu.pipeline_mode<synchronous>, transform_indices = @transform_5, window_bounds = array<i64: 256, 256>}, {pipeline_mode = #tpu.pipeline_mode<synchronous>, transform_indices = @transform_6, window_bounds = array<i64: 1, 256>}, {pipeline_mode = #tpu.pipeline_mode<synchronous>, transform_indices = @transform_7, window_bounds = array<i64: 1, 512>}, {pipeline_mode = #tpu.pipeline_mode<synchronous>, transform_indices = @transform_8, window_bounds = array<i64: 1, 256>}, {transform_indices = @transform_9, window_bounds = array<i64: 1, 8, 256>}]} {
    %c0 = arith.constant 0 : index
    %c0_0 = arith.constant 0 : index
    %c0_1 = arith.constant 0 : index
    %0 = vector.load %arg2[%c0, %c0_0, %c0_1] : memref<1x8x256xf32, #tpu.memory_space<vmem>>, vector<1x8x256xf32>
    %1 = vector.shape_cast %0 : vector<1x8x256xf32> to vector<8x256xf32>
    %2 = arith.truncf %1 : vector<8x256xf32> to vector<8x256xbf16>
    %c0_2 = arith.constant 0 : index
    %c0_3 = arith.constant 0 : index
    %c0_4 = arith.constant 0 : index
    %3 = vector.load %arg3[%c0_2, %c0_3, %c0_4] : memref<1x32x256xbf16, #tpu.memory_space<vmem>>, vector<1x32x256xbf16>
    %4 = vector.shape_cast %3 : vector<1x32x256xbf16> to vector<32x256xbf16>
    %c0_5 = arith.constant 0 : index
    %c0_6 = arith.constant 0 : index
    %5 = vector.load %arg4[%c0_5, %c0_6] : memref<256x256xbf16, #tpu.memory_space<vmem>>, vector<256x256xbf16>
    %cst = arith.constant dense<0.000000e+00> : vector<8x256xf32>
    %6 = tpu.matmul %2, %5, %cst {dimension_numbers = #tpu.dot_dimension_numbers<[1], [0], [0], [1], [0, 0, 1, 1], [], []>} : vector<8x256xbf16>, vector<256x256xbf16>, vector<8x256xf32> -> vector<8x256xf32>
    %c0_7 = arith.constant 0 : index
    %c0_8 = arith.constant 0 : index
    %7 = vector.load %arg7[%c0_7, %c0_8] : memref<1x256xf32, #tpu.memory_space<vmem>>, vector<1x256xf32>
    %8 = vector.broadcast %7 : vector<1x256xf32> to vector<8x256xf32>
    %9 = arith.addf %6, %8 : vector<8x256xf32>
    %c0_9 = arith.constant 0 : index
    %c0_10 = arith.constant 0 : index
    %10 = vector.load %arg5[%c0_9, %c0_10] : memref<256x512xbf16, #tpu.memory_space<vmem>>, vector<256x512xbf16>
    %cst_11 = arith.constant dense<0.000000e+00> : vector<32x512xf32>
    %11 = tpu.matmul %4, %10, %cst_11 {dimension_numbers = #tpu.dot_dimension_numbers<[1], [0], [0], [1], [0, 0, 1, 1], [], []>} : vector<32x256xbf16>, vector<256x512xbf16>, vector<32x512xf32> -> vector<32x512xf32>
    %c0_12 = arith.constant 0 : index
    %c0_13 = arith.constant 0 : index
    %12 = vector.load %arg8[%c0_12, %c0_13] : memref<1x512xf32, #tpu.memory_space<vmem>>, vector<1x512xf32>
    %13 = vector.broadcast %12 : vector<1x512xf32> to vector<32x512xf32>
    %14 = arith.addf %11, %13 : vector<32x512xf32>
    %15 = arith.truncf %9 : vector<8x256xf32> to vector<8x256xbf16>
    %16 = vector.shape_cast %15 : vector<8x256xbf16> to vector<1x8x8x32xbf16>
    %17 = tpu.transpose %16, [0, 2, 1, 3] : vector<1x8x8x32xbf16> -> vector<1x8x8x32xbf16>
    %18 = vector.shape_cast %17 : vector<1x8x8x32xbf16> to vector<8x8x32xbf16>
    %19 = vector.extract_strided_slice %14 {offsets = [0, 0], sizes = [32, 256], strides = [1, 1]} : vector<32x512xf32> to vector<32x256xf32>
    %20 = arith.truncf %19 : vector<32x256xf32> to vector<32x256xbf16>
    %21 = vector.shape_cast %20 : vector<32x256xbf16> to vector<1x32x8x32xbf16>
    %22 = tpu.transpose %21, [0, 2, 1, 3] : vector<1x32x8x32xbf16> -> vector<1x8x32x32xbf16>
    %23 = vector.shape_cast %22 : vector<1x8x32x32xbf16> to vector<8x32x32xbf16>
    %24 = vector.extract_strided_slice %14 {offsets = [0, 256], sizes = [32, 256], strides = [1, 1]} : vector<32x512xf32> to vector<32x256xf32>
    %25 = arith.truncf %24 : vector<32x256xf32> to vector<32x256xbf16>
    %26 = vector.shape_cast %25 : vector<32x256xbf16> to vector<1x32x8x32xbf16>
    %27 = tpu.transpose %26, [0, 2, 1, 3] : vector<1x32x8x32xbf16> -> vector<1x8x32x32xbf16>
    %28 = vector.shape_cast %27 : vector<1x8x32x32xbf16> to vector<8x32x32xbf16>
    "tpu.trace_start"() <{level = 10 : i32, message = "gqd,gkd->gqk"}> : () -> ()
    %cst_14 = arith.constant dense<0.000000e+00> : vector<8x8x32xf32>
    %29 = tpu.matmul %18, %23, %cst_14 {dimension_numbers = #tpu.dot_dimension_numbers<[2], [2], [1], [1], [0, 0, 0, 1, 1, 1], [0], [0]>} : vector<8x8x32xbf16>, vector<8x32x32xbf16>, vector<8x8x32xf32> -> vector<8x8x32xf32>
    "tpu.trace_stop"() : () -> ()
    %30 = vector.shape_cast %29 : vector<8x8x32xf32> to vector<1x8x8x32xf32>
    %c0_15 = arith.constant 0 : index
    %c0_16 = arith.constant 0 : index
    %c0_17 = arith.constant 0 : index
    %31 = vector.load %arg1[%c0_15, %c0_16, %c0_17] : memref<1x1x1xi32, #tpu.memory_space<vmem>>, vector<1x1x1xi32>
    %32 = vector.shape_cast %31 : vector<1x1x1xi32> to vector<1x1x1x1xi32>
    %33 = tpu.iota {dimensions = array<i32: 3>} : vector<1x1x1x32xi32>
    %34 = vector.broadcast %32 : vector<1x1x1x1xi32> to vector<1x1x1x32xi32>
    %35 = arith.cmpi slt, %33, %34 : vector<1x1x1x32xi32>
    %cst_18 = arith.constant -1.000000e+30 : f32
    %36 = vector.shape_cast %35 : vector<1x1x1x32xi1> to vector<1x1x1x32xi1>
    %37 = vector.broadcast %36 : vector<1x1x1x32xi1> to vector<1x8x8x32xi1>
    %38 = vector.broadcast %cst_18 : f32 to vector<1x8x8x32xf32>
    %39 = arith.select %37, %30, %38 : vector<1x8x8x32xi1>, vector<1x8x8x32xf32>
    %cst_19 = arith.constant dense<0xFF800000> : vector<1x8x8xf32>
    %40 = vector.multi_reduction <maximumf>, %39, %cst_19 [3] : vector<1x8x8x32xf32> to vector<1x8x8xf32>
    %41 = vector.shape_cast %40 : vector<1x8x8xf32> to vector<1x8x8x1xf32>
    %42 = vector.broadcast %41 : vector<1x8x8x1xf32> to vector<1x8x8x32xf32>
    %43 = arith.subf %39, %42 : vector<1x8x8x32xf32>
    %44 = math.exp %43 : vector<1x8x8x32xf32>
    %cst_20 = arith.constant dense<0.000000e+00> : vector<1x8x8xf32>
    %45 = vector.multi_reduction <add>, %44, %cst_20 [3] : vector<1x8x8x32xf32> to vector<1x8x8xf32>
    %46 = vector.shape_cast %45 : vector<1x8x8xf32> to vector<1x8x8x1xf32>
    %47 = tpu.reciprocal %46 {approx = true} : vector<1x8x8x1xf32> -> vector<1x8x8x1xf32>
    %48 = vector.broadcast %47 : vector<1x8x8x1xf32> to vector<1x8x8x32xf32>
    %49 = arith.mulf %44, %48 : vector<1x8x8x32xf32>
    %50 = vector.shape_cast %49 : vector<1x8x8x32xf32> to vector<8x8x32xf32>
    %51 = arith.truncf %50 : vector<8x8x32xf32> to vector<8x8x32xbf16>
    "tpu.trace_start"() <{level = 10 : i32, message = "gqk,gkd->gqd"}> : () -> ()
    %cst_21 = arith.constant dense<0.000000e+00> : vector<8x8x32xf32>
    %52 = tpu.matmul %51, %28, %cst_21 {dimension_numbers = #tpu.dot_dimension_numbers<[2], [1], [1], [2], [0, 0, 0, 1, 1, 2], [0], [0]>} : vector<8x8x32xbf16>, vector<8x32x32xbf16>, vector<8x8x32xf32> -> vector<8x8x32xf32>
    "tpu.trace_stop"() : () -> ()
    %53 = vector.shape_cast %52 : vector<8x8x32xf32> to vector<1x8x8x32xf32>
    %54 = tpu.transpose %53, [0, 2, 1, 3] : vector<1x8x8x32xf32> -> vector<1x8x8x32xf32>
    %55 = vector.shape_cast %54 : vector<1x8x8x32xf32> to vector<8x256xf32>
    %56 = arith.truncf %55 : vector<8x256xf32> to vector<8x256xbf16>
    %c0_22 = arith.constant 0 : index
    %c0_23 = arith.constant 0 : index
    %57 = vector.load %arg6[%c0_22, %c0_23] : memref<256x256xbf16, #tpu.memory_space<vmem>>, vector<256x256xbf16>
    %cst_24 = arith.constant dense<0.000000e+00> : vector<8x256xf32>
    %58 = tpu.matmul %56, %57, %cst_24 {dimension_numbers = #tpu.dot_dimension_numbers<[1], [0], [0], [1], [0, 0, 1, 1], [], []>} : vector<8x256xbf16>, vector<256x256xbf16>, vector<8x256xf32> -> vector<8x256xf32>
    %c0_25 = arith.constant 0 : index
    %c0_26 = arith.constant 0 : index
    %59 = vector.load %arg9[%c0_25, %c0_26] : memref<1x256xf32, #tpu.memory_space<vmem>>, vector<1x256xf32>
    %60 = vector.broadcast %59 : vector<1x256xf32> to vector<8x256xf32>
    %61 = arith.addf %58, %60 : vector<8x256xf32>
    %62 = vector.shape_cast %61 : vector<8x256xf32> to vector<1x8x256xf32>
    %63 = arith.addf %62, %0 : vector<1x8x256xf32>
    %c0_27 = arith.constant 0 : index
    %c0_28 = arith.constant 0 : index
    %c0_29 = arith.constant 0 : index
    %64 = vector.load %arg10[%c0_27, %c0_28, %c0_29] : memref<1x8x256xf32, #tpu.memory_space<vmem>>, vector<1x8x256xf32>
    tpu.vector_store %arg10[%c0_27, %c0_28, %c0_29], %63 {strides = array<i32>} : memref<1x8x256xf32, #tpu.memory_space<vmem>>, vector<1x8x256xf32>,
    return
  }
  func.func @transform_0(%arg0: i32) -> (i32, i32, i32) {
    %c0_i32 = arith.constant 0 : i32
    %c0_i32_0 = arith.constant 0 : i32
    %c0_i32_1 = arith.constant 0 : i32
    return %arg0, %c0_i32, %c0_i32_0 : i32, i32, i32
  }
  func.func @transform_1(%arg0: i32) -> (i32, i32, i32) {
    %c0_i32 = arith.constant 0 : i32
    %c0_i32_0 = arith.constant 0 : i32
    %c0_i32_1 = arith.constant 0 : i32
    return %arg0, %c0_i32, %c0_i32_0 : i32, i32, i32
  }
  func.func @transform_2(%arg0: i32) -> (i32, i32, i32) {
    %c0_i32 = arith.constant 0 : i32
    %c0_i32_0 = arith.constant 0 : i32
    %c0_i32_1 = arith.constant 0 : i32
    return %arg0, %c0_i32, %c0_i32_0 : i32, i32, i32
  }
  func.func @transform_3(%arg0: i32) -> (i32, i32) {
    %c0_i32 = arith.constant 0 : i32
    %c0_i32_0 = arith.constant 0 : i32
    %c0_i32_1 = arith.constant 0 : i32
    return %c0_i32, %c0_i32_0 : i32, i32
  }
  func.func @transform_4(%arg0: i32) -> (i32, i32) {
    %c0_i32 = arith.constant 0 : i32
    %c0_i32_0 = arith.constant 0 : i32
    %c0_i32_1 = arith.constant 0 : i32
    return %c0_i32, %c0_i32_0 : i32, i32
  }
  func.func @transform_5(%arg0: i32) -> (i32, i32) {
    %c0_i32 = arith.constant 0 : i32
    %c0_i32_0 = arith.constant 0 : i32
    %c0_i32_1 = arith.constant 0 : i32
    return %c0_i32, %c0_i32_0 : i32, i32
  }
  func.func @transform_6(%arg0: i32) -> (i32, i32) {
    %c0_i32 = arith.constant 0 : i32
    %c0_i32_0 = arith.constant 0 : i32
    %c0_i32_1 = arith.constant 0 : i32
    return %c0_i32, %c0_i32_0 : i32, i32
  }
  func.func @transform_7(%arg0: i32) -> (i32, i32) {
    %c0_i32 = arith.constant 0 : i32
    %c0_i32_0 = arith.constant 0 : i32
    %c0_i32_1 = arith.constant 0 : i32
    return %c0_i32, %c0_i32_0 : i32, i32
  }
  func.func @transform_8(%arg0: i32) -> (i32, i32) {
    %c0_i32 = arith.constant 0 : i32
    %c0_i32_0 = arith.constant 0 : i32
    %c0_i32_1 = arith.constant 0 : i32
    return %c0_i32, %c0_i32_0 : i32, i32
  }
  func.func @transform_9(%arg0: i32) -> (i32, i32, i32) {
    %c0_i32 = arith.constant 0 : i32
    %c0_i32_0 = arith.constant 0 : i32
    %c0_i32_1 = arith.constant 0 : i32
    return %arg0, %c0_i32, %c0_i32_0 : i32, i32, i32
  }
}

</mosaic_0001>

<llo_original>
// kernel: tpu_custom_call.1
$region0: #{tpu_custom_call.1}
  #allocation0 [shape = 'u32[]', space=smem, size = 0x4, offset = 0x4, fixed_abs, tag = 'smem constant byte address 0x4 - core index']
  #allocation1 [shape = 'u32[144,128]{1,0:T(1,128)}', space=vmem, size = 0x12000, scoped, tag = 'internal scratch']
  %s0 = inlined_call_operand.vmem [shape: s32[2,1,1], index: 0, kind: input, shape index: {}]
  %s1 = inlined_call_operand.hbm [shape: f32[2,8,256], index: 1, kind: input, shape index: {}]
  %s2 = inlined_call_operand.hbm [shape: bf16[2,32,256], index: 2, kind: input, shape index: {}]
  %s3 = inlined_call_operand.hbm [shape: bf16[256,256], index: 3, kind: input, shape index: {}]
  %s4 = inlined_call_operand.hbm [shape: bf16[256,512], index: 4, kind: input, shape index: {}]
  %s5 = inlined_call_operand.hbm [shape: bf16[256,256], index: 5, kind: input, shape index: {}]
  %s6 = inlined_call_operand.vmem [shape: f32[1,256], index: 6, kind: input, shape index: {}]
  %s7 = inlined_call_operand.vmem [shape: f32[1,512], index: 7, kind: input, shape index: {}]
  %s8 = inlined_call_operand.vmem [shape: f32[1,256], index: 8, kind: input, shape index: {}]
  %s9 = inlined_call_operand.hbm [shape: f32[2,8,256], index: 9, kind: output, shape index: {}]
  %s10 = sld [smem:[#allocation0]]
  $region89: #{tpu_custom_call.1} parent=0
    _
  %s12 = ssub.s32 1, %s10
  %s13 = scalar_select 0, %s12, %s10
  $region1: #{tpu_custom_call.1} parent=0
    #allocation2 [shape = 'u8[16384]{0}', space=vmem, size = 0x4000, scoped, tag = 'input window, operand 1']
    #allocation3 [shape = 's32[2]{0}', space=sflag, size = 0x8, scoped, tag = 'scoped memory for tpu_custom_call.1']
    #allocation4 [shape = 's32[2]{0}', space=sflag, size = 0x8, scoped, tag = 'scoped memory for tpu_custom_call.1']
    #allocation5 [shape = 'u8[32768]{0}', space=vmem, size = 0x8000, scoped, tag = 'input window, operand 2']
    #allocation6 [shape = 's32[2]{0}', space=sflag, size = 0x8, scoped, tag = 'scoped memory for tpu_custom_call.1']
    #allocation7 [shape = 'u8[131072]{0}', space=vmem, size = 0x20000, scoped, tag = 'input window, operand 3, single buffered']
    #allocation8 [shape = 'u8[262144]{0}', space=vmem, size = 0x40000, scoped, tag = 'input window, operand 4, single buffered']
    #allocation9 [shape = 's32[1]{0}', space=sflag, size = 0x4, scoped, tag = 'scoped memory for tpu_custom_call.1']
    #allocation10 [shape = 'u8[131072]{0}', space=vmem, size = 0x20000, scoped, tag = 'input window, operand 5, single buffered']
    #allocation11 [shape = 'u8[16384]{0}', space=vmem, size = 0x4000, scoped, tag = 'output window, operand 0']
    %14 = vsyncpa [#allocation3], 0
    %s15 = scalar_lea.sflag [#allocation3], 1
    %16 = vsyncpa %s15, 0
    %17 = vsyncpa [#allocation6], 0
    %s18 = scalar_lea.sflag [#allocation6], 1
    %19 = vsyncpa %s18, 0
    %20 = vsyncpa [#allocation9], 0
    %21 = vsyncpa [#allocation4], 0
    %s22 = scalar_lea.sflag [#allocation4], 1
    %23 = vsyncpa %s22, 0
    loop: start=0, step=1, limit=4
    $region2: #{tpu_custom_call.1} parent=1 // loop_pre_header
      _
    $region3: #{tpu_custom_call.1} parent=1 // loop_header
      %s25 = sphi 0, %s29
      %p26 = scmp.ge.s32.totalorder %s25, 4
      %s35 = sphi 0, %s37
      %s38 = sphi 0, %s35
      %s39 = sphi 0, %s38
      %s55 = sphi 0, %s39
      %s61 = sphi 0, %s63
      %s64 = sphi 0, %s61
      %s65 = sphi 0, %s64
      %s81 = sphi 0, %s65
      %s87 = sphi 0, %s89
      %s90 = sphi 0, %s87
      %s91 = sphi 0, %s90
      %s107 = sphi 0, %s91
      %s111 = sphi 0, %s111
      %s113 = sphi 0, %s111
      %s114 = sphi 0, %s113
      %s128 = sphi 0, %s114
      %s132 = sphi 0, %s132
      %s134 = sphi 0, %s132
      %s135 = sphi 0, %s134
      %s149 = sphi 0, %s135
      %s153 = sphi 0, %s153
      %s155 = sphi 0, %s153
      %s156 = sphi 0, %s155
      %s170 = sphi 0, %s156
      %s174 = sphi 0, %s174
      %s176 = sphi 0, %s174
      %s177 = sphi 0, %s176
      %s191 = sphi 0, %s177
      %s195 = sphi 0, %s195
      %s197 = sphi 0, %s195
      %s198 = sphi 0, %s197
      %s212 = sphi 0, %s198
      %s216 = sphi 0, %s216
      %s218 = sphi 0, %s216
      %s219 = sphi 0, %s218
      %s233 = sphi 0, %s219
      %s239 = sphi 0, %s241
      %s242 = sphi 0, %s239
      %s243 = sphi 0, %s242
      %s259 = sphi 0, %s243
    $region4: #{tpu_custom_call.1} parent=1 // loop_header_branch
      %28 = sbr.rel (%p26) target = $region8
    $region5: #{tpu_custom_call.1} parent=1 // loop_body
      %s30 = ssub.s32 %s25, 1
      %s31 = ssub.s32 %s25, 2
      %s32 = sadd.s32 %s25, 1
      %s33 = ssub.s32 %s25, %s32
      %p34 = scmp.eq.s32.totalorder %s33, 0
      %s36 = sadd.s32 %s35, 1
      %s37 = scalar_select %p34, %s35, %s36
      %p40 = pneg %p34
      %p41 = scmp.eq.s32.totalorder %s25, 1
      %p42 = por %p40, %p41
      %p43 = scmp.ne.s32.totalorder %s35, %s38
      %p44 = scmp.eq.s32.totalorder %s25, 0
      %p45 = por %p43, %p44
      %p46 = scmp.ne.s32.totalorder %s35, %s38
      %p47 = scmp.eq.s32.totalorder %s30, 1
      %p48 = por %p46, %p47
      %p49 = scmp.ne.s32.totalorder %s38, %s39
      %p50 = scmp.eq.s32.totalorder %s30, 0
      %p51 = por %p49, %p50
      %p52 = scmp.ne.s32.totalorder %s38, %s39
      %p53 = scmp.eq.s32.totalorder %s31, 1
      %p54 = por %p52, %p53
      %p56 = scmp.ne.s32.totalorder %s39, %s55
      %p57 = scmp.eq.s32.totalorder %s31, 0
      %p58 = por %p56, %p57
      %s59 = ssub.s32 %s25, %s32
      %p60 = scmp.eq.s32.totalorder %s59, 0
      %s62 = sadd.s32 %s61, 1
      %s63 = scalar_select %p60, %s61, %s62
      %p66 = pneg %p60
      %p67 = scmp.eq.s32.totalorder %s25, 1
      %p68 = por %p66, %p67
      %p69 = scmp.ne.s32.totalorder %s61, %s64
      %p70 = scmp.eq.s32.totalorder %s25, 0
      %p71 = por %p69, %p70
      %p72 = scmp.ne.s32.totalorder %s61, %s64
      %p73 = scmp.eq.s32.totalorder %s30, 1
      %p74 = por %p72, %p73
      %p75 = scmp.ne.s32.totalorder %s64, %s65
      %p76 = scmp.eq.s32.totalorder %s30, 0
      %p77 = por %p75, %p76
      %p78 = scmp.ne.s32.totalorder %s64, %s65
      %p79 = scmp.eq.s32.totalorder %s31, 1
      %p80 = por %p78, %p79
      %p82 = scmp.ne.s32.totalorder %s65, %s81
      %p83 = scmp.eq.s32.totalorder %s31, 0
      %p84 = por %p82, %p83
      %s85 = ssub.s32 %s25, %s32
      %p86 = scmp.eq.s32.totalorder %s85, 0
      %s88 = sadd.s32 %s87, 1
      %s89 = scalar_select %p86, %s87, %s88
      %p92 = pneg %p86
      %p93 = scmp.eq.s32.totalorder %s25, 1
      %p94 = por %p92, %p93
      %p95 = scmp.ne.s32.totalorder %s87, %s90
      %p96 = scmp.eq.s32.totalorder %s25, 0
      %p97 = por %p95, %p96
      %p98 = scmp.ne.s32.totalorder %s87, %s90
      %p99 = scmp.eq.s32.totalorder %s30, 1
      %p100 = por %p98, %p99
      %p101 = scmp.ne.s32.totalorder %s90, %s91
      %p102 = scmp.eq.s32.totalorder %s30, 0
      %p103 = por %p101, %p102
      %p104 = scmp.ne.s32.totalorder %s90, %s91
      %p105 = scmp.eq.s32.totalorder %s31, 1
      %p106 = por %p104, %p105
      %p108 = scmp.ne.s32.totalorder %s91, %s107
      %p109 = scmp.eq.s32.totalorder %s31, 0
      %p110 = por %p108, %p109
      %s112 = sadd.s32 %s111, 1
      %p115 = scmp.eq.s32.totalorder %s25, 1
      %p116 = scmp.ne.s32.totalorder %s111, %s113
      %p117 = scmp.eq.s32.totalorder %s25, 0
      %p118 = por %p116, %p117
      %p119 = scmp.ne.s32.totalorder %s111, %s113
      %p120 = scmp.eq.s32.totalorder %s30, 1
      %p121 = por %p119, %p120
      %p122 = scmp.ne.s32.totalorder %s113, %s114
      %p123 = scmp.eq.s32.totalorder %s30, 0
      %p124 = por %p122, %p123
      %p125 = scmp.ne.s32.totalorder %s113, %s114
      %p126 = scmp.eq.s32.totalorder %s31, 1
      %p127 = por %p125, %p126
      %p129 = scmp.ne.s32.totalorder %s114, %s128
      %p130 = scmp.eq.s32.totalorder %s31, 0
      %p131 = por %p129, %p130
      %s133 = sadd.s32 %s132, 1
      %p136 = scmp.eq.s32.totalorder %s25, 1
      %p137 = scmp.ne.s32.totalorder %s132, %s134
      %p138 = scmp.eq.s32.totalorder %s25, 0
      %p139 = por %p137, %p138
      %p140 = scmp.ne.s32.totalorder %s132, %s134
      %p141 = scmp.eq.s32.totalorder %s30, 1
      %p142 = por %p140, %p141
      %p143 = scmp.ne.s32.totalorder %s134, %s135
      %p144 = scmp.eq.s32.totalorder %s30, 0
      %p145 = por %p143, %p144
      %p146 = scmp.ne.s32.totalorder %s134, %s135
      %p147 = scmp.eq.s32.totalorder %s31, 1
      %p148 = por %p146, %p147
      %p150 = scmp.ne.s32.totalorder %s135, %s149
      %p151 = scmp.eq.s32.totalorder %s31, 0
      %p152 = por %p150, %p151
      %s154 = sadd.s32 %s153, 1
      %p157 = scmp.eq.s32.totalorder %s25, 1
      %p158 = scmp.ne.s32.totalorder %s153, %s155
      %p159 = scmp.eq.s32.totalorder %s25, 0
      %p160 = por %p158, %p159
      %p161 = scmp.ne.s32.totalorder %s153, %s155
      %p162 = scmp.eq.s32.totalorder %s30, 1
      %p163 = por %p161, %p162
      %p164 = scmp.ne.s32.totalorder %s155, %s156
      %p165 = scmp.eq.s32.totalorder %s30, 0
      %p166 = por %p164, %p165
      %p167 = scmp.ne.s32.totalorder %s155, %s156
      %p168 = scmp.eq.s32.totalorder %s31, 1
      %p169 = por %p167, %p168
      %p171 = scmp.ne.s32.totalorder %s156, %s170
      %p172 = scmp.eq.s32.totalorder %s31, 0
      %p173 = por %p171, %p172
      %s175 = sadd.s32 %s174, 1
      %p178 = scmp.eq.s32.totalorder %s25, 1
      %p179 = scmp.ne.s32.totalorder %s174, %s176
      %p180 = scmp.eq.s32.totalorder %s25, 0
      %p181 = por %p179, %p180
      %p182 = scmp.ne.s32.totalorder %s174, %s176
      %p183 = scmp.eq.s32.totalorder %s30, 1
      %p184 = por %p182, %p183
      %p185 = scmp.ne.s32.totalorder %s176, %s177
      %p186 = scmp.eq.s32.totalorder %s30, 0
      %p187 = por %p185, %p186
      %p188 = scmp.ne.s32.totalorder %s176, %s177
      %p189 = scmp.eq.s32.totalorder %s31, 1
      %p190 = por %p188, %p189
      %p192 = scmp.ne.s32.totalorder %s177, %s191
      %p193 = scmp.eq.s32.totalorder %s31, 0
      %p194 = por %p192, %p193
      %s196 = sadd.s32 %s195, 1
      %p199 = scmp.eq.s32.totalorder %s25, 1
      %p200 = scmp.ne.s32.totalorder %s195, %s197
      %p201 = scmp.eq.s32.totalorder %s25, 0
      %p202 = por %p200, %p201
      %p203 = scmp.ne.s32.totalorder %s195, %s197
      %p204 = scmp.eq.s32.totalorder %s30, 1
      %p205 = por %p203, %p204
      %p206 = scmp.ne.s32.totalorder %s197, %s198
      %p207 = scmp.eq.s32.totalorder %s30, 0
      %p208 = por %p206, %p207
      %p209 = scmp.ne.s32.totalorder %s197, %s198
      %p210 = scmp.eq.s32.totalorder %s31, 1
      %p211 = por %p209, %p210
      %p213 = scmp.ne.s32.totalorder %s198, %s212
      %p214 = scmp.eq.s32.totalorder %s31, 0
      %p215 = por %p213, %p214
      %s217 = sadd.s32 %s216, 1
      %p220 = scmp.eq.s32.totalorder %s25, 1
      %p221 = scmp.ne.s32.totalorder %s216, %s218
      %p222 = scmp.eq.s32.totalorder %s25, 0
      %p223 = por %p221, %p222
      %p224 = scmp.ne.s32.totalorder %s216, %s218
      %p225 = scmp.eq.s32.totalorder %s30, 1
      %p226 = por %p224, %p225
      %p227 = scmp.ne.s32.totalorder %s218, %s219
      %p228 = scmp.eq.s32.totalorder %s30, 0
      %p229 = por %p227, %p228
      %p230 = scmp.ne.s32.totalorder %s218, %s219
      %p231 = scmp.eq.s32.totalorder %s31, 1
      %p232 = por %p230, %p231
      %p234 = scmp.ne.s32.totalorder %s219, %s233
      %p235 = scmp.eq.s32.totalorder %s31, 0
      %p236 = por %p234, %p235
      %s237 = ssub.s32 %s25, %s32
      %p238 = scmp.eq.s32.totalorder %s237, 0
      %s240 = sadd.s32 %s239, 1
      %s241 = scalar_select %p238, %s239, %s240
      %p244 = pneg %p238
      %p245 = scmp.eq.s32.totalorder %s25, 1
      %p246 = por %p244, %p245
      %p247 = scmp.ne.s32.totalorder %s239, %s242
      %p248 = scmp.eq.s32.totalorder %s25, 0
      %p249 = por %p247, %p248
      %p250 = scmp.ne.s32.totalorder %s239, %s242
      %p251 = scmp.eq.s32.totalorder %s30, 1
      %p252 = por %p250, %p251
      %p253 = scmp.ne.s32.totalorder %s242, %s243
      %p254 = scmp.eq.s32.totalorder %s30, 0
      %p255 = por %p253, %p254
      %p256 = scmp.ne.s32.totalorder %s242, %s243
      %p257 = scmp.eq.s32.totalorder %s31, 1
      %p258 = por %p256, %p257
      %p260 = scmp.ne.s32.totalorder %s243, %s259
      %p261 = scmp.eq.s32.totalorder %s31, 0
      %p262 = por %p260, %p261
      %p263 = scmp.le.s32.totalorder 1, %s25
      %p264 = scmp.lt.s32.totalorder %s25, 3
      %p265 = pnand %p263, %p264
      %p266 = pneg %p265
      // Predicated region
      $region9: #{tpu_custom_call.1} parent=5 // pred_check
        _
      $region10: #{tpu_custom_call.1} parent=5 // pred_check_branch
        %268 = sbr.rel (%p265) target = $region12
      $region11: #{tpu_custom_call.1} parent=5 // pred_region
        %s269 = ssub.s32 %s25, 1
        // Predicated region
        $region13: #{tpu_custom_call.1} parent=11 // pred_check
          %p270 = pneg %p124
        $region14: #{tpu_custom_call.1} parent=11 // pred_check_branch
          %272 = sbr.rel (%p270) target = $region16
        $region15: #{tpu_custom_call.1} parent=11 // pred_region
          %s274 = ssub.s32 4096, 4096
          %275 = vsyncadd [#allocation6], %s274
          %s276 = sshll.u32 [#allocation7], 4
          %s277 = int_to_ptr.vmem [resolvable:$true] %s276
          %282 = dma.hbm_to_vmem [thread:$0]  %s3, 4096, %s277, [#allocation6], 128, 128, 8
        $region16: #{tpu_custom_call.1} parent=11 // pred_fallthru
          _
        // Predicated region
        $region17: #{tpu_custom_call.1} parent=11 // pred_check
          %p283 = pneg %p145
        $region18: #{tpu_custom_call.1} parent=11 // pred_check_branch
          %285 = sbr.rel (%p283) target = $region20
        $region19: #{tpu_custom_call.1} parent=11 // pred_region
          %s287 = ssub.s32 8192, 8192
          %288 = vsyncadd [#allocation9], %s287
          %s289 = sshll.u32 [#allocation8], 4
          %s290 = int_to_ptr.vmem [resolvable:$true] %s289
          %295 = dma.hbm_to_vmem [thread:$0]  %s4, 8192, %s290, [#allocation9], 256, 256, 16
        $region20: #{tpu_custom_call.1} parent=11 // pred_fallthru
          _
        // Predicated region
        $region21: #{tpu_custom_call.1} parent=11 // pred_check
          %p296 = pneg %p166
        $region22: #{tpu_custom_call.1} parent=11 // pred_check_branch
          %298 = sbr.rel (%p296) target = $region24
        $region23: #{tpu_custom_call.1} parent=11 // pred_region
          %s300 = ssub.s32 4096, 4096
          %301 = vsyncadd [#allocation9], %s300
          %s302 = sshll.u32 [#allocation10], 4
          %s303 = int_to_ptr.vmem [resolvable:$true] %s302
          %308 = dma.hbm_to_vmem [thread:$0]  %s5, 4096, %s303, [#allocation9], 128, 128, 8
        $region24: #{tpu_custom_call.1} parent=11 // pred_fallthru
          _
        // Predicated region
        $region25: #{tpu_custom_call.1} parent=11 // pred_check
          %p309 = pneg %p187
        $region26: #{tpu_custom_call.1} parent=11 // pred_check_branch
          %311 = sbr.rel (%p309) target = $region28
        $region27: #{tpu_custom_call.1} parent=11 // pred_region
          _
        $region28: #{tpu_custom_call.1} parent=11 // pred_fallthru
          _
        // Predicated region
        $region29: #{tpu_custom_call.1} parent=11 // pred_check
          %p312 = pneg %p208
        $region30: #{tpu_custom_call.1} parent=11 // pred_check_branch
          %314 = sbr.rel (%p312) target = $region32
        $region31: #{tpu_custom_call.1} parent=11 // pred_region
          _
        $region32: #{tpu_custom_call.1} parent=11 // pred_fallthru
          _
        // Predicated region
        $region33: #{tpu_custom_call.1} parent=11 // pred_check
          %p315 = pneg %p229
        $region34: #{tpu_custom_call.1} parent=11 // pred_check_branch
          %317 = sbr.rel (%p315) target = $region36
        $region35: #{tpu_custom_call.1} parent=11 // pred_region
          _
        $region36: #{tpu_custom_call.1} parent=11 // pred_fallthru
          _
      $region12: #{tpu_custom_call.1} parent=5 // pred_fallthru
        _
      %p318 = scmp.lt.s32.totalorder %s25, 2
      // Predicated region
      $region37: #{tpu_custom_call.1} parent=5 // pred_check
        %p319 = pneg %p318
      $region38: #{tpu_custom_call.1} parent=5 // pred_check_branch
        %321 = sbr.rel (%p319) target = $region40
      $region39: #{tpu_custom_call.1} parent=5 // pred_region
        // Predicated region
        $region41: #{tpu_custom_call.1} parent=39 // pred_check
          %p322 = pneg %p45
        $region42: #{tpu_custom_call.1} parent=39 // pred_check_branch
          %324 = sbr.rel (%p322) target = $region44
        $region43: #{tpu_custom_call.1} parent=39 // pred_region
          %p325 = scmp.lt.s32.totalorder %s25, 1
          %s326 = scalar_select %p325, %s25, 1
          %s327 = scalar_lea.vmem %s0, %s326
        $region44: #{tpu_custom_call.1} parent=39 // pred_fallthru
          _
        // Predicated region
        $region45: #{tpu_custom_call.1} parent=39 // pred_check
          %p328 = pneg %p71
        $region46: #{tpu_custom_call.1} parent=39 // pred_check_branch
          %330 = sbr.rel (%p328) target = $region48
        $region47: #{tpu_custom_call.1} parent=39 // pred_region
          %s331 = sand.u32 %s61, 1
          %s332 = scalar_lea.sflag [#allocation3], %s331
          %s333 = sand.u32 %s61, 1
          %s334 = smul.addr %s333, 16
          %s335 = scalar_lea.vmem [#allocation2], %s334
          %s337 = ssub.s32 256, 256
          %338 = vsyncadd %s332, %s337
          %s339 = smul.addr %s25, 2
          %s340 = smul.addr %s339, 128
          %s341 = scalar_lea.hbm %s1, %s340
          %s343 = sshll.u32 %s335, 4
          %s344 = int_to_ptr.vmem [resolvable:$true] %s343
          %346 = dma.hbm_to_vmem [thread:$0]  %s341, 256, %s344, %s332
        $region48: #{tpu_custom_call.1} parent=39 // pred_fallthru
          _
        // Predicated region
        $region49: #{tpu_custom_call.1} parent=39 // pred_check
          %p347 = pneg %p97
        $region50: #{tpu_custom_call.1} parent=39 // pred_check_branch
          %349 = sbr.rel (%p347) target = $region52
        $region51: #{tpu_custom_call.1} parent=39 // pred_region
          %s350 = sand.u32 %s25, 1
          %s351 = scalar_lea.sflag [#allocation6], %s350
          %s352 = sand.u32 %s87, 1
          %s353 = smul.addr %s352, 32
          %s354 = scalar_lea.vmem [#allocation5], %s353
          %s356 = ssub.s32 512, 512
          %357 = vsyncadd %s351, %s356
          %s358 = smul.addr %s25, 8
          %s359 = smul.addr %s358, 64
          %s360 = scalar_lea.hbm %s2, %s359
          %s361 = sshll.u32 %s354, 4
          %s362 = int_to_ptr.vmem [resolvable:$true] %s361
          %367 = dma.hbm_to_vmem [thread:$0]  %s360, 512, %s362, %s351, 128, 128, 8
        $region52: #{tpu_custom_call.1} parent=39 // pred_fallthru
          _
      $region40: #{tpu_custom_call.1} parent=5 // pred_fallthru
        _
      %p368 = scmp.le.s32.totalorder 1, %s25
      %p369 = scmp.lt.s32.totalorder %s25, 3
      %p370 = pnand %p368, %p369
      %p371 = pneg %p370
      // Predicated region
      $region53: #{tpu_custom_call.1} parent=5 // pred_check
        _
      $region54: #{tpu_custom_call.1} parent=5 // pred_check_branch
        %373 = sbr.rel (%p370) target = $region56
      $region55: #{tpu_custom_call.1} parent=5 // pred_region
        %s374 = ssub.s32 %s25, 1
        %s375 = sand.u32 %s64, 1
        %s376 = scalar_lea.sflag [#allocation3], %s375
        %s377 = sand.u32 %s64, 1
        %s378 = smul.addr %s377, 16
        %s379 = scalar_lea.vmem [#allocation2], %s378
        // Predicated region
        $region57: #{tpu_custom_call.1} parent=55 // pred_check
          %p380 = pneg %p77
        $region58: #{tpu_custom_call.1} parent=55 // pred_check_branch
          %382 = sbr.rel (%p380) target = $region60
        $region59: #{tpu_custom_call.1} parent=55 // pred_region
          %383 = dma.done %s376, 256
        $region60: #{tpu_custom_call.1} parent=55 // pred_fallthru
          _
        %s384 = sand.u32 %s30, 1
        %s385 = scalar_lea.sflag [#allocation6], %s384
        %s386 = sand.u32 %s90, 1
        %s387 = smul.addr %s386, 32
        %s388 = scalar_lea.vmem [#allocation5], %s387
        // Predicated region
        $region61: #{tpu_custom_call.1} parent=55 // pred_check
          %p389 = pneg %p103
        $region62: #{tpu_custom_call.1} parent=55 // pred_check_branch
          %391 = sbr.rel (%p389) target = $region64
        $region63: #{tpu_custom_call.1} parent=55 // pred_region
          %392 = dma.done %s385, 512
        $region64: #{tpu_custom_call.1} parent=55 // pred_fallthru
          _
        // Predicated region
        $region65: #{tpu_custom_call.1} parent=55 // pred_check
          %p393 = pneg %p124
        $region66: #{tpu_custom_call.1} parent=55 // pred_check_branch
          %395 = sbr.rel (%p393) target = $region68
        $region67: #{tpu_custom_call.1} parent=55 // pred_region
          %396 = dma.done [#allocation6], 4096
        $region68: #{tpu_custom_call.1} parent=55 // pred_fallthru
          _
        // Predicated region
        $region69: #{tpu_custom_call.1} parent=55 // pred_check
          %p397 = pneg %p145
        $region70: #{tpu_custom_call.1} parent=55 // pred_check_branch
          %399 = sbr.rel (%p397) target = $region72
        $region71: #{tpu_custom_call.1} parent=55 // pred_region
          %400 = dma.done [#allocation9], 8192
        $region72: #{tpu_custom_call.1} parent=55 // pred_fallthru
          _
        // Predicated region
        $region73: #{tpu_custom_call.1} parent=55 // pred_check
          %p401 = pneg %p166
        $region74: #{tpu_custom_call.1} parent=55 // pred_check_branch
          %403 = sbr.rel (%p401) target = $region76
        $region75: #{tpu_custom_call.1} parent=55 // pred_region
          %404 = dma.done [#allocation9], 4096
        $region76: #{tpu_custom_call.1} parent=55 // pred_fallthru
          _
        %p405 = scmp.lt.s32.totalorder %s30, 1
        %s406 = scalar_select %p405, %s30, 1
        %s407 = scalar_lea.vmem %s0, %s406
        %p408 = pneg %p51
        %p409 = pneg %p48
        %s410 = sand.u32 %s64, 1
        %s411 = scalar_lea.sflag [#allocation3], %s410
        %s412 = sand.u32 %s64, 1
        %s413 = smul.addr %s412, 16
        %s414 = scalar_lea.vmem [#allocation2], %s413
        %p415 = pneg %p77
        %p416 = pneg %p74
        %s417 = sand.u32 %s30, 1
        %s418 = scalar_lea.sflag [#allocation6], %s417
        %s419 = sand.u32 %s90, 1
        %s420 = smul.addr %s419, 32
        %s421 = scalar_lea.vmem [#allocation5], %s420
        %p422 = pneg %p103
        %p423 = pneg %p100
        %p424 = pneg %p124
        %p425 = pneg %p121
        %p426 = pneg %p145
        %p427 = pneg %p142
        %p428 = pneg %p166
        %p429 = pneg %p163
        %p430 = pneg %p187
        %p431 = pneg %p184
        %p432 = pneg %p208
        %p433 = pneg %p205
        %p434 = pneg %p229
        %p435 = pneg %p226
        %p436 = pneg %p255
        %p437 = pneg %p252
        %s438 = sand.u32 %s242, 1
        %s439 = scalar_lea.sflag [#allocation4], %s438
        %s440 = sand.u32 %s242, 1
        %s441 = smul.addr %s440, 16
        %s442 = scalar_lea.vmem [#allocation11], %s441
        %p443 = scmp.lt.s32.totalorder %s30, 1
        %s444 = scalar_select %p443, %s30, 1
        %s445 = scalar_lea.vmem %s0, %s444
        %v447 = vld [vmem:[%s379] sm:$0xff]
        %v448 = vld [vmem:[%s379 + $0x8] sm:$0xff]
        %v449 = vpack.c.bf16 %v447, %v447
        %v450 = vpack.c.bf16 %v448, %v448
        %v451 = vld [vmem:[%s388] sm:$0xff]
        %v452 = vld [vmem:[%s388 + $0x8] sm:$0xff]
        %v453 = vld [vmem:[%s388 + $0x10] sm:$0xff]
        %v454 = vld [vmem:[%s388 + $0x18] sm:$0xff]
        %v455 = vld [vmem:[#allocation7] sm:$0xff]
        %v456 = vld [vmem:[#allocation7 + $0x8] sm:$0xff]
        %v457 = vld [vmem:[#allocation7 + $0x10] sm:$0xff]
        %v458 = vld [vmem:[#allocation7 + $0x18] sm:$0xff]
        %v459 = vld [vmem:[#allocation7 + $0x20] sm:$0xff]
        %v460 = vld [vmem:[#allocation7 + $0x28] sm:$0xff]
        %v461 = vld [vmem:[#allocation7 + $0x30] sm:$0xff]
        %v462 = vld [vmem:[#allocation7 + $0x38] sm:$0xff]
        %v463 = vld [vmem:[#allocation7 + $0x40] sm:$0xff]
        %v464 = vld [vmem:[#allocation7 + $0x48] sm:$0xff]
        %v465 = vld [vmem:[#allocation7 + $0x50] sm:$0xff]
        %v466 = vld [vmem:[#allocation7 + $0x58] sm:$0xff]
        %v467 = vld [vmem:[#allocation7 + $0x60] sm:$0xff]
        %v468 = vld [vmem:[#allocation7 + $0x68] sm:$0xff]
        %v469 = vld [vmem:[#allocation7 + $0x70] sm:$0xff]
        %v470 = vld [vmem:[#allocation7 + $0x78] sm:$0xff]
        %v471 = vld [vmem:[#allocation7 + $0x80] sm:$0xff]
        %v472 = vld [vmem:[#allocation7 + $0x88] sm:$0xff]
        %v473 = vld [vmem:[#allocation7 + $0x90] sm:$0xff]
        %v474 = vld [vmem:[#allocation7 + $0x98] sm:$0xff]
        %v475 = vld [vmem:[#allocation7 + $0xa0] sm:$0xff]
        %v476 = vld [vmem:[#allocation7 + $0xa8] sm:$0xff]
        %v477 = vld [vmem:[#allocation7 + $0xb0] sm:$0xff]
        %v478 = vld [vmem:[#allocation7 + $0xb8] sm:$0xff]
        %v479 = vld [vmem:[#allocation7 + $0xc0] sm:$0xff]
        %v480 = vld [vmem:[#allocation7 + $0xc8] sm:$0xff]
        %v481 = vld [vmem:[#allocation7 + $0xd0] sm:$0xff]
        %v482 = vld [vmem:[#allocation7 + $0xd8] sm:$0xff]
        %v483 = vld [vmem:[#allocation7 + $0xe0] sm:$0xff]
        %v484 = vld [vmem:[#allocation7 + $0xe8] sm:$0xff]
        %v485 = vld [vmem:[#allocation7 + $0xf0] sm:$0xff]
        %v486 = vld [vmem:[#allocation7 + $0xf8] sm:$0xff]
        %v487 = vld [vmem:[%s6] sm:$0x3]
        %v489 = vlaneseq
        %v490 = vshrl.u32 %v489, 7
        %v491 = vsub.s32 0, %v490
        %v492 = vrot.slane %v487, %v491
        %v493 = vlaneseq
        %v494 = vshrl.u32 %v493, 7
        %v495 = vsub.s32 1, %v494
        %v496 = vrot.slane %v487, %v495
        %v531 = vunpack.c.l.b16 %v455
        %v532 = vunpack.c.h.b16 %v455
        %v533 = vunpack.c.l.b16 %v456
        %v534 = vunpack.c.h.b16 %v456
        %v535 = vunpack.c.l.b16 %v457
        %v536 = vunpack.c.h.b16 %v457
        %v537 = vunpack.c.l.b16 %v458
        %v538 = vunpack.c.h.b16 %v458
        %v539 = vunpack.c.l.b16 %v459
        %v540 = vunpack.c.h.b16 %v459
        %v541 = vunpack.c.l.b16 %v460
        %v542 = vunpack.c.h.b16 %v460
        %v543 = vunpack.c.l.b16 %v461
        %v544 = vunpack.c.h.b16 %v461
        %v545 = vunpack.c.l.b16 %v462
        %v546 = vunpack.c.h.b16 %v462
        %v547 = vunpack.c.l.b16 %v463
        %v548 = vunpack.c.h.b16 %v463
        %v549 = vunpack.c.l.b16 %v464
        %v550 = vunpack.c.h.b16 %v464
        %v551 = vunpack.c.l.b16 %v465
        %v552 = vunpack.c.h.b16 %v465
        %v553 = vunpack.c.l.b16 %v466
        %v554 = vunpack.c.h.b16 %v466
        %v555 = vunpack.c.l.b16 %v467
        %v556 = vunpack.c.h.b16 %v467
        %v557 = vunpack.c.l.b16 %v468
        %v558 = vunpack.c.h.b16 %v468
        %v559 = vunpack.c.l.b16 %v469
        %v560 = vunpack.c.h.b16 %v469
        %v561 = vunpack.c.l.b16 %v470
        %v562 = vunpack.c.h.b16 %v470
        %v563 = vunpack.c.l.b16 %v471
        %v564 = vunpack.c.h.b16 %v471
        %v565 = vunpack.c.l.b16 %v472
        %v566 = vunpack.c.h.b16 %v472
        %v567 = vunpack.c.l.b16 %v473
        %v568 = vunpack.c.h.b16 %v473
        %v569 = vunpack.c.l.b16 %v474
        %v570 = vunpack.c.h.b16 %v474
        %v571 = vunpack.c.l.b16 %v475
        %v572 = vunpack.c.h.b16 %v475
        %v573 = vunpack.c.l.b16 %v476
        %v574 = vunpack.c.h.b16 %v476
        %v575 = vunpack.c.l.b16 %v477
        %v576 = vunpack.c.h.b16 %v477
        %v577 = vunpack.c.l.b16 %v478
        %v578 = vunpack.c.h.b16 %v478
        %v579 = vunpack.c.l.b16 %v479
        %v580 = vunpack.c.h.b16 %v479
        %v581 = vunpack.c.l.b16 %v480
        %v582 = vunpack.c.h.b16 %v480
        %v583 = vunpack.c.l.b16 %v481
        %v584 = vunpack.c.h.b16 %v481
        %v585 = vunpack.c.l.b16 %v482
        %v586 = vunpack.c.h.b16 %v482
        %v587 = vunpack.c.l.b16 %v483
        %v588 = vunpack.c.h.b16 %v483
        %v589 = vunpack.c.l.b16 %v484
        %v590 = vunpack.c.h.b16 %v484
        %v591 = vunpack.c.l.b16 %v485
        %v592 = vunpack.c.h.b16 %v485
        %v593 = vunpack.c.l.b16 %v486
        %v594 = vunpack.c.h.b16 %v486
        %v595 = vpack.c.b16 %v533, %v531
        %v596 = vpack.c.b16 %v534, %v532
        %v597 = vpack.c.b16 %v537, %v535
        %v598 = vpack.c.b16 %v538, %v536
        %v599 = vpack.c.b16 %v541, %v539
        %v600 = vpack.c.b16 %v542, %v540
        %v601 = vpack.c.b16 %v545, %v543
        %v602 = vpack.c.b16 %v546, %v544
        %v603 = vpack.c.b16 %v549, %v547
        %v604 = vpack.c.b16 %v550, %v548
        %v605 = vpack.c.b16 %v553, %v551
        %v606 = vpack.c.b16 %v554, %v552
        %v607 = vpack.c.b16 %v557, %v555
        %v608 = vpack.c.b16 %v558, %v556
        %v609 = vpack.c.b16 %v561, %v559
        %v610 = vpack.c.b16 %v562, %v560
        %v611 = vpack.c.b16 %v565, %v563
        %v612 = vpack.c.b16 %v566, %v564
        %v613 = vpack.c.b16 %v569, %v567
        %v614 = vpack.c.b16 %v570, %v568
        %v615 = vpack.c.b16 %v573, %v571
        %v616 = vpack.c.b16 %v574, %v572
        %v617 = vpack.c.b16 %v577, %v575
        %v618 = vpack.c.b16 %v578, %v576
        %v619 = vpack.c.b16 %v581, %v579
        %v620 = vpack.c.b16 %v582, %v580
        %v621 = vpack.c.b16 %v585, %v583
        %v622 = vpack.c.b16 %v586, %v584
        %v623 = vpack.c.b16 %v589, %v587
        %v624 = vpack.c.b16 %v590, %v588
        %v625 = vpack.c.b16 %v593, %v591
        %v626 = vpack.c.b16 %v594, %v592
        %659 = vmatprep.subr.bf16.mxu0 %v596
        %660 = vmatpush1.bf16.msra.mxu0 %v595
        %661 = vmatprep.subr.bf16.mxu0 %v598
        %662 = vmatpush1.bf16.msra.mxu0 %v597
        %663 = vmatprep.subr.bf16.mxu0 %v600
        %664 = vmatpush1.bf16.msra.mxu0 %v599
        %665 = vmatprep.subr.bf16.mxu0 %v602
        %666 = vmatpush1.bf16.msra.mxu0 %v601
        %667 = vmatprep.subr.bf16.mxu0 %v604
        %668 = vmatpush1.bf16.msra.mxu0 %v603
        %669 = vmatprep.subr.bf16.mxu0 %v606
        %670 = vmatpush1.bf16.msra.mxu0 %v605
        %671 = vmatprep.subr.bf16.mxu0 %v608
        %672 = vmatpush1.bf16.msra.mxu0 %v607
        %673 = vmatprep.subr.bf16.mxu0 %v610
        %674 = vmatpush1.bf16.msra.mxu0 %v609
        %675 = vmatprep.subr.bf16.mxu0 %v612
        %676 = vmatpush1.bf16.msra.mxu0 %v611
        %677 = vmatprep.subr.bf16.mxu0 %v614
        %678 = vmatpush1.bf16.msra.mxu0 %v613
        %679 = vmatprep.subr.bf16.mxu0 %v616
        %680 = vmatpush1.bf16.msra.mxu0 %v615
        %681 = vmatprep.subr.bf16.mxu0 %v618
        %682 = vmatpush1.bf16.msra.mxu0 %v617
        %683 = vmatprep.subr.bf16.mxu0 %v620
        %684 = vmatpush1.bf16.msra.mxu0 %v619
        %685 = vmatprep.subr.bf16.mxu0 %v622
        %686 = vmatpush1.bf16.msra.mxu0 %v621
        %687 = vmatprep.subr.bf16.mxu0 %v624
        %688 = vmatpush1.bf16.msra.mxu0 %v623
        %689 = vmatprep.subr.bf16.mxu0 %v626
        %690 = vmatpush1.bf16.msra.mxu0 %v625
        %691 = vmatprep.mubr.bf16.mxu0 %v450
        %692 = vmatmul.mubr.bf16.gmra.mrb[0].mxu0 %v449
        %v693 = vpop.f32.mrb[0].mxu0
        %v694 = vadd.f32 %v492, %v693
        %v695 = vpop.f32.mrb[0].mxu0
        %v696 = vadd.f32 %v496, %v695
        %v697 = vpop.f32.mrb[0].mxu0
        %v698 = vpop.f32.mrb[0].mxu0
        %699 = vdwg.mxu0
        %v700 = vld [vmem:[#allocation8] sm:$0xff]
        %v701 = vld [vmem:[#allocation8 + $0x8] sm:$0xff]
        %v702 = vld [vmem:[#allocation8 + $0x10] sm:$0xff]
        %v703 = vld [vmem:[#allocation8 + $0x18] sm:$0xff]
        %v704 = vld [vmem:[#allocation8 + $0x20] sm:$0xff]
        %v705 = vld [vmem:[#allocation8 + $0x28] sm:$0xff]
        %v706 = vld [vmem:[#allocation8 + $0x30] sm:$0xff]
        %v707 = vld [vmem:[#allocation8 + $0x38] sm:$0xff]
        %v708 = vld [vmem:[#allocation8 + $0x40] sm:$0xff]
        %v709 = vld [vmem:[#allocation8 + $0x48] sm:$0xff]
        %v710 = vld [vmem:[#allocation8 + $0x50] sm:$0xff]
        %v711 = vld [vmem:[#allocation8 + $0x58] sm:$0xff]
        %v712 = vld [vmem:[#allocation8 + $0x60] sm:$0xff]
        %v713 = vld [vmem:[#allocation8 + $0x68] sm:$0xff]
        %v714 = vld [vmem:[#allocation8 + $0x70] sm:$0xff]
        %v715 = vld [vmem:[#allocation8 + $0x78] sm:$0xff]
        %v716 = vld [vmem:[#allocation8 + $0x80] sm:$0xff]
        %v717 = vld [vmem:[#allocation8 + $0x88] sm:$0xff]
        %v718 = vld [vmem:[#allocation8 + $0x90] sm:$0xff]
        %v719 = vld [vmem:[#allocation8 + $0x98] sm:$0xff]
        %v720 = vld [vmem:[#allocation8 + $0xa0] sm:$0xff]
        %v721 = vld [vmem:[#allocation8 + $0xa8] sm:$0xff]
        %v722 = vld [vmem:[#allocation8 + $0xb0] sm:$0xff]
        %v723 = vld [vmem:[#allocation8 + $0xb8] sm:$0xff]
        %v724 = vld [vmem:[#allocation8 + $0xc0] sm:$0xff]
        %v725 = vld [vmem:[#allocation8 + $0xc8] sm:$0xff]
        %v726 = vld [vmem:[#allocation8 + $0xd0] sm:$0xff]
        %v727 = vld [vmem:[#allocation8 + $0xd8] sm:$0xff]
        %v728 = vld [vmem:[#allocation8 + $0xe0] sm:$0xff]
        %v729 = vld [vmem:[#allocation8 + $0xe8] sm:$0xff]
        %v730 = vld [vmem:[#allocation8 + $0xf0] sm:$0xff]
        %v731 = vld [vmem:[#allocation8 + $0xf8] sm:$0xff]
        %v732 = vld [vmem:[#allocation8 + $0x100] sm:$0xff]
        %v733 = vld [vmem:[#allocation8 + $0x108] sm:$0xff]
        %v734 = vld [vmem:[#allocation8 + $0x110] sm:$0xff]
        %v735 = vld [vmem:[#allocation8 + $0x118] sm:$0xff]
        %v736 = vld [vmem:[#allocation8 + $0x120] sm:$0xff]
        %v737 = vld [vmem:[#allocation8 + $0x128] sm:$0xff]
        %v738 = vld [vmem:[#allocation8 + $0x130] sm:$0xff]
        %v739 = vld [vmem:[#allocation8 + $0x138] sm:$0xff]
        %v740 = vld [vmem:[#allocation8 + $0x140] sm:$0xff]
        %v741 = vld [vmem:[#allocation8 + $0x148] sm:$0xff]
        %v742 = vld [vmem:[#allocation8 + $0x150] sm:$0xff]
        %v743 = vld [vmem:[#allocation8 + $0x158] sm:$0xff]
        %v744 = vld [vmem:[#allocation8 + $0x160] sm:$0xff]
        %v745 = vld [vmem:[#allocation8 + $0x168] sm:$0xff]
        %v746 = vld [vmem:[#allocation8 + $0x170] sm:$0xff]
        %v747 = vld [vmem:[#allocation8 + $0x178] sm:$0xff]
        %v748 = vld [vmem:[#allocation8 + $0x180] sm:$0xff]
        %v749 = vld [vmem:[#allocation8 + $0x188] sm:$0xff]
        %v750 = vld [vmem:[#allocation8 + $0x190] sm:$0xff]
        %v751 = vld [vmem:[#allocation8 + $0x198] sm:$0xff]
        %v752 = vld [vmem:[#allocation8 + $0x1a0] sm:$0xff]
        %v753 = vld [vmem:[#allocation8 + $0x1a8] sm:$0xff]
        %v754 = vld [vmem:[#allocation8 + $0x1b0] sm:$0xff]
        %v755 = vld [vmem:[#allocation8 + $0x1b8] sm:$0xff]
        %v756 = vld [vmem:[#allocation8 + $0x1c0] sm:$0xff]
        %v757 = vld [vmem:[#allocation8 + $0x1c8] sm:$0xff]
        %v758 = vld [vmem:[#allocation8 + $0x1d0] sm:$0xff]
        %v759 = vld [vmem:[#allocation8 + $0x1d8] sm:$0xff]
        %v760 = vld [vmem:[#allocation8 + $0x1e0] sm:$0xff]
        %v761 = vld [vmem:[#allocation8 + $0x1e8] sm:$0xff]
        %v762 = vld [vmem:[#allocation8 + $0x1f0] sm:$0xff]
        %v763 = vld [vmem:[#allocation8 + $0x1f8] sm:$0xff]
        %v764 = vld [vmem:[%s7] sm:$0xf]
        %v766 = vlaneseq
        %v767 = vshrl.u32 %v766, 7
        %v768 = vsub.s32 0, %v767
        %v769 = vrot.slane %v764, %v768
        %v770 = vlaneseq
        %v771 = vshrl.u32 %v770, 7
        %v772 = vsub.s32 1, %v771
        %v773 = vrot.slane %v764, %v772
        %v774 = vlaneseq
        %v775 = vshrl.u32 %v774, 7
        %v776 = vsub.s32 2, %v775
        %v777 = vrot.slane %v764, %v776
        %v778 = vlaneseq
        %v779 = vshrl.u32 %v778, 7
        %v780 = vsub.s32 3, %v779
        %v781 = vrot.slane %v764, %v780
        %v790 = vunpack.c.l.b16 %v451
        %v791 = vunpack.c.h.b16 %v451
        %v792 = vunpack.c.l.b16 %v452
        %v793 = vunpack.c.h.b16 %v452
        %v794 = vunpack.c.l.b16 %v453
        %v795 = vunpack.c.h.b16 %v453
        %v796 = vunpack.c.l.b16 %v454
        %v797 = vunpack.c.h.b16 %v454
        %v798 = vpack.c.b16 %v792, %v790
        %v799 = vpack.c.b16 %v793, %v791
        %v800 = vpack.c.b16 %v796, %v794
        %v801 = vpack.c.b16 %v797, %v795
        %v870 = vunpack.c.l.b16 %v700
        %v871 = vunpack.c.h.b16 %v700
        %v872 = vunpack.c.l.b16 %v701
        %v873 = vunpack.c.h.b16 %v701
        %v874 = vunpack.c.l.b16 %v702
        %v875 = vunpack.c.h.b16 %v702
        %v876 = vunpack.c.l.b16 %v703
        %v877 = vunpack.c.h.b16 %v703
        %v878 = vunpack.c.l.b16 %v704
        %v879 = vunpack.c.h.b16 %v704
        %v880 = vunpack.c.l.b16 %v705
        %v881 = vunpack.c.h.b16 %v705
        %v882 = vunpack.c.l.b16 %v706
        %v883 = vunpack.c.h.b16 %v706
        %v884 = vunpack.c.l.b16 %v707
        %v885 = vunpack.c.h.b16 %v707
        %v886 = vunpack.c.l.b16 %v708
        %v887 = vunpack.c.h.b16 %v708
        %v888 = vunpack.c.l.b16 %v709
        %v889 = vunpack.c.h.b16 %v709
        %v890 = vunpack.c.l.b16 %v710
        %v891 = vunpack.c.h.b16 %v710
        %v892 = vunpack.c.l.b16 %v711
        %v893 = vunpack.c.h.b16 %v711
        %v894 = vunpack.c.l.b16 %v712
        %v895 = vunpack.c.h.b16 %v712
        %v896 = vunpack.c.l.b16 %v713
        %v897 = vunpack.c.h.b16 %v713
        %v898 = vunpack.c.l.b16 %v714
        %v899 = vunpack.c.h.b16 %v714
        %v900 = vunpack.c.l.b16 %v715
        %v901 = vunpack.c.h.b16 %v715
        %v902 = vunpack.c.l.b16 %v716
        %v903 = vunpack.c.h.b16 %v716
        %v904 = vunpack.c.l.b16 %v717
        %v905 = vunpack.c.h.b16 %v717
        %v906 = vunpack.c.l.b16 %v718
        %v907 = vunpack.c.h.b16 %v718
        %v908 = vunpack.c.l.b16 %v719
        %v909 = vunpack.c.h.b16 %v719
        %v910 = vunpack.c.l.b16 %v720
        %v911 = vunpack.c.h.b16 %v720
        %v912 = vunpack.c.l.b16 %v721
        %v913 = vunpack.c.h.b16 %v721
        %v914 = vunpack.c.l.b16 %v722
        %v915 = vunpack.c.h.b16 %v722
        %v916 = vunpack.c.l.b16 %v723
        %v917 = vunpack.c.h.b16 %v723
        %v918 = vunpack.c.l.b16 %v724
        %v919 = vunpack.c.h.b16 %v724
        %v920 = vunpack.c.l.b16 %v725
        %v921 = vunpack.c.h.b16 %v725
        %v922 = vunpack.c.l.b16 %v726
        %v923 = vunpack.c.h.b16 %v726
        %v924 = vunpack.c.l.b16 %v727
        %v925 = vunpack.c.h.b16 %v727
        %v926 = vunpack.c.l.b16 %v728
        %v927 = vunpack.c.h.b16 %v728
        %v928 = vunpack.c.l.b16 %v729
        %v929 = vunpack.c.h.b16 %v729
        %v930 = vunpack.c.l.b16 %v730
        %v931 = vunpack.c.h.b16 %v730
        %v932 = vunpack.c.l.b16 %v731
        %v933 = vunpack.c.h.b16 %v731
        %v934 = vunpack.c.l.b16 %v732
        %v935 = vunpack.c.h.b16 %v732
        %v936 = vunpack.c.l.b16 %v733
        %v937 = vunpack.c.h.b16 %v733
        %v938 = vunpack.c.l.b16 %v734
        %v939 = vunpack.c.h.b16 %v734
        %v940 = vunpack.c.l.b16 %v735
        %v941 = vunpack.c.h.b16 %v735
        %v942 = vunpack.c.l.b16 %v736
        %v943 = vunpack.c.h.b16 %v736
        %v944 = vunpack.c.l.b16 %v737
        %v945 = vunpack.c.h.b16 %v737
        %v946 = vunpack.c.l.b16 %v738
        %v947 = vunpack.c.h.b16 %v738
        %v948 = vunpack.c.l.b16 %v739
        %v949 = vunpack.c.h.b16 %v739
        %v950 = vunpack.c.l.b16 %v740
        %v951 = vunpack.c.h.b16 %v740
        %v952 = vunpack.c.l.b16 %v741
        %v953 = vunpack.c.h.b16 %v741
        %v954 = vunpack.c.l.b16 %v742
        %v955 = vunpack.c.h.b16 %v742
        %v956 = vunpack.c.l.b16 %v743
        %v957 = vunpack.c.h.b16 %v743
        %v958 = vunpack.c.l.b16 %v744
        %v959 = vunpack.c.h.b16 %v744
        %v960 = vunpack.c.l.b16 %v745
        %v961 = vunpack.c.h.b16 %v745
        %v962 = vunpack.c.l.b16 %v746
        %v963 = vunpack.c.h.b16 %v746
        %v964 = vunpack.c.l.b16 %v747
        %v965 = vunpack.c.h.b16 %v747
        %v966 = vunpack.c.l.b16 %v748
        %v967 = vunpack.c.h.b16 %v748
        %v968 = vunpack.c.l.b16 %v749
        %v969 = vunpack.c.h.b16 %v749
        %v970 = vunpack.c.l.b16 %v750
        %v971 = vunpack.c.h.b16 %v750
        %v972 = vunpack.c.l.b16 %v751
        %v973 = vunpack.c.h.b16 %v751
        %v974 = vunpack.c.l.b16 %v752
        %v975 = vunpack.c.h.b16 %v752
        %v976 = vunpack.c.l.b16 %v753
        %v977 = vunpack.c.h.b16 %v753
        %v978 = vunpack.c.l.b16 %v754
        %v979 = vunpack.c.h.b16 %v754
        %v980 = vunpack.c.l.b16 %v755
        %v981 = vunpack.c.h.b16 %v755
        %v982 = vunpack.c.l.b16 %v756
        %v983 = vunpack.c.h.b16 %v756
        %v984 = vunpack.c.l.b16 %v757
        %v985 = vunpack.c.h.b16 %v757
        %v986 = vunpack.c.l.b16 %v758
        %v987 = vunpack.c.h.b16 %v758
        %v988 = vunpack.c.l.b16 %v759
        %v989 = vunpack.c.h.b16 %v759
        %v990 = vunpack.c.l.b16 %v760
        %v991 = vunpack.c.h.b16 %v760
        %v992 = vunpack.c.l.b16 %v761
        %v993 = vunpack.c.h.b16 %v761
        %v994 = vunpack.c.l.b16 %v762
        %v995 = vunpack.c.h.b16 %v762
        %v996 = vunpack.c.l.b16 %v763
        %v997 = vunpack.c.h.b16 %v763
        %v998 = vpack.c.b16 %v874, %v870
        %v999 = vpack.c.b16 %v875, %v871
        %v1000 = vpack.c.b16 %v876, %v872
        %v1001 = vpack.c.b16 %v877, %v873
        %v1002 = vpack.c.b16 %v882, %v878
        %v1003 = vpack.c.b16 %v883, %v879
        %v1004 = vpack.c.b16 %v884, %v880
        %v1005 = vpack.c.b16 %v885, %v881
        %v1006 = vpack.c.b16 %v890, %v886
        %v1007 = vpack.c.b16 %v891, %v887
        %v1008 = vpack.c.b16 %v892, %v888
        %v1009 = vpack.c.b16 %v893, %v889
        %v1010 = vpack.c.b16 %v898, %v894
        %v1011 = vpack.c.b16 %v899, %v895
        %v1012 = vpack.c.b16 %v900, %v896
        %v1013 = vpack.c.b16 %v901, %v897
        %v1014 = vpack.c.b16 %v906, %v902
        %v1015 = vpack.c.b16 %v907, %v903
        %v1016 = vpack.c.b16 %v908, %v904
        %v1017 = vpack.c.b16 %v909, %v905
        %v1018 = vpack.c.b16 %v914, %v910
        %v1019 = vpack.c.b16 %v915, %v911
        %v1020 = vpack.c.b16 %v916, %v912
        %v1021 = vpack.c.b16 %v917, %v913
        %v1022 = vpack.c.b16 %v922, %v918
        %v1023 = vpack.c.b16 %v923, %v919
        %v1024 = vpack.c.b16 %v924, %v920
        %v1025 = vpack.c.b16 %v925, %v921
        %v1026 = vpack.c.b16 %v930, %v926
        %v1027 = vpack.c.b16 %v931, %v927
        %v1028 = vpack.c.b16 %v932, %v928
        %v1029 = vpack.c.b16 %v933, %v929
        %v1030 = vpack.c.b16 %v938, %v934
        %v1031 = vpack.c.b16 %v939, %v935
        %v1032 = vpack.c.b16 %v940, %v936
        %v1033 = vpack.c.b16 %v941, %v937
        %v1034 = vpack.c.b16 %v946, %v942
        %v1035 = vpack.c.b16 %v947, %v943
        %v1036 = vpack.c.b16 %v948, %v944
        %v1037 = vpack.c.b16 %v949, %v945
        %v1038 = vpack.c.b16 %v954, %v950
        %v1039 = vpack.c.b16 %v955, %v951
        %v1040 = vpack.c.b16 %v956, %v952
        %v1041 = vpack.c.b16 %v957, %v953
        %v1042 = vpack.c.b16 %v962, %v958
        %v1043 = vpack.c.b16 %v963, %v959
        %v1044 = vpack.c.b16 %v964, %v960
        %v1045 = vpack.c.b16 %v965, %v961
        %v1046 = vpack.c.b16 %v970, %v966
        %v1047 = vpack.c.b16 %v971, %v967
        %v1048 = vpack.c.b16 %v972, %v968
        %v1049 = vpack.c.b16 %v973, %v969
        %v1050 = vpack.c.b16 %v978, %v974
        %v1051 = vpack.c.b16 %v979, %v975
        %v1052 = vpack.c.b16 %v980, %v976
        %v1053 = vpack.c.b16 %v981, %v977
        %v1054 = vpack.c.b16 %v986, %v982
        %v1055 = vpack.c.b16 %v987, %v983
        %v1056 = vpack.c.b16 %v988, %v984
        %v1057 = vpack.c.b16 %v989, %v985
        %v1058 = vpack.c.b16 %v994, %v990
        %v1059 = vpack.c.b16 %v995, %v991
        %v1060 = vpack.c.b16 %v996, %v992
        %v1061 = vpack.c.b16 %v997, %v993
        %1126 = vmatprep.subr.bf16.mxu0 %v999
        %1127 = vmatpush1.bf16.msra.mxu0 %v998
        %1128 = vmatprep.subr.bf16.mxu0 %v1003
        %1129 = vmatpush1.bf16.msra.mxu0 %v1002
        %1130 = vmatprep.subr.bf16.mxu0 %v1007
        %1131 = vmatpush1.bf16.msra.mxu0 %v1006
        %1132 = vmatprep.subr.bf16.mxu0 %v1011
        %1133 = vmatpush1.bf16.msra.mxu0 %v1010
        %1134 = vmatprep.subr.bf16.mxu0 %v1015
        %1135 = vmatpush1.bf16.msra.mxu0 %v1014
        %1136 = vmatprep.subr.bf16.mxu0 %v1019
        %1137 = vmatpush1.bf16.msra.mxu0 %v1018
        %1138 = vmatprep.subr.bf16.mxu0 %v1023
        %1139 = vmatpush1.bf16.msra.mxu0 %v1022
        %1140 = vmatprep.subr.bf16.mxu0 %v1027
        %1141 = vmatpush1.bf16.msra.mxu0 %v1026
        %1142 = vmatprep.subr.bf16.mxu0 %v1031
        %1143 = vmatpush1.bf16.msra.mxu0 %v1030
        %1144 = vmatprep.subr.bf16.mxu0 %v1035
        %1145 = vmatpush1.bf16.msra.mxu0 %v1034
        %1146 = vmatprep.subr.bf16.mxu0 %v1039
        %1147 = vmatpush1.bf16.msra.mxu0 %v1038
        %1148 = vmatprep.subr.bf16.mxu0 %v1043
        %1149 = vmatpush1.bf16.msra.mxu0 %v1042
        %1150 = vmatprep.subr.bf16.mxu0 %v1047
        %1151 = vmatpush1.bf16.msra.mxu0 %v1046
        %1152 = vmatprep.subr.bf16.mxu0 %v1051
        %1153 = vmatpush1.bf16.msra.mxu0 %v1050
        %1154 = vmatprep.subr.bf16.mxu0 %v1055
        %1155 = vmatpush1.bf16.msra.mxu0 %v1054
        %1156 = vmatprep.subr.bf16.mxu0 %v1059
        %1157 = vmatpush1.bf16.msra.mxu0 %v1058
        %1158 = vmatprep.mubr.bf16.mxu0 %v799
        %1159 = vmatmul.mubr.bf16.gmra.mrb[0].mxu0 %v798
        %v1160 = vpop.f32.mrb[0].mxu0
        %v1161 = vadd.f32 %v769, %v1160
        %v1162 = vpop.f32.mrb[0].mxu0
        %v1163 = vadd.f32 %v773, %v1162
        %v1164 = vpop.f32.mrb[0].mxu0
        %v1165 = vadd.f32 %v769, %v1164
        %v1166 = vpop.f32.mrb[0].mxu0
        %v1167 = vadd.f32 %v773, %v1166
        %1168 = vmatprep.mubr.bf16.mxu0 %v801
        %1169 = vmatmul.mubr.bf16.gmra.mrb[0].mxu0 %v800
        %v1170 = vpop.f32.mrb[0].mxu0
        %v1171 = vadd.f32 %v769, %v1170
        %v1172 = vpop.f32.mrb[0].mxu0
        %v1173 = vadd.f32 %v773, %v1172
        %v1174 = vpop.f32.mrb[0].mxu0
        %v1175 = vadd.f32 %v769, %v1174
        %v1176 = vpop.f32.mrb[0].mxu0
        %v1177 = vadd.f32 %v773, %v1176
        %1178 = vdwg.mxu0
        %1179 = vmatprep.subr.bf16.mxu0 %v1001
        %1180 = vmatpush1.bf16.msra.mxu0 %v1000
        %1181 = vmatprep.subr.bf16.mxu0 %v1005
        %1182 = vmatpush1.bf16.msra.mxu0 %v1004
        %1183 = vmatprep.subr.bf16.mxu0 %v1009
        %1184 = vmatpush1.bf16.msra.mxu0 %v1008
        %1185 = vmatprep.subr.bf16.mxu0 %v1013
        %1186 = vmatpush1.bf16.msra.mxu0 %v1012
        %1187 = vmatprep.subr.bf16.mxu0 %v1017
        %1188 = vmatpush1.bf16.msra.mxu0 %v1016
        %1189 = vmatprep.subr.bf16.mxu0 %v1021
        %1190 = vmatpush1.bf16.msra.mxu0 %v1020
        %1191 = vmatprep.subr.bf16.mxu0 %v1025
        %1192 = vmatpush1.bf16.msra.mxu0 %v1024
        %1193 = vmatprep.subr.bf16.mxu0 %v1029
        %1194 = vmatpush1.bf16.msra.mxu0 %v1028
        %1195 = vmatprep.subr.bf16.mxu0 %v1033
        %1196 = vmatpush1.bf16.msra.mxu0 %v1032
        %1197 = vmatprep.subr.bf16.mxu0 %v1037
        %1198 = vmatpush1.bf16.msra.mxu0 %v1036
        %1199 = vmatprep.subr.bf16.mxu0 %v1041
        %1200 = vmatpush1.bf16.msra.mxu0 %v1040
        %1201 = vmatprep.subr.bf16.mxu0 %v1045
        %1202 = vmatpush1.bf16.msra.mxu0 %v1044
        %1203 = vmatprep.subr.bf16.mxu0 %v1049
        %1204 = vmatpush1.bf16.msra.mxu0 %v1048
        %1205 = vmatprep.subr.bf16.mxu0 %v1053
        %1206 = vmatpush1.bf16.msra.mxu0 %v1052
        %1207 = vmatprep.subr.bf16.mxu0 %v1057
        %1208 = vmatpush1.bf16.msra.mxu0 %v1056
        %1209 = vmatprep.subr.bf16.mxu0 %v1061
        %1210 = vmatpush1.bf16.msra.mxu0 %v1060
        %1211 = vmatprep.mubr.bf16.mxu0 %v799
        %1212 = vmatmul.mubr.bf16.gmra.mrb[0].mxu0 %v798
        %v1213 = vpop.f32.mrb[0].mxu0
        %v1214 = vadd.f32 %v777, %v1213
        %v1215 = vpop.f32.mrb[0].mxu0
        %v1216 = vadd.f32 %v781, %v1215
        %v1217 = vpop.f32.mrb[0].mxu0
        %v1218 = vadd.f32 %v777, %v1217
        %v1219 = vpop.f32.mrb[0].mxu0
        %v1220 = vadd.f32 %v781, %v1219
        %1221 = vmatprep.mubr.bf16.mxu0 %v801
        %1222 = vmatmul.mubr.bf16.gmra.mrb[0].mxu0 %v800
        %v1223 = vpop.f32.mrb[0].mxu0
        %v1224 = vadd.f32 %v777, %v1223
        %v1225 = vpop.f32.mrb[0].mxu0
        %v1226 = vadd.f32 %v781, %v1225
        %v1227 = vpop.f32.mrb[0].mxu0
        %v1228 = vadd.f32 %v777, %v1227
        %v1229 = vpop.f32.mrb[0].mxu0
        %v1230 = vadd.f32 %v781, %v1229
        %1231 = vdwg.mxu0
        %v1232 = vpack.c.bf16 %v694, %v694
        %v1233 = vpack.c.bf16 %v696, %v696
        %1235 = vrot.lane.b32.xlu0 %v1232, 96
        %v1236 = vpop.permute.xlu0 %1235
        %1238 = vrot.lane.b32.xlu0 %v1232, 64
        %v1239 = vpop.permute.xlu0 %1238
        %1241 = vrot.lane.b32.xlu0 %v1232, 32
        %v1242 = vpop.permute.xlu0 %1241
        %1245 = vrot.lane.b32.xlu0 %v1233, 96
        %v1246 = vpop.permute.xlu0 %1245
        %1248 = vrot.lane.b32.xlu0 %v1233, 64
        %v1249 = vpop.permute.xlu0 %1248
        %1251 = vrot.lane.b32.xlu0 %v1233, 32
        %v1252 = vpop.permute.xlu0 %1251
        %v1254 = vcombine.low %v1232, %v1233
        %v1256 = vunpack.c.l.s4 1983009808
        %v1257 = vunpack.c.0.s8 %v1256
        %v1258 = vlaneseq
        %v1259 = vshrl.u32 %v1258, 7
        %v1260 = vsub.s32 %v1257, %v1259
        %v1261 = vrot.slane %v1254, %v1260
        %v1262 = vcombine.low %v1239, %v1249
        %v1264 = vunpack.c.l.s4 1983009808
        %v1265 = vunpack.c.0.s8 %v1264
        %v1266 = vlaneseq
        %v1267 = vshrl.u32 %v1266, 7
        %v1268 = vsub.s32 %v1265, %v1267
        %v1269 = vrot.slane %v1262, %v1268
        %v1270 = vcombine.low %v1261, %v1269
        %v1271 = vcombine.high %v1261, %v1269
        %v1273 = vunpack.c.l.s4 1934713408
        %v1274 = vunpack.c.0.s8 %v1273
        %v1275 = vlaneseq
        %v1276 = vshrl.u32 %v1275, 7
        %v1277 = vsub.s32 %v1274, %v1276
        %v1278 = vrot.slane %v1270, %v1277
        %v1280 = vunpack.c.l.s4 1934713408
        %v1281 = vunpack.c.0.s8 %v1280
        %v1282 = vlaneseq
        %v1283 = vshrl.u32 %v1282, 7
        %v1284 = vsub.s32 %v1281, %v1283
        %v1285 = vrot.slane %v1271, %v1284
        %v1286 = vcombine.high %v1278, 0
        %v1287 = vcombine.high %v1285, 0
        %v1288 = vcombine.low %v1236, %v1246
        %v1290 = vunpack.c.l.s4 1983009808
        %v1291 = vunpack.c.0.s8 %v1290
        %v1292 = vlaneseq
        %v1293 = vshrl.u32 %v1292, 7
        %v1294 = vsub.s32 %v1291, %v1293
        %v1295 = vrot.slane %v1288, %v1294
        %v1296 = vcombine.low %v1242, %v1252
        %v1298 = vunpack.c.l.s4 1983009808
        %v1299 = vunpack.c.0.s8 %v1298
        %v1300 = vlaneseq
        %v1301 = vshrl.u32 %v1300, 7
        %v1302 = vsub.s32 %v1299, %v1301
        %v1303 = vrot.slane %v1296, %v1302
        %v1304 = vcombine.low %v1295, %v1303
        %v1305 = vcombine.high %v1295, %v1303
        %v1307 = vunpack.c.l.s4 1934713408
        %v1308 = vunpack.c.0.s8 %v1307
        %v1309 = vlaneseq
        %v1310 = vshrl.u32 %v1309, 7
        %v1311 = vsub.s32 %v1308, %v1310
        %v1312 = vrot.slane %v1304, %v1311
        %v1314 = vunpack.c.l.s4 1934713408
        %v1315 = vunpack.c.0.s8 %v1314
        %v1316 = vlaneseq
        %v1317 = vshrl.u32 %v1316, 7
        %v1318 = vsub.s32 %v1315, %v1317
        %v1319 = vrot.slane %v1305, %v1318
        %v1320 = vcombine.high %v1312, 0
        %v1321 = vcombine.high %v1319, 0
        %v1324 = vpack.i.b16 %v1312, %v1278
        %v1326 = vshrl.u32 %v1278, 16
        %v1327 = vshrl.u32 %v1312, 16
        %v1328 = vpack.i.b16 %v1327, %v1326
        %v1332 = vpack.i.b16 %v1320, %v1286
        %v1334 = vshrl.u32 %v1286, 16
        %v1335 = vshrl.u32 %v1320, 16
        %v1336 = vpack.i.b16 %v1335, %v1334
        %v1340 = vpack.i.b16 %v1319, %v1285
        %v1342 = vshrl.u32 %v1285, 16
        %v1343 = vshrl.u32 %v1319, 16
        %v1344 = vpack.i.b16 %v1343, %v1342
        %v1348 = vpack.i.b16 %v1321, %v1287
        %v1350 = vshrl.u32 %v1287, 16
        %v1351 = vshrl.u32 %v1321, 16
        %v1352 = vpack.i.b16 %v1351, %v1350
        %v1354 = vcombine.low %v1324, %v1340
        %v1356 = vunpack.c.l.s4 1983009808
        %v1357 = vunpack.c.0.s8 %v1356
        %v1358 = vlaneseq
        %v1359 = vshrl.u32 %v1358, 7
        %v1360 = vsub.s32 %v1357, %v1359
        %v1361 = vrot.slane %v1354, %v1360
        %v1362 = vcombine.low %v1332, %v1348
        %v1364 = vunpack.c.l.s4 1983009808
        %v1365 = vunpack.c.0.s8 %v1364
        %v1366 = vlaneseq
        %v1367 = vshrl.u32 %v1366, 7
        %v1368 = vsub.s32 %v1365, %v1367
        %v1369 = vrot.slane %v1362, %v1368
        %v1370 = vcombine.low %v1361, %v1369
        %v1371 = vcombine.high %v1361, %v1369
        %v1373 = vunpack.c.l.s4 1934713408
        %v1374 = vunpack.c.0.s8 %v1373
        %v1375 = vlaneseq
        %v1376 = vshrl.u32 %v1375, 7
        %v1377 = vsub.s32 %v1374, %v1376
        %v1378 = vrot.slane %v1370, %v1377
        %v1380 = vunpack.c.l.s4 1934713408
        %v1381 = vunpack.c.0.s8 %v1380
        %v1382 = vlaneseq
        %v1383 = vshrl.u32 %v1382, 7
        %v1384 = vsub.s32 %v1381, %v1383
        %v1385 = vrot.slane %v1371, %v1384
        %v1386 = vcombine.high %v1378, 0
        %v1387 = vcombine.high %v1385, 0
        %v1388 = vcombine.low %v1328, %v1344
        %v1390 = vunpack.c.l.s4 1983009808
        %v1391 = vunpack.c.0.s8 %v1390
        %v1392 = vlaneseq
        %v1393 = vshrl.u32 %v1392, 7
        %v1394 = vsub.s32 %v1391, %v1393
        %v1395 = vrot.slane %v1388, %v1394
        %v1396 = vcombine.low %v1336, %v1352
        %v1398 = vunpack.c.l.s4 1983009808
        %v1399 = vunpack.c.0.s8 %v1398
        %v1400 = vlaneseq
        %v1401 = vshrl.u32 %v1400, 7
        %v1402 = vsub.s32 %v1399, %v1401
        %v1403 = vrot.slane %v1396, %v1402
        %v1404 = vcombine.low %v1395, %v1403
        %v1405 = vcombine.high %v1395, %v1403
        %v1407 = vunpack.c.l.s4 1934713408
        %v1408 = vunpack.c.0.s8 %v1407
        %v1409 = vlaneseq
        %v1410 = vshrl.u32 %v1409, 7
        %v1411 = vsub.s32 %v1408, %v1410
        %v1412 = vrot.slane %v1404, %v1411
        %v1414 = vunpack.c.l.s4 1934713408
        %v1415 = vunpack.c.0.s8 %v1414
        %v1416 = vlaneseq
        %v1417 = vshrl.u32 %v1416, 7
        %v1418 = vsub.s32 %v1415, %v1417
        %v1419 = vrot.slane %v1405, %v1418
        %v1420 = vcombine.high %v1412, 0
        %v1421 = vcombine.high %v1419, 0
        %v1424 = vpack.i.b16 %v1412, %v1378
        %v1425 = vshrl.u32 %v1378, 16
        %v1426 = vshrl.u32 %v1412, 16
        %v1427 = vpack.i.b16 %v1426, %v1425
        %v1430 = vpack.i.b16 %v1420, %v1386
        %v1431 = vshrl.u32 %v1386, 16
        %v1432 = vshrl.u32 %v1420, 16
        %v1433 = vpack.i.b16 %v1432, %v1431
        %v1436 = vpack.i.b16 %v1419, %v1385
        %v1437 = vshrl.u32 %v1385, 16
        %v1438 = vshrl.u32 %v1419, 16
        %v1439 = vpack.i.b16 %v1438, %v1437
        %v1442 = vpack.i.b16 %v1421, %v1387
        %v1443 = vshrl.u32 %v1387, 16
        %v1444 = vshrl.u32 %v1421, 16
        %v1445 = vpack.i.b16 %v1444, %v1443
        %v1446 = vpack.c.bf16 %v1165, %v1161
        %v1447 = vpack.c.bf16 %v1167, %v1163
        %v1448 = vpack.c.bf16 %v1175, %v1171
        %v1449 = vpack.c.bf16 %v1177, %v1173
        %1452 = vrot.lane.b32.xlu0 %v1446, 96
        %v1453 = vpop.permute.xlu0 %1452
        %1454 = vrot.lane.b32.xlu0 %v1448, 96
        %v1455 = vpop.permute.xlu0 %1454
        %1456 = vrot.lane.b32.xlu0 %v1446, 64
        %v1457 = vpop.permute.xlu0 %1456
        %1458 = vrot.lane.b32.xlu0 %v1448, 64
        %v1459 = vpop.permute.xlu0 %1458
        %1460 = vrot.lane.b32.xlu0 %v1446, 32
        %v1461 = vpop.permute.xlu0 %1460
        %1462 = vrot.lane.b32.xlu0 %v1448, 32
        %v1463 = vpop.permute.xlu0 %1462
        %1466 = vrot.lane.b32.xlu0 %v1447, 96
        %v1467 = vpop.permute.xlu0 %1466
        %1468 = vrot.lane.b32.xlu0 %v1449, 96
        %v1469 = vpop.permute.xlu0 %1468
        %1470 = vrot.lane.b32.xlu0 %v1447, 64
        %v1471 = vpop.permute.xlu0 %1470
        %1472 = vrot.lane.b32.xlu0 %v1449, 64
        %v1473 = vpop.permute.xlu0 %1472
        %1474 = vrot.lane.b32.xlu0 %v1447, 32
        %v1475 = vpop.permute.xlu0 %1474
        %1476 = vrot.lane.b32.xlu0 %v1449, 32
        %v1477 = vpop.permute.xlu0 %1476
        %v1480 = vpack.i.b16 %v1453, %v1446
        %v1482 = vshrl.u32 %v1446, 16
        %v1483 = vshrl.u32 %v1453, 16
        %v1484 = vpack.i.b16 %v1483, %v1482
        %v1488 = vpack.i.b16 %v1461, %v1457
        %v1490 = vshrl.u32 %v1457, 16
        %v1491 = vshrl.u32 %v1461, 16
        %v1492 = vpack.i.b16 %v1491, %v1490
        %v1496 = vpack.i.b16 %v1467, %v1447
        %v1498 = vshrl.u32 %v1447, 16
        %v1499 = vshrl.u32 %v1467, 16
        %v1500 = vpack.i.b16 %v1499, %v1498
        %v1504 = vpack.i.b16 %v1475, %v1471
        %v1506 = vshrl.u32 %v1471, 16
        %v1507 = vshrl.u32 %v1475, 16
        %v1508 = vpack.i.b16 %v1507, %v1506
        %v1512 = vpack.i.b16 %v1455, %v1448
        %v1514 = vshrl.u32 %v1448, 16
        %v1515 = vshrl.u32 %v1455, 16
        %v1516 = vpack.i.b16 %v1515, %v1514
        %v1520 = vpack.i.b16 %v1463, %v1459
        %v1522 = vshrl.u32 %v1459, 16
        %v1523 = vshrl.u32 %v1463, 16
        %v1524 = vpack.i.b16 %v1523, %v1522
        %v1528 = vpack.i.b16 %v1469, %v1449
        %v1530 = vshrl.u32 %v1449, 16
        %v1531 = vshrl.u32 %v1469, 16
        %v1532 = vpack.i.b16 %v1531, %v1530
        %v1536 = vpack.i.b16 %v1477, %v1473
        %v1538 = vshrl.u32 %v1473, 16
        %v1539 = vshrl.u32 %v1477, 16
        %v1540 = vpack.i.b16 %v1539, %v1538
        %v1542 = vcombine.low %v1480, %v1496
        %v1543 = vcombine.high %v1480, %v1496
        %v1545 = vunpack.c.l.s4 1983009808
        %v1546 = vunpack.c.0.s8 %v1545
        %v1547 = vlaneseq
        %v1548 = vshrl.u32 %v1547, 7
        %v1549 = vsub.s32 %v1546, %v1548
        %v1550 = vrot.slane %v1542, %v1549
        %v1552 = vunpack.c.l.s4 1983009808
        %v1553 = vunpack.c.0.s8 %v1552
        %v1554 = vlaneseq
        %v1555 = vshrl.u32 %v1554, 7
        %v1556 = vsub.s32 %v1553, %v1555
        %v1557 = vrot.slane %v1543, %v1556
        %v1558 = vcombine.low %v1488, %v1504
        %v1559 = vcombine.high %v1488, %v1504
        %v1561 = vunpack.c.l.s4 1983009808
        %v1562 = vunpack.c.0.s8 %v1561
        %v1563 = vlaneseq
        %v1564 = vshrl.u32 %v1563, 7
        %v1565 = vsub.s32 %v1562, %v1564
        %v1566 = vrot.slane %v1558, %v1565
        %v1568 = vunpack.c.l.s4 1983009808
        %v1569 = vunpack.c.0.s8 %v1568
        %v1570 = vlaneseq
        %v1571 = vshrl.u32 %v1570, 7
        %v1572 = vsub.s32 %v1569, %v1571
        %v1573 = vrot.slane %v1559, %v1572
        %v1574 = vcombine.low %v1550, %v1566
        %v1575 = vcombine.high %v1550, %v1566
        %v1577 = vunpack.c.l.s4 1934713408
        %v1578 = vunpack.c.0.s8 %v1577
        %v1579 = vlaneseq
        %v1580 = vshrl.u32 %v1579, 7
        %v1581 = vsub.s32 %v1578, %v1580
        %v1582 = vrot.slane %v1574, %v1581
        %v1584 = vunpack.c.l.s4 1934713408
        %v1585 = vunpack.c.0.s8 %v1584
        %v1586 = vlaneseq
        %v1587 = vshrl.u32 %v1586, 7
        %v1588 = vsub.s32 %v1585, %v1587
        %v1589 = vrot.slane %v1575, %v1588
        %v1590 = vcombine.low %v1557, %v1573
        %v1591 = vcombine.high %v1557, %v1573
        %v1593 = vunpack.c.l.s4 1934713408
        %v1594 = vunpack.c.0.s8 %v1593
        %v1595 = vlaneseq
        %v1596 = vshrl.u32 %v1595, 7
        %v1597 = vsub.s32 %v1594, %v1596
        %v1598 = vrot.slane %v1590, %v1597
        %v1600 = vunpack.c.l.s4 1934713408
        %v1601 = vunpack.c.0.s8 %v1600
        %v1602 = vlaneseq
        %v1603 = vshrl.u32 %v1602, 7
        %v1604 = vsub.s32 %v1601, %v1603
        %v1605 = vrot.slane %v1591, %v1604
        %v1606 = vcombine.high %v1582, 0
        %v1607 = vcombine.high %v1589, 0
        %v1608 = vcombine.high %v1598, 0
        %v1609 = vcombine.high %v1605, 0
        %v1610 = vcombine.low %v1484, %v1500
        %v1611 = vcombine.high %v1484, %v1500
        %v1613 = vunpack.c.l.s4 1983009808
        %v1614 = vunpack.c.0.s8 %v1613
        %v1615 = vlaneseq
        %v1616 = vshrl.u32 %v1615, 7
        %v1617 = vsub.s32 %v1614, %v1616
        %v1618 = vrot.slane %v1610, %v1617
        %v1620 = vunpack.c.l.s4 1983009808
        %v1621 = vunpack.c.0.s8 %v1620
        %v1622 = vlaneseq
        %v1623 = vshrl.u32 %v1622, 7
        %v1624 = vsub.s32 %v1621, %v1623
        %v1625 = vrot.slane %v1611, %v1624
        %v1626 = vcombine.low %v1492, %v1508
        %v1627 = vcombine.high %v1492, %v1508
        %v1629 = vunpack.c.l.s4 1983009808
        %v1630 = vunpack.c.0.s8 %v1629
        %v1631 = vlaneseq
        %v1632 = vshrl.u32 %v1631, 7
        %v1633 = vsub.s32 %v1630, %v1632
        %v1634 = vrot.slane %v1626, %v1633
        %v1636 = vunpack.c.l.s4 1983009808
        %v1637 = vunpack.c.0.s8 %v1636
        %v1638 = vlaneseq
        %v1639 = vshrl.u32 %v1638, 7
        %v1640 = vsub.s32 %v1637, %v1639
        %v1641 = vrot.slane %v1627, %v1640
        %v1642 = vcombine.low %v1618, %v1634
        %v1643 = vcombine.high %v1618, %v1634
        %v1645 = vunpack.c.l.s4 1934713408
        %v1646 = vunpack.c.0.s8 %v1645
        %v1647 = vlaneseq
        %v1648 = vshrl.u32 %v1647, 7
        %v1649 = vsub.s32 %v1646, %v1648
        %v1650 = vrot.slane %v1642, %v1649
        %v1652 = vunpack.c.l.s4 1934713408
        %v1653 = vunpack.c.0.s8 %v1652
        %v1654 = vlaneseq
        %v1655 = vshrl.u32 %v1654, 7
        %v1656 = vsub.s32 %v1653, %v1655
        %v1657 = vrot.slane %v1643, %v1656
        %v1658 = vcombine.low %v1625, %v1641
        %v1659 = vcombine.high %v1625, %v1641
        %v1661 = vunpack.c.l.s4 1934713408
        %v1662 = vunpack.c.0.s8 %v1661
        %v1663 = vlaneseq
        %v1664 = vshrl.u32 %v1663, 7
        %v1665 = vsub.s32 %v1662, %v1664
        %v1666 = vrot.slane %v1658, %v1665
        %v1668 = vunpack.c.l.s4 1934713408
        %v1669 = vunpack.c.0.s8 %v1668
        %v1670 = vlaneseq
        %v1671 = vshrl.u32 %v1670, 7
        %v1672 = vsub.s32 %v1669, %v1671
        %v1673 = vrot.slane %v1659, %v1672
        %v1674 = vcombine.high %v1650, 0
        %v1675 = vcombine.high %v1657, 0
        %v1676 = vcombine.high %v1666, 0
        %v1677 = vcombine.high %v1673, 0
        %v1678 = vcombine.low %v1512, %v1528
        %v1679 = vcombine.high %v1512, %v1528
        %v1681 = vunpack.c.l.s4 1983009808
        %v1682 = vunpack.c.0.s8 %v1681
        %v1683 = vlaneseq
        %v1684 = vshrl.u32 %v1683, 7
        %v1685 = vsub.s32 %v1682, %v1684
        %v1686 = vrot.slane %v1678, %v1685
        %v1688 = vunpack.c.l.s4 1983009808
        %v1689 = vunpack.c.0.s8 %v1688
        %v1690 = vlaneseq
        %v1691 = vshrl.u32 %v1690, 7
        %v1692 = vsub.s32 %v1689, %v1691
        %v1693 = vrot.slane %v1679, %v1692
        %v1694 = vcombine.low %v1520, %v1536
        %v1695 = vcombine.high %v1520, %v1536
        %v1697 = vunpack.c.l.s4 1983009808
        %v1698 = vunpack.c.0.s8 %v1697
        %v1699 = vlaneseq
        %v1700 = vshrl.u32 %v1699, 7
        %v1701 = vsub.s32 %v1698, %v1700
        %v1702 = vrot.slane %v1694, %v1701
        %v1704 = vunpack.c.l.s4 1983009808
        %v1705 = vunpack.c.0.s8 %v1704
        %v1706 = vlaneseq
        %v1707 = vshrl.u32 %v1706, 7
        %v1708 = vsub.s32 %v1705, %v1707
        %v1709 = vrot.slane %v1695, %v1708
        %v1710 = vcombine.low %v1686, %v1702
        %v1711 = vcombine.high %v1686, %v1702
        %v1713 = vunpack.c.l.s4 1934713408
        %v1714 = vunpack.c.0.s8 %v1713
        %v1715 = vlaneseq
        %v1716 = vshrl.u32 %v1715, 7
        %v1717 = vsub.s32 %v1714, %v1716
        %v1718 = vrot.slane %v1710, %v1717
        %v1720 = vunpack.c.l.s4 1934713408
        %v1721 = vunpack.c.0.s8 %v1720
        %v1722 = vlaneseq
        %v1723 = vshrl.u32 %v1722, 7
        %v1724 = vsub.s32 %v1721, %v1723
        %v1725 = vrot.slane %v1711, %v1724
        %v1726 = vcombine.low %v1693, %v1709
        %v1727 = vcombine.high %v1693, %v1709
        %v1729 = vunpack.c.l.s4 1934713408
        %v1730 = vunpack.c.0.s8 %v1729
        %v1731 = vlaneseq
        %v1732 = vshrl.u32 %v1731, 7
        %v1733 = vsub.s32 %v1730, %v1732
        %v1734 = vrot.slane %v1726, %v1733
        %v1736 = vunpack.c.l.s4 1934713408
        %v1737 = vunpack.c.0.s8 %v1736
        %v1738 = vlaneseq
        %v1739 = vshrl.u32 %v1738, 7
        %v1740 = vsub.s32 %v1737, %v1739
        %v1741 = vrot.slane %v1727, %v1740
        %v1742 = vcombine.high %v1718, 0
        %v1743 = vcombine.high %v1725, 0
        %v1744 = vcombine.high %v1734, 0
        %v1745 = vcombine.high %v1741, 0
        %v1746 = vcombine.low %v1516, %v1532
        %v1747 = vcombine.high %v1516, %v1532
        %v1749 = vunpack.c.l.s4 1983009808
        %v1750 = vunpack.c.0.s8 %v1749
        %v1751 = vlaneseq
        %v1752 = vshrl.u32 %v1751, 7
        %v1753 = vsub.s32 %v1750, %v1752
        %v1754 = vrot.slane %v1746, %v1753
        %v1756 = vunpack.c.l.s4 1983009808
        %v1757 = vunpack.c.0.s8 %v1756
        %v1758 = vlaneseq
        %v1759 = vshrl.u32 %v1758, 7
        %v1760 = vsub.s32 %v1757, %v1759
        %v1761 = vrot.slane %v1747, %v1760
        %v1762 = vcombine.low %v1524, %v1540
        %v1763 = vcombine.high %v1524, %v1540
        %v1765 = vunpack.c.l.s4 1983009808
        %v1766 = vunpack.c.0.s8 %v1765
        %v1767 = vlaneseq
        %v1768 = vshrl.u32 %v1767, 7
        %v1769 = vsub.s32 %v1766, %v1768
        %v1770 = vrot.slane %v1762, %v1769
        %v1772 = vunpack.c.l.s4 1983009808
        %v1773 = vunpack.c.0.s8 %v1772
        %v1774 = vlaneseq
        %v1775 = vshrl.u32 %v1774, 7
        %v1776 = vsub.s32 %v1773, %v1775
        %v1777 = vrot.slane %v1763, %v1776
        %v1778 = vcombine.low %v1754, %v1770
        %v1779 = vcombine.high %v1754, %v1770
        %v1781 = vunpack.c.l.s4 1934713408
        %v1782 = vunpack.c.0.s8 %v1781
        %v1783 = vlaneseq
        %v1784 = vshrl.u32 %v1783, 7
        %v1785 = vsub.s32 %v1782, %v1784
        %v1786 = vrot.slane %v1778, %v1785
        %v1788 = vunpack.c.l.s4 1934713408
        %v1789 = vunpack.c.0.s8 %v1788
        %v1790 = vlaneseq
        %v1791 = vshrl.u32 %v1790, 7
        %v1792 = vsub.s32 %v1789, %v1791
        %v1793 = vrot.slane %v1779, %v1792
        %v1794 = vcombine.low %v1761, %v1777
        %v1795 = vcombine.high %v1761, %v1777
        %v1797 = vunpack.c.l.s4 1934713408
        %v1798 = vunpack.c.0.s8 %v1797
        %v1799 = vlaneseq
        %v1800 = vshrl.u32 %v1799, 7
        %v1801 = vsub.s32 %v1798, %v1800
        %v1802 = vrot.slane %v1794, %v1801
        %v1804 = vunpack.c.l.s4 1934713408
        %v1805 = vunpack.c.0.s8 %v1804
        %v1806 = vlaneseq
        %v1807 = vshrl.u32 %v1806, 7
        %v1808 = vsub.s32 %v1805, %v1807
        %v1809 = vrot.slane %v1795, %v1808
        %v1810 = vcombine.high %v1786, 0
        %v1811 = vcombine.high %v1793, 0
        %v1812 = vcombine.high %v1802, 0
        %v1813 = vcombine.high %v1809, 0
        %v1814 = vcombine.low %v1582, %v1589
        %v1816 = vunpack.c.l.s4 1983009808
        %v1817 = vunpack.c.0.s8 %v1816
        %v1818 = vlaneseq
        %v1819 = vshrl.u32 %v1818, 7
        %v1820 = vsub.s32 %v1817, %v1819
        %v1821 = vrot.slane %v1814, %v1820
        %v1822 = vcombine.low %v1606, %v1607
        %v1824 = vunpack.c.l.s4 1983009808
        %v1825 = vunpack.c.0.s8 %v1824
        %v1826 = vlaneseq
        %v1827 = vshrl.u32 %v1826, 7
        %v1828 = vsub.s32 %v1825, %v1827
        %v1829 = vrot.slane %v1822, %v1828
        %v1830 = vcombine.low %v1598, %v1605
        %v1832 = vunpack.c.l.s4 1983009808
        %v1833 = vunpack.c.0.s8 %v1832
        %v1834 = vlaneseq
        %v1835 = vshrl.u32 %v1834, 7
        %v1836 = vsub.s32 %v1833, %v1835
        %v1837 = vrot.slane %v1830, %v1836
        %v1838 = vcombine.low %v1608, %v1609
        %v1840 = vunpack.c.l.s4 1983009808
        %v1841 = vunpack.c.0.s8 %v1840
        %v1842 = vlaneseq
        %v1843 = vshrl.u32 %v1842, 7
        %v1844 = vsub.s32 %v1841, %v1843
        %v1845 = vrot.slane %v1838, %v1844
        %v1846 = vcombine.low %v1821, %v1829
        %v1847 = vcombine.high %v1821, %v1829
        %v1849 = vunpack.c.l.s4 1934713408
        %v1850 = vunpack.c.0.s8 %v1849
        %v1851 = vlaneseq
        %v1852 = vshrl.u32 %v1851, 7
        %v1853 = vsub.s32 %v1850, %v1852
        %v1854 = vrot.slane %v1846, %v1853
        %v1856 = vunpack.c.l.s4 1934713408
        %v1857 = vunpack.c.0.s8 %v1856
        %v1858 = vlaneseq
        %v1859 = vshrl.u32 %v1858, 7
        %v1860 = vsub.s32 %v1857, %v1859
        %v1861 = vrot.slane %v1847, %v1860
        %v1862 = vcombine.low %v1837, %v1845
        %v1863 = vcombine.high %v1837, %v1845
        %v1865 = vunpack.c.l.s4 1934713408
        %v1866 = vunpack.c.0.s8 %v1865
        %v1867 = vlaneseq
        %v1868 = vshrl.u32 %v1867, 7
        %v1869 = vsub.s32 %v1866, %v1868
        %v1870 = vrot.slane %v1862, %v1869
        %v1872 = vunpack.c.l.s4 1934713408
        %v1873 = vunpack.c.0.s8 %v1872
        %v1874 = vlaneseq
        %v1875 = vshrl.u32 %v1874, 7
        %v1876 = vsub.s32 %v1873, %v1875
        %v1877 = vrot.slane %v1863, %v1876
        %v1878 = vcombine.low %v1854, %v1870
        %v1879 = vcombine.high %v1854, %v1870
        %v1880 = vcombine.low %v1861, %v1877
        %v1881 = vcombine.high %v1861, %v1877
        %v1882 = vcombine.low %v1650, %v1657
        %v1884 = vunpack.c.l.s4 1983009808
        %v1885 = vunpack.c.0.s8 %v1884
        %v1886 = vlaneseq
        %v1887 = vshrl.u32 %v1886, 7
        %v1888 = vsub.s32 %v1885, %v1887
        %v1889 = vrot.slane %v1882, %v1888
        %v1890 = vcombine.low %v1674, %v1675
        %v1892 = vunpack.c.l.s4 1983009808
        %v1893 = vunpack.c.0.s8 %v1892
        %v1894 = vlaneseq
        %v1895 = vshrl.u32 %v1894, 7
        %v1896 = vsub.s32 %v1893, %v1895
        %v1897 = vrot.slane %v1890, %v1896
        %v1898 = vcombine.low %v1666, %v1673
        %v1900 = vunpack.c.l.s4 1983009808
        %v1901 = vunpack.c.0.s8 %v1900
        %v1902 = vlaneseq
        %v1903 = vshrl.u32 %v1902, 7
        %v1904 = vsub.s32 %v1901, %v1903
        %v1905 = vrot.slane %v1898, %v1904
        %v1906 = vcombine.low %v1676, %v1677
        %v1908 = vunpack.c.l.s4 1983009808
        %v1909 = vunpack.c.0.s8 %v1908
        %v1910 = vlaneseq
        %v1911 = vshrl.u32 %v1910, 7
        %v1912 = vsub.s32 %v1909, %v1911
        %v1913 = vrot.slane %v1906, %v1912
        %v1914 = vcombine.low %v1889, %v1897
        %v1915 = vcombine.high %v1889, %v1897
        %v1917 = vunpack.c.l.s4 1934713408
        %v1918 = vunpack.c.0.s8 %v1917
        %v1919 = vlaneseq
        %v1920 = vshrl.u32 %v1919, 7
        %v1921 = vsub.s32 %v1918, %v1920
        %v1922 = vrot.slane %v1914, %v1921
        %v1924 = vunpack.c.l.s4 1934713408
        %v1925 = vunpack.c.0.s8 %v1924
        %v1926 = vlaneseq
        %v1927 = vshrl.u32 %v1926, 7
        %v1928 = vsub.s32 %v1925, %v1927
        %v1929 = vrot.slane %v1915, %v1928
        %v1930 = vcombine.low %v1905, %v1913
        %v1931 = vcombine.high %v1905, %v1913
        %v1933 = vunpack.c.l.s4 1934713408
        %v1934 = vunpack.c.0.s8 %v1933
        %v1935 = vlaneseq
        %v1936 = vshrl.u32 %v1935, 7
        %v1937 = vsub.s32 %v1934, %v1936
        %v1938 = vrot.slane %v1930, %v1937
        %v1940 = vunpack.c.l.s4 1934713408
        %v1941 = vunpack.c.0.s8 %v1940
        %v1942 = vlaneseq
        %v1943 = vshrl.u32 %v1942, 7
        %v1944 = vsub.s32 %v1941, %v1943
        %v1945 = vrot.slane %v1931, %v1944
        %v1946 = vcombine.low %v1922, %v1938
        %v1947 = vcombine.high %v1922, %v1938
        %v1948 = vcombine.low %v1929, %v1945
        %v1949 = vcombine.high %v1929, %v1945
        %v1950 = vcombine.low %v1718, %v1725
        %v1952 = vunpack.c.l.s4 1983009808
        %v1953 = vunpack.c.0.s8 %v1952
        %v1954 = vlaneseq
        %v1955 = vshrl.u32 %v1954, 7
        %v1956 = vsub.s32 %v1953, %v1955
        %v1957 = vrot.slane %v1950, %v1956
        %v1958 = vcombine.low %v1742, %v1743
        %v1960 = vunpack.c.l.s4 1983009808
        %v1961 = vunpack.c.0.s8 %v1960
        %v1962 = vlaneseq
        %v1963 = vshrl.u32 %v1962, 7
        %v1964 = vsub.s32 %v1961, %v1963
        %v1965 = vrot.slane %v1958, %v1964
        %v1966 = vcombine.low %v1734, %v1741
        %v1968 = vunpack.c.l.s4 1983009808
        %v1969 = vunpack.c.0.s8 %v1968
        %v1970 = vlaneseq
        %v1971 = vshrl.u32 %v1970, 7
        %v1972 = vsub.s32 %v1969, %v1971
        %v1973 = vrot.slane %v1966, %v1972
        %v1974 = vcombine.low %v1744, %v1745
        %v1976 = vunpack.c.l.s4 1983009808
        %v1977 = vunpack.c.0.s8 %v1976
        %v1978 = vlaneseq
        %v1979 = vshrl.u32 %v1978, 7
        %v1980 = vsub.s32 %v1977, %v1979
        %v1981 = vrot.slane %v1974, %v1980
        %v1982 = vcombine.low %v1957, %v1965
        %v1983 = vcombine.high %v1957, %v1965
        %v1985 = vunpack.c.l.s4 1934713408
        %v1986 = vunpack.c.0.s8 %v1985
        %v1987 = vlaneseq
        %v1988 = vshrl.u32 %v1987, 7
        %v1989 = vsub.s32 %v1986, %v1988
        %v1990 = vrot.slane %v1982, %v1989
        %v1992 = vunpack.c.l.s4 1934713408
        %v1993 = vunpack.c.0.s8 %v1992
        %v1994 = vlaneseq
        %v1995 = vshrl.u32 %v1994, 7
        %v1996 = vsub.s32 %v1993, %v1995
        %v1997 = vrot.slane %v1983, %v1996
        %v1998 = vcombine.low %v1973, %v1981
        %v1999 = vcombine.high %v1973, %v1981
        %v2001 = vunpack.c.l.s4 1934713408
        %v2002 = vunpack.c.0.s8 %v2001
        %v2003 = vlaneseq
        %v2004 = vshrl.u32 %v2003, 7
        %v2005 = vsub.s32 %v2002, %v2004
        %v2006 = vrot.slane %v1998, %v2005
        %v2008 = vunpack.c.l.s4 1934713408
        %v2009 = vunpack.c.0.s8 %v2008
        %v2010 = vlaneseq
        %v2011 = vshrl.u32 %v2010, 7
        %v2012 = vsub.s32 %v2009, %v2011
        %v2013 = vrot.slane %v1999, %v2012
        %v2014 = vcombine.low %v1990, %v2006
        %v2015 = vcombine.high %v1990, %v2006
        %v2016 = vcombine.low %v1997, %v2013
        %v2017 = vcombine.high %v1997, %v2013
        %v2018 = vcombine.low %v1786, %v1793
        %v2020 = vunpack.c.l.s4 1983009808
        %v2021 = vunpack.c.0.s8 %v2020
        %v2022 = vlaneseq
        %v2023 = vshrl.u32 %v2022, 7
        %v2024 = vsub.s32 %v2021, %v2023
        %v2025 = vrot.slane %v2018, %v2024
        %v2026 = vcombine.low %v1810, %v1811
        %v2028 = vunpack.c.l.s4 1983009808
        %v2029 = vunpack.c.0.s8 %v2028
        %v2030 = vlaneseq
        %v2031 = vshrl.u32 %v2030, 7
        %v2032 = vsub.s32 %v2029, %v2031
        %v2033 = vrot.slane %v2026, %v2032
        %v2034 = vcombine.low %v1802, %v1809
        %v2036 = vunpack.c.l.s4 1983009808
        %v2037 = vunpack.c.0.s8 %v2036
        %v2038 = vlaneseq
        %v2039 = vshrl.u32 %v2038, 7
        %v2040 = vsub.s32 %v2037, %v2039
        %v2041 = vrot.slane %v2034, %v2040
        %v2042 = vcombine.low %v1812, %v1813
        %v2044 = vunpack.c.l.s4 1983009808
        %v2045 = vunpack.c.0.s8 %v2044
        %v2046 = vlaneseq
        %v2047 = vshrl.u32 %v2046, 7
        %v2048 = vsub.s32 %v2045, %v2047
        %v2049 = vrot.slane %v2042, %v2048
        %v2050 = vcombine.low %v2025, %v2033
        %v2051 = vcombine.high %v2025, %v2033
        %v2053 = vunpack.c.l.s4 1934713408
        %v2054 = vunpack.c.0.s8 %v2053
        %v2055 = vlaneseq
        %v2056 = vshrl.u32 %v2055, 7
        %v2057 = vsub.s32 %v2054, %v2056
        %v2058 = vrot.slane %v2050, %v2057
        %v2060 = vunpack.c.l.s4 1934713408
        %v2061 = vunpack.c.0.s8 %v2060
        %v2062 = vlaneseq
        %v2063 = vshrl.u32 %v2062, 7
        %v2064 = vsub.s32 %v2061, %v2063
        %v2065 = vrot.slane %v2051, %v2064
        %v2066 = vcombine.low %v2041, %v2049
        %v2067 = vcombine.high %v2041, %v2049
        %v2069 = vunpack.c.l.s4 1934713408
        %v2070 = vunpack.c.0.s8 %v2069
        %v2071 = vlaneseq
        %v2072 = vshrl.u32 %v2071, 7
        %v2073 = vsub.s32 %v2070, %v2072
        %v2074 = vrot.slane %v2066, %v2073
        %v2076 = vunpack.c.l.s4 1934713408
        %v2077 = vunpack.c.0.s8 %v2076
        %v2078 = vlaneseq
        %v2079 = vshrl.u32 %v2078, 7
        %v2080 = vsub.s32 %v2077, %v2079
        %v2081 = vrot.slane %v2067, %v2080
        %v2082 = vcombine.low %v2058, %v2074
        %v2083 = vcombine.high %v2058, %v2074
        %v2084 = vcombine.low %v2065, %v2081
        %v2085 = vcombine.high %v2065, %v2081
        %v2088 = vpack.i.b16 %v1946, %v1878
        %v2089 = vshrl.u32 %v1878, 16
        %v2090 = vshrl.u32 %v1946, 16
        %v2091 = vpack.i.b16 %v2090, %v2089
        %v2094 = vpack.i.b16 %v1947, %v1879
        %v2095 = vshrl.u32 %v1879, 16
        %v2096 = vshrl.u32 %v1947, 16
        %v2097 = vpack.i.b16 %v2096, %v2095
        %v2100 = vpack.i.b16 %v1948, %v1880
        %v2101 = vshrl.u32 %v1880, 16
        %v2102 = vshrl.u32 %v1948, 16
        %v2103 = vpack.i.b16 %v2102, %v2101
        %v2106 = vpack.i.b16 %v1949, %v1881
        %v2107 = vshrl.u32 %v1881, 16
        %v2108 = vshrl.u32 %v1949, 16
        %v2109 = vpack.i.b16 %v2108, %v2107
        %v2112 = vpack.i.b16 %v2082, %v2014
        %v2113 = vshrl.u32 %v2014, 16
        %v2114 = vshrl.u32 %v2082, 16
        %v2115 = vpack.i.b16 %v2114, %v2113
        %v2118 = vpack.i.b16 %v2083, %v2015
        %v2119 = vshrl.u32 %v2015, 16
        %v2120 = vshrl.u32 %v2083, 16
        %v2121 = vpack.i.b16 %v2120, %v2119
        %v2124 = vpack.i.b16 %v2084, %v2016
        %v2125 = vshrl.u32 %v2016, 16
        %v2126 = vshrl.u32 %v2084, 16
        %v2127 = vpack.i.b16 %v2126, %v2125
        %v2130 = vpack.i.b16 %v2085, %v2017
        %v2131 = vshrl.u32 %v2017, 16
        %v2132 = vshrl.u32 %v2085, 16
        %v2133 = vpack.i.b16 %v2132, %v2131
        %v2134 = vpack.c.bf16 %v1218, %v1214
        %v2135 = vpack.c.bf16 %v1220, %v1216
        %v2136 = vpack.c.bf16 %v1228, %v1224
        %v2137 = vpack.c.bf16 %v1230, %v1226
        %2140 = vrot.lane.b32.xlu0 %v2134, 96
        %v2141 = vpop.permute.xlu0 %2140
        %2142 = vrot.lane.b32.xlu0 %v2136, 96
        %v2143 = vpop.permute.xlu0 %2142
        %2144 = vrot.lane.b32.xlu0 %v2134, 64
        %v2145 = vpop.permute.xlu0 %2144
        %2146 = vrot.lane.b32.xlu0 %v2136, 64
        %v2147 = vpop.permute.xlu0 %2146
        %2148 = vrot.lane.b32.xlu0 %v2134, 32
        %v2149 = vpop.permute.xlu0 %2148
        %2150 = vrot.lane.b32.xlu0 %v2136, 32
        %v2151 = vpop.permute.xlu0 %2150
        %2154 = vrot.lane.b32.xlu0 %v2135, 96
        %v2155 = vpop.permute.xlu0 %2154
        %2156 = vrot.lane.b32.xlu0 %v2137, 96
        %v2157 = vpop.permute.xlu0 %2156
        %2158 = vrot.lane.b32.xlu0 %v2135, 64
        %v2159 = vpop.permute.xlu0 %2158
        %2160 = vrot.lane.b32.xlu0 %v2137, 64
        %v2161 = vpop.permute.xlu0 %2160
        %2162 = vrot.lane.b32.xlu0 %v2135, 32
        %v2163 = vpop.permute.xlu0 %2162
        %2164 = vrot.lane.b32.xlu0 %v2137, 32
        %v2165 = vpop.permute.xlu0 %2164
        %v2168 = vpack.i.b16 %v2141, %v2134
        %v2170 = vshrl.u32 %v2134, 16
        %v2171 = vshrl.u32 %v2141, 16
        %v2172 = vpack.i.b16 %v2171, %v2170
        %v2176 = vpack.i.b16 %v2149, %v2145
        %v2178 = vshrl.u32 %v2145, 16
        %v2179 = vshrl.u32 %v2149, 16
        %v2180 = vpack.i.b16 %v2179, %v2178
        %v2184 = vpack.i.b16 %v2155, %v2135
        %v2186 = vshrl.u32 %v2135, 16
        %v2187 = vshrl.u32 %v2155, 16
        %v2188 = vpack.i.b16 %v2187, %v2186
        %v2192 = vpack.i.b16 %v2163, %v2159
        %v2194 = vshrl.u32 %v2159, 16
        %v2195 = vshrl.u32 %v2163, 16
        %v2196 = vpack.i.b16 %v2195, %v2194
        %v2200 = vpack.i.b16 %v2143, %v2136
        %v2202 = vshrl.u32 %v2136, 16
        %v2203 = vshrl.u32 %v2143, 16
        %v2204 = vpack.i.b16 %v2203, %v2202
        %v2208 = vpack.i.b16 %v2151, %v2147
        %v2210 = vshrl.u32 %v2147, 16
        %v2211 = vshrl.u32 %v2151, 16
        %v2212 = vpack.i.b16 %v2211, %v2210
        %v2216 = vpack.i.b16 %v2157, %v2137
        %v2218 = vshrl.u32 %v2137, 16
        %v2219 = vshrl.u32 %v2157, 16
        %v2220 = vpack.i.b16 %v2219, %v2218
        %v2224 = vpack.i.b16 %v2165, %v2161
        %v2226 = vshrl.u32 %v2161, 16
        %v2227 = vshrl.u32 %v2165, 16
        %v2228 = vpack.i.b16 %v2227, %v2226
        %v2230 = vcombine.low %v2168, %v2184
        %v2231 = vcombine.high %v2168, %v2184
        %v2233 = vunpack.c.l.s4 1983009808
        %v2234 = vunpack.c.0.s8 %v2233
        %v2235 = vlaneseq
        %v2236 = vshrl.u32 %v2235, 7
        %v2237 = vsub.s32 %v2234, %v2236
        %v2238 = vrot.slane %v2230, %v2237
        %v2240 = vunpack.c.l.s4 1983009808
        %v2241 = vunpack.c.0.s8 %v2240
        %v2242 = vlaneseq
        %v2243 = vshrl.u32 %v2242, 7
        %v2244 = vsub.s32 %v2241, %v2243
        %v2245 = vrot.slane %v2231, %v2244
        %v2246 = vcombine.low %v2176, %v2192
        %v2247 = vcombine.high %v2176, %v2192
        %v2249 = vunpack.c.l.s4 1983009808
        %v2250 = vunpack.c.0.s8 %v2249
        %v2251 = vlaneseq
        %v2252 = vshrl.u32 %v2251, 7
        %v2253 = vsub.s32 %v2250, %v2252
        %v2254 = vrot.slane %v2246, %v2253
        %v2256 = vunpack.c.l.s4 1983009808
        %v2257 = vunpack.c.0.s8 %v2256
        %v2258 = vlaneseq
        %v2259 = vshrl.u32 %v2258, 7
        %v2260 = vsub.s32 %v2257, %v2259
        %v2261 = vrot.slane %v2247, %v2260
        %v2262 = vcombine.low %v2238, %v2254
        %v2263 = vcombine.high %v2238, %v2254
        %v2265 = vunpack.c.l.s4 1934713408
        %v2266 = vunpack.c.0.s8 %v2265
        %v2267 = vlaneseq
        %v2268 = vshrl.u32 %v2267, 7
        %v2269 = vsub.s32 %v2266, %v2268
        %v2270 = vrot.slane %v2262, %v2269
        %v2272 = vunpack.c.l.s4 1934713408
        %v2273 = vunpack.c.0.s8 %v2272
        %v2274 = vlaneseq
        %v2275 = vshrl.u32 %v2274, 7
        %v2276 = vsub.s32 %v2273, %v2275
        %v2277 = vrot.slane %v2263, %v2276
        %v2278 = vcombine.low %v2245, %v2261
        %v2279 = vcombine.high %v2245, %v2261
        %v2281 = vunpack.c.l.s4 1934713408
        %v2282 = vunpack.c.0.s8 %v2281
        %v2283 = vlaneseq
        %v2284 = vshrl.u32 %v2283, 7
        %v2285 = vsub.s32 %v2282, %v2284
        %v2286 = vrot.slane %v2278, %v2285
        %v2288 = vunpack.c.l.s4 1934713408
        %v2289 = vunpack.c.0.s8 %v2288
        %v2290 = vlaneseq
        %v2291 = vshrl.u32 %v2290, 7
        %v2292 = vsub.s32 %v2289, %v2291
        %v2293 = vrot.slane %v2279, %v2292
        %v2294 = vcombine.high %v2270, 0
        %v2295 = vcombine.high %v2277, 0
        %v2296 = vcombine.high %v2286, 0
        %v2297 = vcombine.high %v2293, 0
        %v2298 = vcombine.low %v2172, %v2188
        %v2299 = vcombine.high %v2172, %v2188
        %v2301 = vunpack.c.l.s4 1983009808
        %v2302 = vunpack.c.0.s8 %v2301
        %v2303 = vlaneseq
        %v2304 = vshrl.u32 %v2303, 7
        %v2305 = vsub.s32 %v2302, %v2304
        %v2306 = vrot.slane %v2298, %v2305
        %v2308 = vunpack.c.l.s4 1983009808
        %v2309 = vunpack.c.0.s8 %v2308
        %v2310 = vlaneseq
        %v2311 = vshrl.u32 %v2310, 7
        %v2312 = vsub.s32 %v2309, %v2311
        %v2313 = vrot.slane %v2299, %v2312
        %v2314 = vcombine.low %v2180, %v2196
        %v2315 = vcombine.high %v2180, %v2196
        %v2317 = vunpack.c.l.s4 1983009808
        %v2318 = vunpack.c.0.s8 %v2317
        %v2319 = vlaneseq
        %v2320 = vshrl.u32 %v2319, 7
        %v2321 = vsub.s32 %v2318, %v2320
        %v2322 = vrot.slane %v2314, %v2321
        %v2324 = vunpack.c.l.s4 1983009808
        %v2325 = vunpack.c.0.s8 %v2324
        %v2326 = vlaneseq
        %v2327 = vshrl.u32 %v2326, 7
        %v2328 = vsub.s32 %v2325, %v2327
        %v2329 = vrot.slane %v2315, %v2328
        %v2330 = vcombine.low %v2306, %v2322
        %v2331 = vcombine.high %v2306, %v2322
        %v2333 = vunpack.c.l.s4 1934713408
        %v2334 = vunpack.c.0.s8 %v2333
        %v2335 = vlaneseq
        %v2336 = vshrl.u32 %v2335, 7
        %v2337 = vsub.s32 %v2334, %v2336
        %v2338 = vrot.slane %v2330, %v2337
        %v2340 = vunpack.c.l.s4 1934713408
        %v2341 = vunpack.c.0.s8 %v2340
        %v2342 = vlaneseq
        %v2343 = vshrl.u32 %v2342, 7
        %v2344 = vsub.s32 %v2341, %v2343
        %v2345 = vrot.slane %v2331, %v2344
        %v2346 = vcombine.low %v2313, %v2329
        %v2347 = vcombine.high %v2313, %v2329
        %v2349 = vunpack.c.l.s4 1934713408
        %v2350 = vunpack.c.0.s8 %v2349
        %v2351 = vlaneseq
        %v2352 = vshrl.u32 %v2351, 7
        %v2353 = vsub.s32 %v2350, %v2352
        %v2354 = vrot.slane %v2346, %v2353
        %v2356 = vunpack.c.l.s4 1934713408
        %v2357 = vunpack.c.0.s8 %v2356
        %v2358 = vlaneseq
        %v2359 = vshrl.u32 %v2358, 7
        %v2360 = vsub.s32 %v2357, %v2359
        %v2361 = vrot.slane %v2347, %v2360
        %v2362 = vcombine.high %v2338, 0
        %v2363 = vcombine.high %v2345, 0
        %v2364 = vcombine.high %v2354, 0
        %v2365 = vcombine.high %v2361, 0
        %v2366 = vcombine.low %v2200, %v2216
        %v2367 = vcombine.high %v2200, %v2216
        %v2369 = vunpack.c.l.s4 1983009808
        %v2370 = vunpack.c.0.s8 %v2369
        %v2371 = vlaneseq
        %v2372 = vshrl.u32 %v2371, 7
        %v2373 = vsub.s32 %v2370, %v2372
        %v2374 = vrot.slane %v2366, %v2373
        %v2376 = vunpack.c.l.s4 1983009808
        %v2377 = vunpack.c.0.s8 %v2376
        %v2378 = vlaneseq
        %v2379 = vshrl.u32 %v2378, 7
        %v2380 = vsub.s32 %v2377, %v2379
        %v2381 = vrot.slane %v2367, %v2380
        %v2382 = vcombine.low %v2208, %v2224
        %v2383 = vcombine.high %v2208, %v2224
        %v2385 = vunpack.c.l.s4 1983009808
        %v2386 = vunpack.c.0.s8 %v2385
        %v2387 = vlaneseq
        %v2388 = vshrl.u32 %v2387, 7
        %v2389 = vsub.s32 %v2386, %v2388
        %v2390 = vrot.slane %v2382, %v2389
        %v2392 = vunpack.c.l.s4 1983009808
        %v2393 = vunpack.c.0.s8 %v2392
        %v2394 = vlaneseq
        %v2395 = vshrl.u32 %v2394, 7
        %v2396 = vsub.s32 %v2393, %v2395
        %v2397 = vrot.slane %v2383, %v2396
        %v2398 = vcombine.low %v2374, %v2390
        %v2399 = vcombine.high %v2374, %v2390
        %v2401 = vunpack.c.l.s4 1934713408
        %v2402 = vunpack.c.0.s8 %v2401
        %v2403 = vlaneseq
        %v2404 = vshrl.u32 %v2403, 7
        %v2405 = vsub.s32 %v2402, %v2404
        %v2406 = vrot.slane %v2398, %v2405
        %v2408 = vunpack.c.l.s4 1934713408
        %v2409 = vunpack.c.0.s8 %v2408
        %v2410 = vlaneseq
        %v2411 = vshrl.u32 %v2410, 7
        %v2412 = vsub.s32 %v2409, %v2411
        %v2413 = vrot.slane %v2399, %v2412
        %v2414 = vcombine.low %v2381, %v2397
        %v2415 = vcombine.high %v2381, %v2397
        %v2417 = vunpack.c.l.s4 1934713408
        %v2418 = vunpack.c.0.s8 %v2417
        %v2419 = vlaneseq
        %v2420 = vshrl.u32 %v2419, 7
        %v2421 = vsub.s32 %v2418, %v2420
        %v2422 = vrot.slane %v2414, %v2421
        %v2424 = vunpack.c.l.s4 1934713408
        %v2425 = vunpack.c.0.s8 %v2424
        %v2426 = vlaneseq
        %v2427 = vshrl.u32 %v2426, 7
        %v2428 = vsub.s32 %v2425, %v2427
        %v2429 = vrot.slane %v2415, %v2428
        %v2430 = vcombine.high %v2406, 0
        %v2431 = vcombine.high %v2413, 0
        %v2432 = vcombine.high %v2422, 0
        %v2433 = vcombine.high %v2429, 0
        %v2434 = vcombine.low %v2204, %v2220
        %v2435 = vcombine.high %v2204, %v2220
        %v2437 = vunpack.c.l.s4 1983009808
        %v2438 = vunpack.c.0.s8 %v2437
        %v2439 = vlaneseq
        %v2440 = vshrl.u32 %v2439, 7
        %v2441 = vsub.s32 %v2438, %v2440
        %v2442 = vrot.slane %v2434, %v2441
        %v2444 = vunpack.c.l.s4 1983009808
        %v2445 = vunpack.c.0.s8 %v2444
        %v2446 = vlaneseq
        %v2447 = vshrl.u32 %v2446, 7
        %v2448 = vsub.s32 %v2445, %v2447
        %v2449 = vrot.slane %v2435, %v2448
        %v2450 = vcombine.low %v2212, %v2228
        %v2451 = vcombine.high %v2212, %v2228
        %v2453 = vunpack.c.l.s4 1983009808
        %v2454 = vunpack.c.0.s8 %v2453
        %v2455 = vlaneseq
        %v2456 = vshrl.u32 %v2455, 7
        %v2457 = vsub.s32 %v2454, %v2456
        %v2458 = vrot.slane %v2450, %v2457
        %v2460 = vunpack.c.l.s4 1983009808
        %v2461 = vunpack.c.0.s8 %v2460
        %v2462 = vlaneseq
        %v2463 = vshrl.u32 %v2462, 7
        %v2464 = vsub.s32 %v2461, %v2463
        %v2465 = vrot.slane %v2451, %v2464
        %v2466 = vcombine.low %v2442, %v2458
        %v2467 = vcombine.high %v2442, %v2458
        %v2469 = vunpack.c.l.s4 1934713408
        %v2470 = vunpack.c.0.s8 %v2469
        %v2471 = vlaneseq
        %v2472 = vshrl.u32 %v2471, 7
        %v2473 = vsub.s32 %v2470, %v2472
        %v2474 = vrot.slane %v2466, %v2473
        %v2476 = vunpack.c.l.s4 1934713408
        %v2477 = vunpack.c.0.s8 %v2476
        %v2478 = vlaneseq
        %v2479 = vshrl.u32 %v2478, 7
        %v2480 = vsub.s32 %v2477, %v2479
        %v2481 = vrot.slane %v2467, %v2480
        %v2482 = vcombine.low %v2449, %v2465
        %v2483 = vcombine.high %v2449, %v2465
        %v2485 = vunpack.c.l.s4 1934713408
        %v2486 = vunpack.c.0.s8 %v2485
        %v2487 = vlaneseq
        %v2488 = vshrl.u32 %v2487, 7
        %v2489 = vsub.s32 %v2486, %v2488
        %v2490 = vrot.slane %v2482, %v2489
        %v2492 = vunpack.c.l.s4 1934713408
        %v2493 = vunpack.c.0.s8 %v2492
        %v2494 = vlaneseq
        %v2495 = vshrl.u32 %v2494, 7
        %v2496 = vsub.s32 %v2493, %v2495
        %v2497 = vrot.slane %v2483, %v2496
        %v2498 = vcombine.high %v2474, 0
        %v2499 = vcombine.high %v2481, 0
        %v2500 = vcombine.high %v2490, 0
        %v2501 = vcombine.high %v2497, 0
        %v2502 = vcombine.low %v2270, %v2277
        %v2504 = vunpack.c.l.s4 1983009808
        %v2505 = vunpack.c.0.s8 %v2504
        %v2506 = vlaneseq
        %v2507 = vshrl.u32 %v2506, 7
        %v2508 = vsub.s32 %v2505, %v2507
        %v2509 = vrot.slane %v2502, %v2508
        %v2510 = vcombine.low %v2294, %v2295
        %v2512 = vunpack.c.l.s4 1983009808
        %v2513 = vunpack.c.0.s8 %v2512
        %v2514 = vlaneseq
        %v2515 = vshrl.u32 %v2514, 7
        %v2516 = vsub.s32 %v2513, %v2515
        %v2517 = vrot.slane %v2510, %v2516
        %v2518 = vcombine.low %v2286, %v2293
        %v2520 = vunpack.c.l.s4 1983009808
        %v2521 = vunpack.c.0.s8 %v2520
        %v2522 = vlaneseq
        %v2523 = vshrl.u32 %v2522, 7
        %v2524 = vsub.s32 %v2521, %v2523
        %v2525 = vrot.slane %v2518, %v2524
        %v2526 = vcombine.low %v2296, %v2297
        %v2528 = vunpack.c.l.s4 1983009808
        %v2529 = vunpack.c.0.s8 %v2528
        %v2530 = vlaneseq
        %v2531 = vshrl.u32 %v2530, 7
        %v2532 = vsub.s32 %v2529, %v2531
        %v2533 = vrot.slane %v2526, %v2532
        %v2534 = vcombine.low %v2509, %v2517
        %v2535 = vcombine.high %v2509, %v2517
        %v2537 = vunpack.c.l.s4 1934713408
        %v2538 = vunpack.c.0.s8 %v2537
        %v2539 = vlaneseq
        %v2540 = vshrl.u32 %v2539, 7
        %v2541 = vsub.s32 %v2538, %v2540
        %v2542 = vrot.slane %v2534, %v2541
        %v2544 = vunpack.c.l.s4 1934713408
        %v2545 = vunpack.c.0.s8 %v2544
        %v2546 = vlaneseq
        %v2547 = vshrl.u32 %v2546, 7
        %v2548 = vsub.s32 %v2545, %v2547
        %v2549 = vrot.slane %v2535, %v2548
        %v2550 = vcombine.low %v2525, %v2533
        %v2551 = vcombine.high %v2525, %v2533
        %v2553 = vunpack.c.l.s4 1934713408
        %v2554 = vunpack.c.0.s8 %v2553
        %v2555 = vlaneseq
        %v2556 = vshrl.u32 %v2555, 7
        %v2557 = vsub.s32 %v2554, %v2556
        %v2558 = vrot.slane %v2550, %v2557
        %v2560 = vunpack.c.l.s4 1934713408
        %v2561 = vunpack.c.0.s8 %v2560
        %v2562 = vlaneseq
        %v2563 = vshrl.u32 %v2562, 7
        %v2564 = vsub.s32 %v2561, %v2563
        %v2565 = vrot.slane %v2551, %v2564
        %v2566 = vcombine.low %v2542, %v2558
        %v2567 = vcombine.high %v2542, %v2558
        %v2568 = vcombine.low %v2549, %v2565
        %v2569 = vcombine.high %v2549, %v2565
        %v2570 = vcombine.low %v2338, %v2345
        %v2572 = vunpack.c.l.s4 1983009808
        %v2573 = vunpack.c.0.s8 %v2572
        %v2574 = vlaneseq
        %v2575 = vshrl.u32 %v2574, 7
        %v2576 = vsub.s32 %v2573, %v2575
        %v2577 = vrot.slane %v2570, %v2576
        %v2578 = vcombine.low %v2362, %v2363
        %v2580 = vunpack.c.l.s4 1983009808
        %v2581 = vunpack.c.0.s8 %v2580
        %v2582 = vlaneseq
        %v2583 = vshrl.u32 %v2582, 7
        %v2584 = vsub.s32 %v2581, %v2583
        %v2585 = vrot.slane %v2578, %v2584
        %v2586 = vcombine.low %v2354, %v2361
        %v2588 = vunpack.c.l.s4 1983009808
        %v2589 = vunpack.c.0.s8 %v2588
        %v2590 = vlaneseq
        %v2591 = vshrl.u32 %v2590, 7
        %v2592 = vsub.s32 %v2589, %v2591
        %v2593 = vrot.slane %v2586, %v2592
        %v2594 = vcombine.low %v2364, %v2365
        %v2596 = vunpack.c.l.s4 1983009808
        %v2597 = vunpack.c.0.s8 %v2596
        %v2598 = vlaneseq
        %v2599 = vshrl.u32 %v2598, 7
        %v2600 = vsub.s32 %v2597, %v2599
        %v2601 = vrot.slane %v2594, %v2600
        %v2602 = vcombine.low %v2577, %v2585
        %v2603 = vcombine.high %v2577, %v2585
        %v2605 = vunpack.c.l.s4 1934713408
        %v2606 = vunpack.c.0.s8 %v2605
        %v2607 = vlaneseq
        %v2608 = vshrl.u32 %v2607, 7
        %v2609 = vsub.s32 %v2606, %v2608
        %v2610 = vrot.slane %v2602, %v2609
        %v2612 = vunpack.c.l.s4 1934713408
        %v2613 = vunpack.c.0.s8 %v2612
        %v2614 = vlaneseq
        %v2615 = vshrl.u32 %v2614, 7
        %v2616 = vsub.s32 %v2613, %v2615
        %v2617 = vrot.slane %v2603, %v2616
        %v2618 = vcombine.low %v2593, %v2601
        %v2619 = vcombine.high %v2593, %v2601
        %v2621 = vunpack.c.l.s4 1934713408
        %v2622 = vunpack.c.0.s8 %v2621
        %v2623 = vlaneseq
        %v2624 = vshrl.u32 %v2623, 7
        %v2625 = vsub.s32 %v2622, %v2624
        %v2626 = vrot.slane %v2618, %v2625
        %v2628 = vunpack.c.l.s4 1934713408
        %v2629 = vunpack.c.0.s8 %v2628
        %v2630 = vlaneseq
        %v2631 = vshrl.u32 %v2630, 7
        %v2632 = vsub.s32 %v2629, %v2631
        %v2633 = vrot.slane %v2619, %v2632
        %v2634 = vcombine.low %v2610, %v2626
        %v2635 = vcombine.high %v2610, %v2626
        %v2636 = vcombine.low %v2617, %v2633
        %v2637 = vcombine.high %v2617, %v2633
        %v2638 = vcombine.low %v2406, %v2413
        %v2640 = vunpack.c.l.s4 1983009808
        %v2641 = vunpack.c.0.s8 %v2640
        %v2642 = vlaneseq
        %v2643 = vshrl.u32 %v2642, 7
        %v2644 = vsub.s32 %v2641, %v2643
        %v2645 = vrot.slane %v2638, %v2644
        %v2646 = vcombine.low %v2430, %v2431
        %v2648 = vunpack.c.l.s4 1983009808
        %v2649 = vunpack.c.0.s8 %v2648
        %v2650 = vlaneseq
        %v2651 = vshrl.u32 %v2650, 7
        %v2652 = vsub.s32 %v2649, %v2651
        %v2653 = vrot.slane %v2646, %v2652
        %v2654 = vcombine.low %v2422, %v2429
        %v2656 = vunpack.c.l.s4 1983009808
        %v2657 = vunpack.c.0.s8 %v2656
        %v2658 = vlaneseq
        %v2659 = vshrl.u32 %v2658, 7
        %v2660 = vsub.s32 %v2657, %v2659
        %v2661 = vrot.slane %v2654, %v2660
        %v2662 = vcombine.low %v2432, %v2433
        %v2664 = vunpack.c.l.s4 1983009808
        %v2665 = vunpack.c.0.s8 %v2664
        %v2666 = vlaneseq
        %v2667 = vshrl.u32 %v2666, 7
        %v2668 = vsub.s32 %v2665, %v2667
        %v2669 = vrot.slane %v2662, %v2668
        %v2670 = vcombine.low %v2645, %v2653
        %v2671 = vcombine.high %v2645, %v2653
        %v2673 = vunpack.c.l.s4 1934713408
        %v2674 = vunpack.c.0.s8 %v2673
        %v2675 = vlaneseq
        %v2676 = vshrl.u32 %v2675, 7
        %v2677 = vsub.s32 %v2674, %v2676
        %v2678 = vrot.slane %v2670, %v2677
        %v2680 = vunpack.c.l.s4 1934713408
        %v2681 = vunpack.c.0.s8 %v2680
        %v2682 = vlaneseq
        %v2683 = vshrl.u32 %v2682, 7
        %v2684 = vsub.s32 %v2681, %v2683
        %v2685 = vrot.slane %v2671, %v2684
        %v2686 = vcombine.low %v2661, %v2669
        %v2687 = vcombine.high %v2661, %v2669
        %v2689 = vunpack.c.l.s4 1934713408
        %v2690 = vunpack.c.0.s8 %v2689
        %v2691 = vlaneseq
        %v2692 = vshrl.u32 %v2691, 7
        %v2693 = vsub.s32 %v2690, %v2692
        %v2694 = vrot.slane %v2686, %v2693
        %v2696 = vunpack.c.l.s4 1934713408
        %v2697 = vunpack.c.0.s8 %v2696
        %v2698 = vlaneseq
        %v2699 = vshrl.u32 %v2698, 7
        %v2700 = vsub.s32 %v2697, %v2699
        %v2701 = vrot.slane %v2687, %v2700
        %v2702 = vcombine.low %v2678, %v2694
        %v2703 = vcombine.high %v2678, %v2694
        %v2704 = vcombine.low %v2685, %v2701
        %v2705 = vcombine.high %v2685, %v2701
        %v2706 = vcombine.low %v2474, %v2481
        %v2708 = vunpack.c.l.s4 1983009808
        %v2709 = vunpack.c.0.s8 %v2708
        %v2710 = vlaneseq
        %v2711 = vshrl.u32 %v2710, 7
        %v2712 = vsub.s32 %v2709, %v2711
        %v2713 = vrot.slane %v2706, %v2712
        %v2714 = vcombine.low %v2498, %v2499
        %v2716 = vunpack.c.l.s4 1983009808
        %v2717 = vunpack.c.0.s8 %v2716
        %v2718 = vlaneseq
        %v2719 = vshrl.u32 %v2718, 7
        %v2720 = vsub.s32 %v2717, %v2719
        %v2721 = vrot.slane %v2714, %v2720
        %v2722 = vcombine.low %v2490, %v2497
        %v2724 = vunpack.c.l.s4 1983009808
        %v2725 = vunpack.c.0.s8 %v2724
        %v2726 = vlaneseq
        %v2727 = vshrl.u32 %v2726, 7
        %v2728 = vsub.s32 %v2725, %v2727
        %v2729 = vrot.slane %v2722, %v2728
        %v2730 = vcombine.low %v2500, %v2501
        %v2732 = vunpack.c.l.s4 1983009808
        %v2733 = vunpack.c.0.s8 %v2732
        %v2734 = vlaneseq
        %v2735 = vshrl.u32 %v2734, 7
        %v2736 = vsub.s32 %v2733, %v2735
        %v2737 = vrot.slane %v2730, %v2736
        %v2738 = vcombine.low %v2713, %v2721
        %v2739 = vcombine.high %v2713, %v2721
        %v2741 = vunpack.c.l.s4 1934713408
        %v2742 = vunpack.c.0.s8 %v2741
        %v2743 = vlaneseq
        %v2744 = vshrl.u32 %v2743, 7
        %v2745 = vsub.s32 %v2742, %v2744
        %v2746 = vrot.slane %v2738, %v2745
        %v2748 = vunpack.c.l.s4 1934713408
        %v2749 = vunpack.c.0.s8 %v2748
        %v2750 = vlaneseq
        %v2751 = vshrl.u32 %v2750, 7
        %v2752 = vsub.s32 %v2749, %v2751
        %v2753 = vrot.slane %v2739, %v2752
        %v2754 = vcombine.low %v2729, %v2737
        %v2755 = vcombine.high %v2729, %v2737
        %v2757 = vunpack.c.l.s4 1934713408
        %v2758 = vunpack.c.0.s8 %v2757
        %v2759 = vlaneseq
        %v2760 = vshrl.u32 %v2759, 7
        %v2761 = vsub.s32 %v2758, %v2760
        %v2762 = vrot.slane %v2754, %v2761
        %v2764 = vunpack.c.l.s4 1934713408
        %v2765 = vunpack.c.0.s8 %v2764
        %v2766 = vlaneseq
        %v2767 = vshrl.u32 %v2766, 7
        %v2768 = vsub.s32 %v2765, %v2767
        %v2769 = vrot.slane %v2755, %v2768
        %v2770 = vcombine.low %v2746, %v2762
        %v2771 = vcombine.high %v2746, %v2762
        %v2772 = vcombine.low %v2753, %v2769
        %v2773 = vcombine.high %v2753, %v2769
        %v2776 = vpack.i.b16 %v2634, %v2566
        %v2778 = vshrl.u32 %v2566, 16
        %v2779 = vshrl.u32 %v2634, 16
        %v2780 = vpack.i.b16 %v2779, %v2778
        %v2784 = vpack.i.b16 %v2635, %v2567
        %v2786 = vshrl.u32 %v2567, 16
        %v2787 = vshrl.u32 %v2635, 16
        %v2788 = vpack.i.b16 %v2787, %v2786
        %v2792 = vpack.i.b16 %v2636, %v2568
        %v2794 = vshrl.u32 %v2568, 16
        %v2795 = vshrl.u32 %v2636, 16
        %v2796 = vpack.i.b16 %v2795, %v2794
        %v2800 = vpack.i.b16 %v2637, %v2569
        %v2802 = vshrl.u32 %v2569, 16
        %v2803 = vshrl.u32 %v2637, 16
        %v2804 = vpack.i.b16 %v2803, %v2802
        %v2808 = vpack.i.b16 %v2770, %v2702
        %v2810 = vshrl.u32 %v2702, 16
        %v2811 = vshrl.u32 %v2770, 16
        %v2812 = vpack.i.b16 %v2811, %v2810
        %v2816 = vpack.i.b16 %v2771, %v2703
        %v2818 = vshrl.u32 %v2703, 16
        %v2819 = vshrl.u32 %v2771, 16
        %v2820 = vpack.i.b16 %v2819, %v2818
        %v2824 = vpack.i.b16 %v2772, %v2704
        %v2826 = vshrl.u32 %v2704, 16
        %v2827 = vshrl.u32 %v2772, 16
        %v2828 = vpack.i.b16 %v2827, %v2826
        %v2832 = vpack.i.b16 %v2773, %v2705
        %v2834 = vshrl.u32 %v2705, 16
        %v2835 = vshrl.u32 %v2773, 16
        %v2836 = vpack.i.b16 %v2835, %v2834
        %vm2838 = vcmask 261120
        %v2840 = vsel %vm2838, %v1424, 0
        %v2843 = vsel %vm2838, %v2088, 0
        %v2846 = vsel %vm2838, %v2112, 0
        %2848 = vmatprep.subr.bf16.mxu0 0
        %2849 = vmatpush1.bf16.xpose.msra.mxu0 %v2843
        %2850 = vmatprep.subr.bf16.mxu0 0
        %2851 = vmatpush1.bf16.xpose.msra.mxu0 %v2846
        %2852 = vmatprep.subr.bf16.mxu0 0
        %2853 = vmatpush1.bf16.xpose.msra.mxu0 0
        %2854 = vmatprep.subr.bf16.mxu0 0
        %2855 = vmatpush1.bf16.xpose.msra.mxu0 0
        %2856 = vmatprep.subr.bf16.mxu0 0
        %2857 = vmatpush1.bf16.xpose.msra.mxu0 0
        %2858 = vmatprep.subr.bf16.mxu0 0
        %2859 = vmatpush1.bf16.xpose.msra.mxu0 0
        %2860 = vmatprep.subr.bf16.mxu0 0
        %2861 = vmatpush1.bf16.xpose.msra.mxu0 0
        %2862 = vmatprep.subr.bf16.mxu0 0
        %2863 = vmatpush1.bf16.xpose.msra.mxu0 0
        %2864 = vmatprep.subr.bf16.mxu0 0
        %2865 = vmatpush1.bf16.xpose.msra.mxu0 0
        %2866 = vmatprep.subr.bf16.mxu0 0
        %2867 = vmatpush1.bf16.xpose.msra.mxu0 0
        %2868 = vmatprep.subr.bf16.mxu0 0
        %2869 = vmatpush1.bf16.xpose.msra.mxu0 0
        %2870 = vmatprep.subr.bf16.mxu0 0
        %2871 = vmatpush1.bf16.xpose.msra.mxu0 0
        %2872 = vmatprep.subr.bf16.mxu0 0
        %2873 = vmatpush1.bf16.xpose.msra.mxu0 0
        %2874 = vmatprep.subr.bf16.mxu0 0
        %2875 = vmatpush1.bf16.xpose.msra.mxu0 0
        %2876 = vmatprep.subr.bf16.mxu0 0
        %2877 = vmatpush1.bf16.xpose.msra.mxu0 0
        %2878 = vmatprep.subr.bf16.mxu0 0
        %2879 = vmatpush1.bf16.xpose.msra.mxu0 0
        %2880 = vmatprep.mubr.bf16.mxu0 0
        %2881 = vmatmul.mubr.bf16.gmra.mrb[0].mxu0 %v2840
        %v2882 = vpop.f32.mrb[0].mxu0
        %v2883 = vadd.f32 0.0, %v2882
        %v2884 = vpop.f32.mrb[0].mxu0
        %v2885 = vpop.f32.mrb[0].mxu0
        %v2886 = vpop.f32.mrb[0].mxu0
        %2887 = vdwg.mxu0
        %v2889 = vsel %vm2838, %v1427, 0
        %v2892 = vsel %vm2838, %v2091, 0
        %v2895 = vsel %vm2838, %v2115, 0
        %2897 = vmatprep.subr.bf16.mxu0 0
        %2898 = vmatpush1.bf16.xpose.msra.mxu0 %v2892
        %2899 = vmatprep.subr.bf16.mxu0 0
        %2900 = vmatpush1.bf16.xpose.msra.mxu0 %v2895
        %2901 = vmatprep.subr.bf16.mxu0 0
        %2902 = vmatpush1.bf16.xpose.msra.mxu0 0
        %2903 = vmatprep.subr.bf16.mxu0 0
        %2904 = vmatpush1.bf16.xpose.msra.mxu0 0
        %2905 = vmatprep.subr.bf16.mxu0 0
        %2906 = vmatpush1.bf16.xpose.msra.mxu0 0
        %2907 = vmatprep.subr.bf16.mxu0 0
        %2908 = vmatpush1.bf16.xpose.msra.mxu0 0
        %2909 = vmatprep.subr.bf16.mxu0 0
        %2910 = vmatpush1.bf16.xpose.msra.mxu0 0
        %2911 = vmatprep.subr.bf16.mxu0 0
        %2912 = vmatpush1.bf16.xpose.msra.mxu0 0
        %2913 = vmatprep.subr.bf16.mxu0 0
        %2914 = vmatpush1.bf16.xpose.msra.mxu0 0
        %2915 = vmatprep.subr.bf16.mxu0 0
        %2916 = vmatpush1.bf16.xpose.msra.mxu0 0
        %2917 = vmatprep.subr.bf16.mxu0 0
        %2918 = vmatpush1.bf16.xpose.msra.mxu0 0
        %2919 = vmatprep.subr.bf16.mxu0 0
        %2920 = vmatpush1.bf16.xpose.msra.mxu0 0
        %2921 = vmatprep.subr.bf16.mxu0 0
        %2922 = vmatpush1.bf16.xpose.msra.mxu0 0
        %2923 = vmatprep.subr.bf16.mxu0 0
        %2924 = vmatpush1.bf16.xpose.msra.mxu0 0
        %2925 = vmatprep.subr.bf16.mxu0 0
        %2926 = vmatpush1.bf16.xpose.msra.mxu0 0
        %2927 = vmatprep.subr.bf16.mxu0 0
        %2928 = vmatpush1.bf16.xpose.msra.mxu0 0
        %2929 = vmatprep.mubr.bf16.mxu0 0
        %2930 = vmatmul.mubr.bf16.gmra.mrb[0].mxu0 %v2889
        %v2931 = vpop.f32.mrb[0].mxu0
        %v2932 = vadd.f32 0.0, %v2931
        %v2933 = vpop.f32.mrb[0].mxu0
        %v2934 = vpop.f32.mrb[0].mxu0
        %v2935 = vpop.f32.mrb[0].mxu0
        %2936 = vdwg.mxu0
        %v2938 = vsel %vm2838, %v1430, 0
        %v2941 = vsel %vm2838, %v2094, 0
        %v2944 = vsel %vm2838, %v2118, 0
        %2946 = vmatprep.subr.bf16.mxu0 0
        %2947 = vmatpush1.bf16.xpose.msra.mxu0 %v2941
        %2948 = vmatprep.subr.bf16.mxu0 0
        %2949 = vmatpush1.bf16.xpose.msra.mxu0 %v2944
        %2950 = vmatprep.subr.bf16.mxu0 0
        %2951 = vmatpush1.bf16.xpose.msra.mxu0 0
        %2952 = vmatprep.subr.bf16.mxu0 0
        %2953 = vmatpush1.bf16.xpose.msra.mxu0 0
        %2954 = vmatprep.subr.bf16.mxu0 0
        %2955 = vmatpush1.bf16.xpose.msra.mxu0 0
        %2956 = vmatprep.subr.bf16.mxu0 0
        %2957 = vmatpush1.bf16.xpose.msra.mxu0 0
        %2958 = vmatprep.subr.bf16.mxu0 0
        %2959 = vmatpush1.bf16.xpose.msra.mxu0 0
        %2960 = vmatprep.subr.bf16.mxu0 0
        %2961 = vmatpush1.bf16.xpose.msra.mxu0 0
        %2962 = vmatprep.subr.bf16.mxu0 0
        %2963 = vmatpush1.bf16.xpose.msra.mxu0 0
        %2964 = vmatprep.subr.bf16.mxu0 0
        %2965 = vmatpush1.bf16.xpose.msra.mxu0 0
        %2966 = vmatprep.subr.bf16.mxu0 0
        %2967 = vmatpush1.bf16.xpose.msra.mxu0 0
        %2968 = vmatprep.subr.bf16.mxu0 0
        %2969 = vmatpush1.bf16.xpose.msra.mxu0 0
        %2970 = vmatprep.subr.bf16.mxu0 0
        %2971 = vmatpush1.bf16.xpose.msra.mxu0 0
        %2972 = vmatprep.subr.bf16.mxu0 0
        %2973 = vmatpush1.bf16.xpose.msra.mxu0 0
        %2974 = vmatprep.subr.bf16.mxu0 0
        %2975 = vmatpush1.bf16.xpose.msra.mxu0 0
        %2976 = vmatprep.subr.bf16.mxu0 0
        %2977 = vmatpush1.bf16.xpose.msra.mxu0 0
        %2978 = vmatprep.mubr.bf16.mxu0 0
        %2979 = vmatmul.mubr.bf16.gmra.mrb[0].mxu0 %v2938
        %v2980 = vpop.f32.mrb[0].mxu0
        %v2981 = vadd.f32 0.0, %v2980
        %v2982 = vpop.f32.mrb[0].mxu0
        %v2983 = vpop.f32.mrb[0].mxu0
        %v2984 = vpop.f32.mrb[0].mxu0
        %2985 = vdwg.mxu0
        %v2987 = vsel %vm2838, %v1433, 0
        %v2990 = vsel %vm2838, %v2097, 0
        %v2993 = vsel %vm2838, %v2121, 0
        %2995 = vmatprep.subr.bf16.mxu0 0
        %2996 = vmatpush1.bf16.xpose.msra.mxu0 %v2990
        %2997 = vmatprep.subr.bf16.mxu0 0
        %2998 = vmatpush1.bf16.xpose.msra.mxu0 %v2993
        %2999 = vmatprep.subr.bf16.mxu0 0
        %3000 = vmatpush1.bf16.xpose.msra.mxu0 0
        %3001 = vmatprep.subr.bf16.mxu0 0
        %3002 = vmatpush1.bf16.xpose.msra.mxu0 0
        %3003 = vmatprep.subr.bf16.mxu0 0
        %3004 = vmatpush1.bf16.xpose.msra.mxu0 0
        %3005 = vmatprep.subr.bf16.mxu0 0
        %3006 = vmatpush1.bf16.xpose.msra.mxu0 0
        %3007 = vmatprep.subr.bf16.mxu0 0
        %3008 = vmatpush1.bf16.xpose.msra.mxu0 0
        %3009 = vmatprep.subr.bf16.mxu0 0
        %3010 = vmatpush1.bf16.xpose.msra.mxu0 0
        %3011 = vmatprep.subr.bf16.mxu0 0
        %3012 = vmatpush1.bf16.xpose.msra.mxu0 0
        %3013 = vmatprep.subr.bf16.mxu0 0
        %3014 = vmatpush1.bf16.xpose.msra.mxu0 0
        %3015 = vmatprep.subr.bf16.mxu0 0
        %3016 = vmatpush1.bf16.xpose.msra.mxu0 0
        %3017 = vmatprep.subr.bf16.mxu0 0
        %3018 = vmatpush1.bf16.xpose.msra.mxu0 0
        %3019 = vmatprep.subr.bf16.mxu0 0
        %3020 = vmatpush1.bf16.xpose.msra.mxu0 0
        %3021 = vmatprep.subr.bf16.mxu0 0
        %3022 = vmatpush1.bf16.xpose.msra.mxu0 0
        %3023 = vmatprep.subr.bf16.mxu0 0
        %3024 = vmatpush1.bf16.xpose.msra.mxu0 0
        %3025 = vmatprep.subr.bf16.mxu0 0
        %3026 = vmatpush1.bf16.xpose.msra.mxu0 0
        %3027 = vmatprep.mubr.bf16.mxu0 0
        %3028 = vmatmul.mubr.bf16.gmra.mrb[0].mxu0 %v2987
        %v3029 = vpop.f32.mrb[0].mxu0
        %v3030 = vadd.f32 0.0, %v3029
        %v3031 = vpop.f32.mrb[0].mxu0
        %v3032 = vpop.f32.mrb[0].mxu0
        %v3033 = vpop.f32.mrb[0].mxu0
        %3034 = vdwg.mxu0
        %v3036 = vsel %vm2838, %v1436, 0
        %v3039 = vsel %vm2838, %v2100, 0
        %v3042 = vsel %vm2838, %v2124, 0
        %3044 = vmatprep.subr.bf16.mxu0 0
        %3045 = vmatpush1.bf16.xpose.msra.mxu0 %v3039
        %3046 = vmatprep.subr.bf16.mxu0 0
        %3047 = vmatpush1.bf16.xpose.msra.mxu0 %v3042
        %3048 = vmatprep.subr.bf16.mxu0 0
        %3049 = vmatpush1.bf16.xpose.msra.mxu0 0
        %3050 = vmatprep.subr.bf16.mxu0 0
        %3051 = vmatpush1.bf16.xpose.msra.mxu0 0
        %3052 = vmatprep.subr.bf16.mxu0 0
        %3053 = vmatpush1.bf16.xpose.msra.mxu0 0
        %3054 = vmatprep.subr.bf16.mxu0 0
        %3055 = vmatpush1.bf16.xpose.msra.mxu0 0
        %3056 = vmatprep.subr.bf16.mxu0 0
        %3057 = vmatpush1.bf16.xpose.msra.mxu0 0
        %3058 = vmatprep.subr.bf16.mxu0 0
        %3059 = vmatpush1.bf16.xpose.msra.mxu0 0
        %3060 = vmatprep.subr.bf16.mxu0 0
        %3061 = vmatpush1.bf16.xpose.msra.mxu0 0
        %3062 = vmatprep.subr.bf16.mxu0 0
        %3063 = vmatpush1.bf16.xpose.msra.mxu0 0
        %3064 = vmatprep.subr.bf16.mxu0 0
        %3065 = vmatpush1.bf16.xpose.msra.mxu0 0
        %3066 = vmatprep.subr.bf16.mxu0 0
        %3067 = vmatpush1.bf16.xpose.msra.mxu0 0
        %3068 = vmatprep.subr.bf16.mxu0 0
        %3069 = vmatpush1.bf16.xpose.msra.mxu0 0
        %3070 = vmatprep.subr.bf16.mxu0 0
        %3071 = vmatpush1.bf16.xpose.msra.mxu0 0
        %3072 = vmatprep.subr.bf16.mxu0 0
        %3073 = vmatpush1.bf16.xpose.msra.mxu0 0
        %3074 = vmatprep.subr.bf16.mxu0 0
        %3075 = vmatpush1.bf16.xpose.msra.mxu0 0
        %3076 = vmatprep.mubr.bf16.mxu0 0
        %3077 = vmatmul.mubr.bf16.gmra.mrb[0].mxu0 %v3036
        %v3078 = vpop.f32.mrb[0].mxu0
        %v3079 = vadd.f32 0.0, %v3078
        %v3080 = vpop.f32.mrb[0].mxu0
        %v3081 = vpop.f32.mrb[0].mxu0
        %v3082 = vpop.f32.mrb[0].mxu0
        %3083 = vdwg.mxu0
        %v3085 = vsel %vm2838, %v1439, 0
        %v3088 = vsel %vm2838, %v2103, 0
        %v3091 = vsel %vm2838, %v2127, 0
        %3093 = vmatprep.subr.bf16.mxu0 0
        %3094 = vmatpush1.bf16.xpose.msra.mxu0 %v3088
        %3095 = vmatprep.subr.bf16.mxu0 0
        %3096 = vmatpush1.bf16.xpose.msra.mxu0 %v3091
        %3097 = vmatprep.subr.bf16.mxu0 0
        %3098 = vmatpush1.bf16.xpose.msra.mxu0 0
        %3099 = vmatprep.subr.bf16.mxu0 0
        %3100 = vmatpush1.bf16.xpose.msra.mxu0 0
        %3101 = vmatprep.subr.bf16.mxu0 0
        %3102 = vmatpush1.bf16.xpose.msra.mxu0 0
        %3103 = vmatprep.subr.bf16.mxu0 0
        %3104 = vmatpush1.bf16.xpose.msra.mxu0 0
        %3105 = vmatprep.subr.bf16.mxu0 0
        %3106 = vmatpush1.bf16.xpose.msra.mxu0 0
        %3107 = vmatprep.subr.bf16.mxu0 0
        %3108 = vmatpush1.bf16.xpose.msra.mxu0 0
        %3109 = vmatprep.subr.bf16.mxu0 0
        %3110 = vmatpush1.bf16.xpose.msra.mxu0 0
        %3111 = vmatprep.subr.bf16.mxu0 0
        %3112 = vmatpush1.bf16.xpose.msra.mxu0 0
        %3113 = vmatprep.subr.bf16.mxu0 0
        %3114 = vmatpush1.bf16.xpose.msra.mxu0 0
        %3115 = vmatprep.subr.bf16.mxu0 0
        %3116 = vmatpush1.bf16.xpose.msra.mxu0 0
        %3117 = vmatprep.subr.bf16.mxu0 0
        %3118 = vmatpush1.bf16.xpose.msra.mxu0 0
        %3119 = vmatprep.subr.bf16.mxu0 0
        %3120 = vmatpush1.bf16.xpose.msra.mxu0 0
        %3121 = vmatprep.subr.bf16.mxu0 0
        %3122 = vmatpush1.bf16.xpose.msra.mxu0 0
        %3123 = vmatprep.subr.bf16.mxu0 0
        %3124 = vmatpush1.bf16.xpose.msra.mxu0 0
        %3125 = vmatprep.mubr.bf16.mxu0 0
        %3126 = vmatmul.mubr.bf16.gmra.mrb[0].mxu0 %v3085
        %v3127 = vpop.f32.mrb[0].mxu0
        %v3128 = vadd.f32 0.0, %v3127
        %v3129 = vpop.f32.mrb[0].mxu0
        %v3130 = vpop.f32.mrb[0].mxu0
        %v3131 = vpop.f32.mrb[0].mxu0
        %3132 = vdwg.mxu0
        %v3134 = vsel %vm2838, %v1442, 0
        %v3137 = vsel %vm2838, %v2106, 0
        %v3140 = vsel %vm2838, %v2130, 0
        %3142 = vmatprep.subr.bf16.mxu0 0
        %3143 = vmatpush1.bf16.xpose.msra.mxu0 %v3137
        %3144 = vmatprep.subr.bf16.mxu0 0
        %3145 = vmatpush1.bf16.xpose.msra.mxu0 %v3140
        %3146 = vmatprep.subr.bf16.mxu0 0
        %3147 = vmatpush1.bf16.xpose.msra.mxu0 0
        %3148 = vmatprep.subr.bf16.mxu0 0
        %3149 = vmatpush1.bf16.xpose.msra.mxu0 0
        %3150 = vmatprep.subr.bf16.mxu0 0
        %3151 = vmatpush1.bf16.xpose.msra.mxu0 0
        %3152 = vmatprep.subr.bf16.mxu0 0
        %3153 = vmatpush1.bf16.xpose.msra.mxu0 0
        %3154 = vmatprep.subr.bf16.mxu0 0
        %3155 = vmatpush1.bf16.xpose.msra.mxu0 0
        %3156 = vmatprep.subr.bf16.mxu0 0
        %3157 = vmatpush1.bf16.xpose.msra.mxu0 0
        %3158 = vmatprep.subr.bf16.mxu0 0
        %3159 = vmatpush1.bf16.xpose.msra.mxu0 0
        %3160 = vmatprep.subr.bf16.mxu0 0
        %3161 = vmatpush1.bf16.xpose.msra.mxu0 0
        %3162 = vmatprep.subr.bf16.mxu0 0
        %3163 = vmatpush1.bf16.xpose.msra.mxu0 0
        %3164 = vmatprep.subr.bf16.mxu0 0
        %3165 = vmatpush1.bf16.xpose.msra.mxu0 0
        %3166 = vmatprep.subr.bf16.mxu0 0
        %3167 = vmatpush1.bf16.xpose.msra.mxu0 0
        %3168 = vmatprep.subr.bf16.mxu0 0
        %3169 = vmatpush1.bf16.xpose.msra.mxu0 0
        %3170 = vmatprep.subr.bf16.mxu0 0
        %3171 = vmatpush1.bf16.xpose.msra.mxu0 0
        %3172 = vmatprep.subr.bf16.mxu0 0
        %3173 = vmatpush1.bf16.xpose.msra.mxu0 0
        %3174 = vmatprep.mubr.bf16.mxu0 0
        %3175 = vmatmul.mubr.bf16.gmra.mrb[0].mxu0 %v3134
        %v3176 = vpop.f32.mrb[0].mxu0
        %v3177 = vadd.f32 0.0, %v3176
        %v3178 = vpop.f32.mrb[0].mxu0
        %v3179 = vpop.f32.mrb[0].mxu0
        %v3180 = vpop.f32.mrb[0].mxu0
        %3181 = vdwg.mxu0
        %v3183 = vsel %vm2838, %v1445, 0
        %v3186 = vsel %vm2838, %v2109, 0
        %v3189 = vsel %vm2838, %v2133, 0
        %3191 = vmatprep.subr.bf16.mxu0 0
        %3192 = vmatpush1.bf16.xpose.msra.mxu0 %v3186
        %3193 = vmatprep.subr.bf16.mxu0 0
        %3194 = vmatpush1.bf16.xpose.msra.mxu0 %v3189
        %3195 = vmatprep.subr.bf16.mxu0 0
        %3196 = vmatpush1.bf16.xpose.msra.mxu0 0
        %3197 = vmatprep.subr.bf16.mxu0 0
        %3198 = vmatpush1.bf16.xpose.msra.mxu0 0
        %3199 = vmatprep.subr.bf16.mxu0 0
        %3200 = vmatpush1.bf16.xpose.msra.mxu0 0
        %3201 = vmatprep.subr.bf16.mxu0 0
        %3202 = vmatpush1.bf16.xpose.msra.mxu0 0
        %3203 = vmatprep.subr.bf16.mxu0 0
        %3204 = vmatpush1.bf16.xpose.msra.mxu0 0
        %3205 = vmatprep.subr.bf16.mxu0 0
        %3206 = vmatpush1.bf16.xpose.msra.mxu0 0
        %3207 = vmatprep.subr.bf16.mxu0 0
        %3208 = vmatpush1.bf16.xpose.msra.mxu0 0
        %3209 = vmatprep.subr.bf16.mxu0 0
        %3210 = vmatpush1.bf16.xpose.msra.mxu0 0
        %3211 = vmatprep.subr.bf16.mxu0 0
        %3212 = vmatpush1.bf16.xpose.msra.mxu0 0
        %3213 = vmatprep.subr.bf16.mxu0 0
        %3214 = vmatpush1.bf16.xpose.msra.mxu0 0
        %3215 = vmatprep.subr.bf16.mxu0 0
        %3216 = vmatpush1.bf16.xpose.msra.mxu0 0
        %3217 = vmatprep.subr.bf16.mxu0 0
        %3218 = vmatpush1.bf16.xpose.msra.mxu0 0
        %3219 = vmatprep.subr.bf16.mxu0 0
        %3220 = vmatpush1.bf16.xpose.msra.mxu0 0
        %3221 = vmatprep.subr.bf16.mxu0 0
        %3222 = vmatpush1.bf16.xpose.msra.mxu0 0
        %3223 = vmatprep.mubr.bf16.mxu0 0
        %3224 = vmatmul.mubr.bf16.gmra.mrb[0].mxu0 %v3183
        %v3225 = vpop.f32.mrb[0].mxu0
        %v3226 = vadd.f32 0.0, %v3225
        %v3227 = vpop.f32.mrb[0].mxu0
        %v3228 = vpop.f32.mrb[0].mxu0
        %v3229 = vpop.f32.mrb[0].mxu0
        %3230 = vdwg.mxu0
        %v3231 = vld [vmem:[%s445] sm:$0x1]
        %v3232 = vlaneseq
        %v3233 = vand.u32 %v3232, 127
        %3234 = vset.pattern.permute.xlu0 0
        %3235 = vperm.xlu0 %3234, %v3231
        %v3236 = vpop.permute.xlu0 %3235
        %v3237 = vlaneseq
        %v3238 = vshrl.u32 %v3237, 7
        %v3239 = vsub.s32 0, %v3238
        %v3240 = vrot.slane %v3236, %v3239
        %vm3241 = vcmp.lt.s32.totalorder %v3233, %v3240
        %v3242 = vsel %vm3241, 1, 0
        %vm3243 = vcmp.eq.s32.totalorder %v3242, 1
        %v3244 = vsel %vm3243, %v2883, -1e+30
        %v3245 = vsel %vm3243, %v2932, -1e+30
        %v3246 = vsel %vm3243, %v2981, -1e+30
        %v3247 = vsel %vm3243, %v3030, -1e+30
        %v3248 = vsel %vm3243, %v3079, -1e+30
        %v3249 = vsel %vm3243, %v3128, -1e+30
        %v3250 = vsel %vm3243, %v3177, -1e+30
        %v3251 = vsel %vm3243, %v3226, -1e+30
        %v3252 = vsel %vm2838, %v3244, -inf
        %3253 = vmax.xlane.f32.xlu0 %v3252
        %v3254 = vpop.xlane.xlu0 %3253
        %v3255 = vsel %vm2838, %v3245, -inf
        %3256 = vmax.xlane.f32.xlu0 %v3255
        %v3257 = vpop.xlane.xlu0 %3256
        %v3258 = vsel %vm2838, %v3246, -inf
        %3259 = vmax.xlane.f32.xlu0 %v3258
        %v3260 = vpop.xlane.xlu0 %3259
        %v3261 = vsel %vm2838, %v3247, -inf
        %3262 = vmax.xlane.f32.xlu0 %v3261
        %v3263 = vpop.xlane.xlu0 %3262
        %v3264 = vsel %vm2838, %v3248, -inf
        %3265 = vmax.xlane.f32.xlu0 %v3264
        %v3266 = vpop.xlane.xlu0 %3265
        %v3267 = vsel %vm2838, %v3249, -inf
        %3268 = vmax.xlane.f32.xlu0 %v3267
        %v3269 = vpop.xlane.xlu0 %3268
        %v3270 = vsel %vm2838, %v3250, -inf
        %3271 = vmax.xlane.f32.xlu0 %v3270
        %v3272 = vpop.xlane.xlu0 %3271
        %v3273 = vsel %vm2838, %v3251, -inf
        %3274 = vmax.xlane.f32.xlu0 %v3273
        %v3275 = vpop.xlane.xlu0 %3274
        %v3276 = vsub.f32 %v3244, %v3254
        %v3277 = vsub.f32 %v3245, %v3257
        %v3278 = vsub.f32 %v3246, %v3260
        %v3279 = vsub.f32 %v3247, %v3263
        %v3280 = vsub.f32 %v3248, %v3266
        %v3281 = vsub.f32 %v3249, %v3269
        %v3282 = vsub.f32 %v3250, %v3272
        %v3283 = vsub.f32 %v3251, %v3275
        %v3284 = vmul.f32 %v3276, 1.442695
        %v3285 = vpow.pop %v3284
        %v3286 = vmul.f32 %v3277, 1.442695
        %v3287 = vpow.pop %v3286
        %v3288 = vmul.f32 %v3278, 1.442695
        %v3289 = vpow.pop %v3288
        %v3290 = vmul.f32 %v3279, 1.442695
        %v3291 = vpow.pop %v3290
        %v3292 = vmul.f32 %v3280, 1.442695
        %v3293 = vpow.pop %v3292
        %v3294 = vmul.f32 %v3281, 1.442695
        %v3295 = vpow.pop %v3294
        %v3296 = vmul.f32 %v3282, 1.442695
        %v3297 = vpow.pop %v3296
        %v3298 = vmul.f32 %v3283, 1.442695
        %v3299 = vpow.pop %v3298
        %v3300 = vsel %vm2838, %v3285, 0.0
        %3301 = vadd.xlane.f32.xlu0 %v3300
        %v3302 = vpop.xlane.xlu0 %3301
        %v3303 = vsel %vm2838, %v3287, 0.0
        %3304 = vadd.xlane.f32.xlu0 %v3303
        %v3305 = vpop.xlane.xlu0 %3304
        %v3306 = vsel %vm2838, %v3289, 0.0
        %3307 = vadd.xlane.f32.xlu0 %v3306
        %v3308 = vpop.xlane.xlu0 %3307
        %v3309 = vsel %vm2838, %v3291, 0.0
        %3310 = vadd.xlane.f32.xlu0 %v3309
        %v3311 = vpop.xlane.xlu0 %3310
        %v3312 = vsel %vm2838, %v3293, 0.0
        %3313 = vadd.xlane.f32.xlu0 %v3312
        %v3314 = vpop.xlane.xlu0 %3313
        %v3315 = vsel %vm2838, %v3295, 0.0
        %3316 = vadd.xlane.f32.xlu0 %v3315
        %v3317 = vpop.xlane.xlu0 %3316
        %v3318 = vsel %vm2838, %v3297, 0.0
        %3319 = vadd.xlane.f32.xlu0 %v3318
        %v3320 = vpop.xlane.xlu0 %3319
        %v3321 = vsel %vm2838, %v3299, 0.0
        %3322 = vadd.xlane.f32.xlu0 %v3321
        %v3323 = vpop.xlane.xlu0 %3322
        %v3324 = vrcp.pop %v3302
        %v3325 = vrcp.pop %v3305
        %v3326 = vrcp.pop %v3308
        %v3327 = vrcp.pop %v3311
        %v3328 = vrcp.pop %v3314
        %v3329 = vrcp.pop %v3317
        %v3330 = vrcp.pop %v3320
        %v3331 = vrcp.pop %v3323
        %v3332 = vmul.f32 %v3285, %v3324
        %v3333 = vmul.f32 %v3287, %v3325
        %v3334 = vmul.f32 %v3289, %v3326
        %v3335 = vmul.f32 %v3291, %v3327
        %v3336 = vmul.f32 %v3293, %v3328
        %v3337 = vmul.f32 %v3295, %v3329
        %v3338 = vmul.f32 %v3297, %v3330
        %v3339 = vmul.f32 %v3299, %v3331
        %v3340 = vpack.c.bf16 %v3332, %v3332
        %v3341 = vpack.c.bf16 %v3333, %v3333
        %v3342 = vpack.c.bf16 %v3334, %v3334
        %v3343 = vpack.c.bf16 %v3335, %v3335
        %v3344 = vpack.c.bf16 %v3336, %v3336
        %v3345 = vpack.c.bf16 %v3337, %v3337
        %v3346 = vpack.c.bf16 %v3338, %v3338
        %v3347 = vpack.c.bf16 %v3339, %v3339
        %v3349 = vsel %vm2838, %v3340, 0
        %3351 = vmatprep.subr.bf16.mxu0 0
        %3352 = vmatpush1.bf16.msra.mxu0 %v2776
        %3353 = vmatprep.subr.bf16.mxu0 0
        %3354 = vmatpush1.bf16.msra.mxu0 %v2808
        %3355 = vmatprep.subr.bf16.mxu0 0
        %3356 = vmatpush1.bf16.msra.mxu0 0
        %3357 = vmatprep.subr.bf16.mxu0 0
        %3358 = vmatpush1.bf16.msra.mxu0 0
        %3359 = vmatprep.subr.bf16.mxu0 0
        %3360 = vmatpush1.bf16.msra.mxu0 0
        %3361 = vmatprep.subr.bf16.mxu0 0
        %3362 = vmatpush1.bf16.msra.mxu0 0
        %3363 = vmatprep.subr.bf16.mxu0 0
        %3364 = vmatpush1.bf16.msra.mxu0 0
        %3365 = vmatprep.subr.bf16.mxu0 0
        %3366 = vmatpush1.bf16.msra.mxu0 0
        %3367 = vmatprep.subr.bf16.mxu0 0
        %3368 = vmatpush1.bf16.msra.mxu0 0
        %3369 = vmatprep.subr.bf16.mxu0 0
        %3370 = vmatpush1.bf16.msra.mxu0 0
        %3371 = vmatprep.subr.bf16.mxu0 0
        %3372 = vmatpush1.bf16.msra.mxu0 0
        %3373 = vmatprep.subr.bf16.mxu0 0
        %3374 = vmatpush1.bf16.msra.mxu0 0
        %3375 = vmatprep.subr.bf16.mxu0 0
        %3376 = vmatpush1.bf16.msra.mxu0 0
        %3377 = vmatprep.subr.bf16.mxu0 0
        %3378 = vmatpush1.bf16.msra.mxu0 0
        %3379 = vmatprep.subr.bf16.mxu0 0
        %3380 = vmatpush1.bf16.msra.mxu0 0
        %3381 = vmatprep.subr.bf16.mxu0 0
        %3382 = vmatpush1.bf16.msra.mxu0 0
        %3383 = vmatprep.mubr.bf16.mxu0 0
        %3384 = vmatmul.mubr.bf16.gmra.mrb[0].mxu0 %v3349
        %v3385 = vpop.f32.mrb[0].mxu0
        %v3386 = vadd.f32 0.0, %v3385
        %v3387 = vpop.f32.mrb[0].mxu0
        %v3388 = vpop.f32.mrb[0].mxu0
        %v3389 = vpop.f32.mrb[0].mxu0
        %3390 = vdwg.mxu0
        %v3392 = vsel %vm2838, %v3341, 0
        %3394 = vmatprep.subr.bf16.mxu0 0
        %3395 = vmatpush1.bf16.msra.mxu0 %v2780
        %3396 = vmatprep.subr.bf16.mxu0 0
        %3397 = vmatpush1.bf16.msra.mxu0 %v2812
        %3398 = vmatprep.subr.bf16.mxu0 0
        %3399 = vmatpush1.bf16.msra.mxu0 0
        %3400 = vmatprep.subr.bf16.mxu0 0
        %3401 = vmatpush1.bf16.msra.mxu0 0
        %3402 = vmatprep.subr.bf16.mxu0 0
        %3403 = vmatpush1.bf16.msra.mxu0 0
        %3404 = vmatprep.subr.bf16.mxu0 0
        %3405 = vmatpush1.bf16.msra.mxu0 0
        %3406 = vmatprep.subr.bf16.mxu0 0
        %3407 = vmatpush1.bf16.msra.mxu0 0
        %3408 = vmatprep.subr.bf16.mxu0 0
        %3409 = vmatpush1.bf16.msra.mxu0 0
        %3410 = vmatprep.subr.bf16.mxu0 0
        %3411 = vmatpush1.bf16.msra.mxu0 0
        %3412 = vmatprep.subr.bf16.mxu0 0
        %3413 = vmatpush1.bf16.msra.mxu0 0
        %3414 = vmatprep.subr.bf16.mxu0 0
        %3415 = vmatpush1.bf16.msra.mxu0 0
        %3416 = vmatprep.subr.bf16.mxu0 0
        %3417 = vmatpush1.bf16.msra.mxu0 0
        %3418 = vmatprep.subr.bf16.mxu0 0
        %3419 = vmatpush1.bf16.msra.mxu0 0
        %3420 = vmatprep.subr.bf16.mxu0 0
        %3421 = vmatpush1.bf16.msra.mxu0 0
        %3422 = vmatprep.subr.bf16.mxu0 0
        %3423 = vmatpush1.bf16.msra.mxu0 0
        %3424 = vmatprep.subr.bf16.mxu0 0
        %3425 = vmatpush1.bf16.msra.mxu0 0
        %3426 = vmatprep.mubr.bf16.mxu0 0
        %3427 = vmatmul.mubr.bf16.gmra.mrb[0].mxu0 %v3392
        %v3428 = vpop.f32.mrb[0].mxu0
        %v3429 = vadd.f32 0.0, %v3428
        %v3430 = vpop.f32.mrb[0].mxu0
        %v3431 = vpop.f32.mrb[0].mxu0
        %v3432 = vpop.f32.mrb[0].mxu0
        %3433 = vdwg.mxu0
        %v3435 = vsel %vm2838, %v3342, 0
        %3437 = vmatprep.subr.bf16.mxu0 0
        %3438 = vmatpush1.bf16.msra.mxu0 %v2784
        %3439 = vmatprep.subr.bf16.mxu0 0
        %3440 = vmatpush1.bf16.msra.mxu0 %v2816
        %3441 = vmatprep.subr.bf16.mxu0 0
        %3442 = vmatpush1.bf16.msra.mxu0 0
        %3443 = vmatprep.subr.bf16.mxu0 0
        %3444 = vmatpush1.bf16.msra.mxu0 0
        %3445 = vmatprep.subr.bf16.mxu0 0
        %3446 = vmatpush1.bf16.msra.mxu0 0
        %3447 = vmatprep.subr.bf16.mxu0 0
        %3448 = vmatpush1.bf16.msra.mxu0 0
        %3449 = vmatprep.subr.bf16.mxu0 0
        %3450 = vmatpush1.bf16.msra.mxu0 0
        %3451 = vmatprep.subr.bf16.mxu0 0
        %3452 = vmatpush1.bf16.msra.mxu0 0
        %3453 = vmatprep.subr.bf16.mxu0 0
        %3454 = vmatpush1.bf16.msra.mxu0 0
        %3455 = vmatprep.subr.bf16.mxu0 0
        %3456 = vmatpush1.bf16.msra.mxu0 0
        %3457 = vmatprep.subr.bf16.mxu0 0
        %3458 = vmatpush1.bf16.msra.mxu0 0
        %3459 = vmatprep.subr.bf16.mxu0 0
        %3460 = vmatpush1.bf16.msra.mxu0 0
        %3461 = vmatprep.subr.bf16.mxu0 0
        %3462 = vmatpush1.bf16.msra.mxu0 0
        %3463 = vmatprep.subr.bf16.mxu0 0
        %3464 = vmatpush1.bf16.msra.mxu0 0
        %3465 = vmatprep.subr.bf16.mxu0 0
        %3466 = vmatpush1.bf16.msra.mxu0 0
        %3467 = vmatprep.subr.bf16.mxu0 0
        %3468 = vmatpush1.bf16.msra.mxu0 0
        %3469 = vmatprep.mubr.bf16.mxu0 0
        %3470 = vmatmul.mubr.bf16.gmra.mrb[0].mxu0 %v3435
        %v3471 = vpop.f32.mrb[0].mxu0
        %v3472 = vadd.f32 0.0, %v3471
        %v3473 = vpop.f32.mrb[0].mxu0
        %v3474 = vpop.f32.mrb[0].mxu0
        %v3475 = vpop.f32.mrb[0].mxu0
        %3476 = vdwg.mxu0
        %v3478 = vsel %vm2838, %v3343, 0
        %3480 = vmatprep.subr.bf16.mxu0 0
        %3481 = vmatpush1.bf16.msra.mxu0 %v2788
        %3482 = vmatprep.subr.bf16.mxu0 0
        %3483 = vmatpush1.bf16.msra.mxu0 %v2820
        %3484 = vmatprep.subr.bf16.mxu0 0
        %3485 = vmatpush1.bf16.msra.mxu0 0
        %3486 = vmatprep.subr.bf16.mxu0 0
        %3487 = vmatpush1.bf16.msra.mxu0 0
        %3488 = vmatprep.subr.bf16.mxu0 0
        %3489 = vmatpush1.bf16.msra.mxu0 0
        %3490 = vmatprep.subr.bf16.mxu0 0
        %3491 = vmatpush1.bf16.msra.mxu0 0
        %3492 = vmatprep.subr.bf16.mxu0 0
        %3493 = vmatpush1.bf16.msra.mxu0 0
        %3494 = vmatprep.subr.bf16.mxu0 0
        %3495 = vmatpush1.bf16.msra.mxu0 0
        %3496 = vmatprep.subr.bf16.mxu0 0
        %3497 = vmatpush1.bf16.msra.mxu0 0
        %3498 = vmatprep.subr.bf16.mxu0 0
        %3499 = vmatpush1.bf16.msra.mxu0 0
        %3500 = vmatprep.subr.bf16.mxu0 0
        %3501 = vmatpush1.bf16.msra.mxu0 0
        %3502 = vmatprep.subr.bf16.mxu0 0
        %3503 = vmatpush1.bf16.msra.mxu0 0
        %3504 = vmatprep.subr.bf16.mxu0 0
        %3505 = vmatpush1.bf16.msra.mxu0 0
        %3506 = vmatprep.subr.bf16.mxu0 0
        %3507 = vmatpush1.bf16.msra.mxu0 0
        %3508 = vmatprep.subr.bf16.mxu0 0
        %3509 = vmatpush1.bf16.msra.mxu0 0
        %3510 = vmatprep.subr.bf16.mxu0 0
        %3511 = vmatpush1.bf16.msra.mxu0 0
        %3512 = vmatprep.mubr.bf16.mxu0 0
        %3513 = vmatmul.mubr.bf16.gmra.mrb[0].mxu0 %v3478
        %v3514 = vpop.f32.mrb[0].mxu0
        %v3515 = vadd.f32 0.0, %v3514
        %v3516 = vpop.f32.mrb[0].mxu0
        %v3517 = vpop.f32.mrb[0].mxu0
        %v3518 = vpop.f32.mrb[0].mxu0
        %3519 = vdwg.mxu0
        %v3521 = vsel %vm2838, %v3344, 0
        %3523 = vmatprep.subr.bf16.mxu0 0
        %3524 = vmatpush1.bf16.msra.mxu0 %v2792
        %3525 = vmatprep.subr.bf16.mxu0 0
        %3526 = vmatpush1.bf16.msra.mxu0 %v2824
        %3527 = vmatprep.subr.bf16.mxu0 0
        %3528 = vmatpush1.bf16.msra.mxu0 0
        %3529 = vmatprep.subr.bf16.mxu0 0
        %3530 = vmatpush1.bf16.msra.mxu0 0
        %3531 = vmatprep.subr.bf16.mxu0 0
        %3532 = vmatpush1.bf16.msra.mxu0 0
        %3533 = vmatprep.subr.bf16.mxu0 0
        %3534 = vmatpush1.bf16.msra.mxu0 0
        %3535 = vmatprep.subr.bf16.mxu0 0
        %3536 = vmatpush1.bf16.msra.mxu0 0
        %3537 = vmatprep.subr.bf16.mxu0 0
        %3538 = vmatpush1.bf16.msra.mxu0 0
        %3539 = vmatprep.subr.bf16.mxu0 0
        %3540 = vmatpush1.bf16.msra.mxu0 0
        %3541 = vmatprep.subr.bf16.mxu0 0
        %3542 = vmatpush1.bf16.msra.mxu0 0
        %3543 = vmatprep.subr.bf16.mxu0 0
        %3544 = vmatpush1.bf16.msra.mxu0 0
        %3545 = vmatprep.subr.bf16.mxu0 0
        %3546 = vmatpush1.bf16.msra.mxu0 0
        %3547 = vmatprep.subr.bf16.mxu0 0
        %3548 = vmatpush1.bf16.msra.mxu0 0
        %3549 = vmatprep.subr.bf16.mxu0 0
        %3550 = vmatpush1.bf16.msra.mxu0 0
        %3551 = vmatprep.subr.bf16.mxu0 0
        %3552 = vmatpush1.bf16.msra.mxu0 0
        %3553 = vmatprep.subr.bf16.mxu0 0
        %3554 = vmatpush1.bf16.msra.mxu0 0
        %3555 = vmatprep.mubr.bf16.mxu0 0
        %3556 = vmatmul.mubr.bf16.gmra.mrb[0].mxu0 %v3521
        %v3557 = vpop.f32.mrb[0].mxu0
        %v3558 = vadd.f32 0.0, %v3557
        %v3559 = vpop.f32.mrb[0].mxu0
        %v3560 = vpop.f32.mrb[0].mxu0
        %v3561 = vpop.f32.mrb[0].mxu0
        %3562 = vdwg.mxu0
        %v3564 = vsel %vm2838, %v3345, 0
        %3566 = vmatprep.subr.bf16.mxu0 0
        %3567 = vmatpush1.bf16.msra.mxu0 %v2796
        %3568 = vmatprep.subr.bf16.mxu0 0
        %3569 = vmatpush1.bf16.msra.mxu0 %v2828
        %3570 = vmatprep.subr.bf16.mxu0 0
        %3571 = vmatpush1.bf16.msra.mxu0 0
        %3572 = vmatprep.subr.bf16.mxu0 0
        %3573 = vmatpush1.bf16.msra.mxu0 0
        %3574 = vmatprep.subr.bf16.mxu0 0
        %3575 = vmatpush1.bf16.msra.mxu0 0
        %3576 = vmatprep.subr.bf16.mxu0 0
        %3577 = vmatpush1.bf16.msra.mxu0 0
        %3578 = vmatprep.subr.bf16.mxu0 0
        %3579 = vmatpush1.bf16.msra.mxu0 0
        %3580 = vmatprep.subr.bf16.mxu0 0
        %3581 = vmatpush1.bf16.msra.mxu0 0
        %3582 = vmatprep.subr.bf16.mxu0 0
        %3583 = vmatpush1.bf16.msra.mxu0 0
        %3584 = vmatprep.subr.bf16.mxu0 0
        %3585 = vmatpush1.bf16.msra.mxu0 0
        %3586 = vmatprep.subr.bf16.mxu0 0
        %3587 = vmatpush1.bf16.msra.mxu0 0
        %3588 = vmatprep.subr.bf16.mxu0 0
        %3589 = vmatpush1.bf16.msra.mxu0 0
        %3590 = vmatprep.subr.bf16.mxu0 0
        %3591 = vmatpush1.bf16.msra.mxu0 0
        %3592 = vmatprep.subr.bf16.mxu0 0
        %3593 = vmatpush1.bf16.msra.mxu0 0
        %3594 = vmatprep.subr.bf16.mxu0 0
        %3595 = vmatpush1.bf16.msra.mxu0 0
        %3596 = vmatprep.subr.bf16.mxu0 0
        %3597 = vmatpush1.bf16.msra.mxu0 0
        %3598 = vmatprep.mubr.bf16.mxu0 0
        %3599 = vmatmul.mubr.bf16.gmra.mrb[0].mxu0 %v3564
        %v3600 = vpop.f32.mrb[0].mxu0
        %v3601 = vadd.f32 0.0, %v3600
        %v3602 = vpop.f32.mrb[0].mxu0
        %v3603 = vpop.f32.mrb[0].mxu0
        %v3604 = vpop.f32.mrb[0].mxu0
        %3605 = vdwg.mxu0
        %v3607 = vsel %vm2838, %v3346, 0
        %3609 = vmatprep.subr.bf16.mxu0 0
        %3610 = vmatpush1.bf16.msra.mxu0 %v2800
        %3611 = vmatprep.subr.bf16.mxu0 0
        %3612 = vmatpush1.bf16.msra.mxu0 %v2832
        %3613 = vmatprep.subr.bf16.mxu0 0
        %3614 = vmatpush1.bf16.msra.mxu0 0
        %3615 = vmatprep.subr.bf16.mxu0 0
        %3616 = vmatpush1.bf16.msra.mxu0 0
        %3617 = vmatprep.subr.bf16.mxu0 0
        %3618 = vmatpush1.bf16.msra.mxu0 0
        %3619 = vmatprep.subr.bf16.mxu0 0
        %3620 = vmatpush1.bf16.msra.mxu0 0
        %3621 = vmatprep.subr.bf16.mxu0 0
        %3622 = vmatpush1.bf16.msra.mxu0 0
        %3623 = vmatprep.subr.bf16.mxu0 0
        %3624 = vmatpush1.bf16.msra.mxu0 0
        %3625 = vmatprep.subr.bf16.mxu0 0
        %3626 = vmatpush1.bf16.msra.mxu0 0
        %3627 = vmatprep.subr.bf16.mxu0 0
        %3628 = vmatpush1.bf16.msra.mxu0 0
        %3629 = vmatprep.subr.bf16.mxu0 0
        %3630 = vmatpush1.bf16.msra.mxu0 0
        %3631 = vmatprep.subr.bf16.mxu0 0
        %3632 = vmatpush1.bf16.msra.mxu0 0
        %3633 = vmatprep.subr.bf16.mxu0 0
        %3634 = vmatpush1.bf16.msra.mxu0 0
        %3635 = vmatprep.subr.bf16.mxu0 0
        %3636 = vmatpush1.bf16.msra.mxu0 0
        %3637 = vmatprep.subr.bf16.mxu0 0
        %3638 = vmatpush1.bf16.msra.mxu0 0
        %3639 = vmatprep.subr.bf16.mxu0 0
        %3640 = vmatpush1.bf16.msra.mxu0 0
        %3641 = vmatprep.mubr.bf16.mxu0 0
        %3642 = vmatmul.mubr.bf16.gmra.mrb[0].mxu0 %v3607
        %v3643 = vpop.f32.mrb[0].mxu0
        %v3644 = vadd.f32 0.0, %v3643
        %v3645 = vpop.f32.mrb[0].mxu0
        %v3646 = vpop.f32.mrb[0].mxu0
        %v3647 = vpop.f32.mrb[0].mxu0
        %3648 = vdwg.mxu0
        %v3650 = vsel %vm2838, %v3347, 0
        %3652 = vmatprep.subr.bf16.mxu0 0
        %3653 = vmatpush1.bf16.msra.mxu0 %v2804
        %3654 = vmatprep.subr.bf16.mxu0 0
        %3655 = vmatpush1.bf16.msra.mxu0 %v2836
        %3656 = vmatprep.subr.bf16.mxu0 0
        %3657 = vmatpush1.bf16.msra.mxu0 0
        %3658 = vmatprep.subr.bf16.mxu0 0
        %3659 = vmatpush1.bf16.msra.mxu0 0
        %3660 = vmatprep.subr.bf16.mxu0 0
        %3661 = vmatpush1.bf16.msra.mxu0 0
        %3662 = vmatprep.subr.bf16.mxu0 0
        %3663 = vmatpush1.bf16.msra.mxu0 0
        %3664 = vmatprep.subr.bf16.mxu0 0
        %3665 = vmatpush1.bf16.msra.mxu0 0
        %3666 = vmatprep.subr.bf16.mxu0 0
        %3667 = vmatpush1.bf16.msra.mxu0 0
        %3668 = vmatprep.subr.bf16.mxu0 0
        %3669 = vmatpush1.bf16.msra.mxu0 0
        %3670 = vmatprep.subr.bf16.mxu0 0
        %3671 = vmatpush1.bf16.msra.mxu0 0
        %3672 = vmatprep.subr.bf16.mxu0 0
        %3673 = vmatpush1.bf16.msra.mxu0 0
        %3674 = vmatprep.subr.bf16.mxu0 0
        %3675 = vmatpush1.bf16.msra.mxu0 0
        %3676 = vmatprep.subr.bf16.mxu0 0
        %3677 = vmatpush1.bf16.msra.mxu0 0
        %3678 = vmatprep.subr.bf16.mxu0 0
        %3679 = vmatpush1.bf16.msra.mxu0 0
        %3680 = vmatprep.subr.bf16.mxu0 0
        %3681 = vmatpush1.bf16.msra.mxu0 0
        %3682 = vmatprep.subr.bf16.mxu0 0
        %3683 = vmatpush1.bf16.msra.mxu0 0
        %3684 = vmatprep.mubr.bf16.mxu0 0
        %3685 = vmatmul.mubr.bf16.gmra.mrb[0].mxu0 %v3650
        %v3686 = vpop.f32.mrb[0].mxu0
        %v3687 = vadd.f32 0.0, %v3686
        %v3688 = vpop.f32.mrb[0].mxu0
        %v3689 = vpop.f32.mrb[0].mxu0
        %v3690 = vpop.f32.mrb[0].mxu0
        %3691 = vdwg.mxu0
        %v3692 = vcombine.low %v3386, %v3472
        %v3693 = vcombine.high %v3386, %v3472
        %v3695 = vunpack.c.l.s4 1983009808
        %v3696 = vunpack.c.0.s8 %v3695
        %v3697 = vlaneseq
        %v3698 = vshrl.u32 %v3697, 7
        %v3699 = vsub.s32 %v3696, %v3698
        %v3700 = vrot.slane %v3692, %v3699
        %v3702 = vunpack.c.l.s4 1983009808
        %v3703 = vunpack.c.0.s8 %v3702
        %v3704 = vlaneseq
        %v3705 = vshrl.u32 %v3704, 7
        %v3706 = vsub.s32 %v3703, %v3705
        %v3707 = vrot.slane %v3693, %v3706
        %v3708 = vcombine.low %v3429, %v3515
        %v3709 = vcombine.high %v3429, %v3515
        %v3711 = vunpack.c.l.s4 1983009808
        %v3712 = vunpack.c.0.s8 %v3711
        %v3713 = vlaneseq
        %v3714 = vshrl.u32 %v3713, 7
        %v3715 = vsub.s32 %v3712, %v3714
        %v3716 = vrot.slane %v3708, %v3715
        %v3718 = vunpack.c.l.s4 1983009808
        %v3719 = vunpack.c.0.s8 %v3718
        %v3720 = vlaneseq
        %v3721 = vshrl.u32 %v3720, 7
        %v3722 = vsub.s32 %v3719, %v3721
        %v3723 = vrot.slane %v3709, %v3722
        %v3724 = vcombine.low %v3558, %v3644
        %v3725 = vcombine.high %v3558, %v3644
        %v3727 = vunpack.c.l.s4 1983009808
        %v3728 = vunpack.c.0.s8 %v3727
        %v3729 = vlaneseq
        %v3730 = vshrl.u32 %v3729, 7
        %v3731 = vsub.s32 %v3728, %v3730
        %v3732 = vrot.slane %v3724, %v3731
        %v3734 = vunpack.c.l.s4 1983009808
        %v3735 = vunpack.c.0.s8 %v3734
        %v3736 = vlaneseq
        %v3737 = vshrl.u32 %v3736, 7
        %v3738 = vsub.s32 %v3735, %v3737
        %v3739 = vrot.slane %v3725, %v3738
        %v3740 = vcombine.low %v3601, %v3687
        %v3741 = vcombine.high %v3601, %v3687
        %v3743 = vunpack.c.l.s4 1983009808
        %v3744 = vunpack.c.0.s8 %v3743
        %v3745 = vlaneseq
        %v3746 = vshrl.u32 %v3745, 7
        %v3747 = vsub.s32 %v3744, %v3746
        %v3748 = vrot.slane %v3740, %v3747
        %v3750 = vunpack.c.l.s4 1983009808
        %v3751 = vunpack.c.0.s8 %v3750
        %v3752 = vlaneseq
        %v3753 = vshrl.u32 %v3752, 7
        %v3754 = vsub.s32 %v3751, %v3753
        %v3755 = vrot.slane %v3741, %v3754
        %v3756 = vcombine.low %v3700, %v3716
        %v3757 = vcombine.high %v3700, %v3716
        %v3759 = vunpack.c.l.s4 1934713408
        %v3760 = vunpack.c.0.s8 %v3759
        %v3761 = vlaneseq
        %v3762 = vshrl.u32 %v3761, 7
        %v3763 = vsub.s32 %v3760, %v3762
        %v3764 = vrot.slane %v3756, %v3763
        %v3766 = vunpack.c.l.s4 1934713408
        %v3767 = vunpack.c.0.s8 %v3766
        %v3768 = vlaneseq
        %v3769 = vshrl.u32 %v3768, 7
        %v3770 = vsub.s32 %v3767, %v3769
        %v3771 = vrot.slane %v3757, %v3770
        %v3772 = vcombine.low %v3707, %v3723
        %v3773 = vcombine.high %v3707, %v3723
        %v3775 = vunpack.c.l.s4 1934713408
        %v3776 = vunpack.c.0.s8 %v3775
        %v3777 = vlaneseq
        %v3778 = vshrl.u32 %v3777, 7
        %v3779 = vsub.s32 %v3776, %v3778
        %v3780 = vrot.slane %v3772, %v3779
        %v3782 = vunpack.c.l.s4 1934713408
        %v3783 = vunpack.c.0.s8 %v3782
        %v3784 = vlaneseq
        %v3785 = vshrl.u32 %v3784, 7
        %v3786 = vsub.s32 %v3783, %v3785
        %v3787 = vrot.slane %v3773, %v3786
        %v3788 = vcombine.low %v3732, %v3748
        %v3789 = vcombine.high %v3732, %v3748
        %v3791 = vunpack.c.l.s4 1934713408
        %v3792 = vunpack.c.0.s8 %v3791
        %v3793 = vlaneseq
        %v3794 = vshrl.u32 %v3793, 7
        %v3795 = vsub.s32 %v3792, %v3794
        %v3796 = vrot.slane %v3788, %v3795
        %v3798 = vunpack.c.l.s4 1934713408
        %v3799 = vunpack.c.0.s8 %v3798
        %v3800 = vlaneseq
        %v3801 = vshrl.u32 %v3800, 7
        %v3802 = vsub.s32 %v3799, %v3801
        %v3803 = vrot.slane %v3789, %v3802
        %v3804 = vcombine.low %v3739, %v3755
        %v3805 = vcombine.high %v3739, %v3755
        %v3807 = vunpack.c.l.s4 1934713408
        %v3808 = vunpack.c.0.s8 %v3807
        %v3809 = vlaneseq
        %v3810 = vshrl.u32 %v3809, 7
        %v3811 = vsub.s32 %v3808, %v3810
        %v3812 = vrot.slane %v3804, %v3811
        %v3814 = vunpack.c.l.s4 1934713408
        %v3815 = vunpack.c.0.s8 %v3814
        %v3816 = vlaneseq
        %v3817 = vshrl.u32 %v3816, 7
        %v3818 = vsub.s32 %v3815, %v3817
        %v3819 = vrot.slane %v3805, %v3818
        %v3820 = vcombine.low %v3764, %v3796
        %v3821 = vcombine.high %v3764, %v3796
        %v3822 = vcombine.low %v3771, %v3803
        %v3823 = vcombine.high %v3771, %v3803
        %v3824 = vcombine.low %v3780, %v3812
        %v3825 = vcombine.high %v3780, %v3812
        %v3826 = vcombine.low %v3787, %v3819
        %v3827 = vcombine.high %v3787, %v3819
        %v3828 = vcombine.low %v3820, %v3822
        %v3829 = vcombine.high %v3820, %v3822
        %v3831 = vunpack.c.l.s4 1983009808
        %v3832 = vunpack.c.0.s8 %v3831
        %v3833 = vlaneseq
        %v3834 = vshrl.u32 %v3833, 7
        %v3835 = vsub.s32 %v3832, %v3834
        %v3836 = vrot.slane %v3828, %v3835
        %v3838 = vunpack.c.l.s4 1983009808
        %v3839 = vunpack.c.0.s8 %v3838
        %v3840 = vlaneseq
        %v3841 = vshrl.u32 %v3840, 7
        %v3842 = vsub.s32 %v3839, %v3841
        %v3843 = vrot.slane %v3829, %v3842
        %v3844 = vcombine.low %v3821, %v3823
        %v3845 = vcombine.high %v3821, %v3823
        %v3847 = vunpack.c.l.s4 1983009808
        %v3848 = vunpack.c.0.s8 %v3847
        %v3849 = vlaneseq
        %v3850 = vshrl.u32 %v3849, 7
        %v3851 = vsub.s32 %v3848, %v3850
        %v3852 = vrot.slane %v3844, %v3851
        %v3854 = vunpack.c.l.s4 1983009808
        %v3855 = vunpack.c.0.s8 %v3854
        %v3856 = vlaneseq
        %v3857 = vshrl.u32 %v3856, 7
        %v3858 = vsub.s32 %v3855, %v3857
        %v3859 = vrot.slane %v3845, %v3858
        %v3860 = vcombine.low %v3824, %v3826
        %v3861 = vcombine.high %v3824, %v3826
        %v3863 = vunpack.c.l.s4 1983009808
        %v3864 = vunpack.c.0.s8 %v3863
        %v3865 = vlaneseq
        %v3866 = vshrl.u32 %v3865, 7
        %v3867 = vsub.s32 %v3864, %v3866
        %v3868 = vrot.slane %v3860, %v3867
        %v3870 = vunpack.c.l.s4 1983009808
        %v3871 = vunpack.c.0.s8 %v3870
        %v3872 = vlaneseq
        %v3873 = vshrl.u32 %v3872, 7
        %v3874 = vsub.s32 %v3871, %v3873
        %v3875 = vrot.slane %v3861, %v3874
        %v3876 = vcombine.low %v3825, %v3827
        %v3877 = vcombine.high %v3825, %v3827
        %v3879 = vunpack.c.l.s4 1983009808
        %v3880 = vunpack.c.0.s8 %v3879
        %v3881 = vlaneseq
        %v3882 = vshrl.u32 %v3881, 7
        %v3883 = vsub.s32 %v3880, %v3882
        %v3884 = vrot.slane %v3876, %v3883
        %v3886 = vunpack.c.l.s4 1983009808
        %v3887 = vunpack.c.0.s8 %v3886
        %v3888 = vlaneseq
        %v3889 = vshrl.u32 %v3888, 7
        %v3890 = vsub.s32 %v3887, %v3889
        %v3891 = vrot.slane %v3877, %v3890
        %v3892 = vcombine.low %v3836, %v3852
        %v3893 = vcombine.high %v3836, %v3852
        %v3895 = vunpack.c.l.s4 1934713408
        %v3896 = vunpack.c.0.s8 %v3895
        %v3897 = vlaneseq
        %v3898 = vshrl.u32 %v3897, 7
        %v3899 = vsub.s32 %v3896, %v3898
        %v3900 = vrot.slane %v3892, %v3899
        %v3902 = vunpack.c.l.s4 1934713408
        %v3903 = vunpack.c.0.s8 %v3902
        %v3904 = vlaneseq
        %v3905 = vshrl.u32 %v3904, 7
        %v3906 = vsub.s32 %v3903, %v3905
        %v3907 = vrot.slane %v3893, %v3906
        %v3908 = vcombine.low %v3843, %v3859
        %v3909 = vcombine.high %v3843, %v3859
        %v3911 = vunpack.c.l.s4 1934713408
        %v3912 = vunpack.c.0.s8 %v3911
        %v3913 = vlaneseq
        %v3914 = vshrl.u32 %v3913, 7
        %v3915 = vsub.s32 %v3912, %v3914
        %v3916 = vrot.slane %v3908, %v3915
        %v3918 = vunpack.c.l.s4 1934713408
        %v3919 = vunpack.c.0.s8 %v3918
        %v3920 = vlaneseq
        %v3921 = vshrl.u32 %v3920, 7
        %v3922 = vsub.s32 %v3919, %v3921
        %v3923 = vrot.slane %v3909, %v3922
        %v3924 = vcombine.low %v3868, %v3884
        %v3925 = vcombine.high %v3868, %v3884
        %v3927 = vunpack.c.l.s4 1934713408
        %v3928 = vunpack.c.0.s8 %v3927
        %v3929 = vlaneseq
        %v3930 = vshrl.u32 %v3929, 7
        %v3931 = vsub.s32 %v3928, %v3930
        %v3932 = vrot.slane %v3924, %v3931
        %v3934 = vunpack.c.l.s4 1934713408
        %v3935 = vunpack.c.0.s8 %v3934
        %v3936 = vlaneseq
        %v3937 = vshrl.u32 %v3936, 7
        %v3938 = vsub.s32 %v3935, %v3937
        %v3939 = vrot.slane %v3925, %v3938
        %v3940 = vcombine.low %v3875, %v3891
        %v3941 = vcombine.high %v3875, %v3891
        %v3943 = vunpack.c.l.s4 1934713408
        %v3944 = vunpack.c.0.s8 %v3943
        %v3945 = vlaneseq
        %v3946 = vshrl.u32 %v3945, 7
        %v3947 = vsub.s32 %v3944, %v3946
        %v3948 = vrot.slane %v3940, %v3947
        %v3950 = vunpack.c.l.s4 1934713408
        %v3951 = vunpack.c.0.s8 %v3950
        %v3952 = vlaneseq
        %v3953 = vshrl.u32 %v3952, 7
        %v3954 = vsub.s32 %v3951, %v3953
        %v3955 = vrot.slane %v3941, %v3954
        %v3956 = vcombine.low %v3900, %v3932
        %v3957 = vcombine.high %v3900, %v3932
        %v3958 = vcombine.low %v3907, %v3939
        %v3959 = vcombine.high %v3907, %v3939
        %v3960 = vcombine.low %v3916, %v3948
        %v3961 = vcombine.high %v3916, %v3948
        %v3962 = vcombine.low %v3923, %v3955
        %v3963 = vcombine.high %v3923, %v3955
        %3965 = vrot.lane.b32.xlu0 %v3957, 32
        %v3966 = vpop.permute.xlu0 %3965
        %3969 = vrot.lane.b32.xlu0 %v3958, 64
        %v3970 = vpop.permute.xlu0 %3969
        %3973 = vrot.lane.b32.xlu0 %v3959, 96
        %v3974 = vpop.permute.xlu0 %3973
        %3977 = vrot.lane.b32.xlu0 %v3961, 32
        %v3978 = vpop.permute.xlu0 %3977
        %3981 = vrot.lane.b32.xlu0 %v3962, 64
        %v3982 = vpop.permute.xlu0 %3981
        %3985 = vrot.lane.b32.xlu0 %v3963, 96
        %v3986 = vpop.permute.xlu0 %3985
        %v3988 = vsel %vm2838, %v3956, %v3966
        %vm3989 = vcmask 523264
        %v3990 = vsel %vm3989, %v3988, %v3970
        %vm3991 = vcmask 785408
        %v3992 = vsel %vm3991, %v3990, %v3974
        %v3993 = vsel %vm2838, %v3960, %v3978
        %v3994 = vsel %vm3989, %v3993, %v3982
        %v3995 = vsel %vm3991, %v3994, %v3986
        %v3996 = vpack.c.bf16 %v3992, %v3992
        %v3997 = vpack.c.bf16 %v3995, %v3995
        %v3998 = vld [vmem:[#allocation10] sm:$0xff]
        %v3999 = vld [vmem:[#allocation10 + $0x8] sm:$0xff]
        %v4000 = vld [vmem:[#allocation10 + $0x10] sm:$0xff]
        %v4001 = vld [vmem:[#allocation10 + $0x18] sm:$0xff]
        %v4002 = vld [vmem:[#allocation10 + $0x20] sm:$0xff]
        %v4003 = vld [vmem:[#allocation10 + $0x28] sm:$0xff]
        %v4004 = vld [vmem:[#allocation10 + $0x30] sm:$0xff]
        %v4005 = vld [vmem:[#allocation10 + $0x38] sm:$0xff]
        %v4006 = vld [vmem:[#allocation10 + $0x40] sm:$0xff]
        %v4007 = vld [vmem:[#allocation10 + $0x48] sm:$0xff]
        %v4008 = vld [vmem:[#allocation10 + $0x50] sm:$0xff]
        %v4009 = vld [vmem:[#allocation10 + $0x58] sm:$0xff]
        %v4010 = vld [vmem:[#allocation10 + $0x60] sm:$0xff]
        %v4011 = vld [vmem:[#allocation10 + $0x68] sm:$0xff]
        %v4012 = vld [vmem:[#allocation10 + $0x70] sm:$0xff]
        %v4013 = vld [vmem:[#allocation10 + $0x78] sm:$0xff]
        %v4014 = vld [vmem:[#allocation10 + $0x80] sm:$0xff]
        %v4015 = vld [vmem:[#allocation10 + $0x88] sm:$0xff]
        %v4016 = vld [vmem:[#allocation10 + $0x90] sm:$0xff]
        %v4017 = vld [vmem:[#allocation10 + $0x98] sm:$0xff]
        %v4018 = vld [vmem:[#allocation10 + $0xa0] sm:$0xff]
        %v4019 = vld [vmem:[#allocation10 + $0xa8] sm:$0xff]
        %v4020 = vld [vmem:[#allocation10 + $0xb0] sm:$0xff]
        %v4021 = vld [vmem:[#allocation10 + $0xb8] sm:$0xff]
        %v4022 = vld [vmem:[#allocation10 + $0xc0] sm:$0xff]
        %v4023 = vld [vmem:[#allocation10 + $0xc8] sm:$0xff]
        %v4024 = vld [vmem:[#allocation10 + $0xd0] sm:$0xff]
        %v4025 = vld [vmem:[#allocation10 + $0xd8] sm:$0xff]
        %v4026 = vld [vmem:[#allocation10 + $0xe0] sm:$0xff]
        %v4027 = vld [vmem:[#allocation10 + $0xe8] sm:$0xff]
        %v4028 = vld [vmem:[#allocation10 + $0xf0] sm:$0xff]
        %v4029 = vld [vmem:[#allocation10 + $0xf8] sm:$0xff]
        %v4030 = vld [vmem:[%s8] sm:$0x3]
        %v4032 = vlaneseq
        %v4033 = vshrl.u32 %v4032, 7
        %v4034 = vsub.s32 0, %v4033
        %v4035 = vrot.slane %v4030, %v4034
        %v4036 = vlaneseq
        %v4037 = vshrl.u32 %v4036, 7
        %v4038 = vsub.s32 1, %v4037
        %v4039 = vrot.slane %v4030, %v4038
        %v4074 = vunpack.c.l.b16 %v3998
        %v4075 = vunpack.c.h.b16 %v3998
        %v4076 = vunpack.c.l.b16 %v3999
        %v4077 = vunpack.c.h.b16 %v3999
        %v4078 = vunpack.c.l.b16 %v4000
        %v4079 = vunpack.c.h.b16 %v4000
        %v4080 = vunpack.c.l.b16 %v4001
        %v4081 = vunpack.c.h.b16 %v4001
        %v4082 = vunpack.c.l.b16 %v4002
        %v4083 = vunpack.c.h.b16 %v4002
        %v4084 = vunpack.c.l.b16 %v4003
        %v4085 = vunpack.c.h.b16 %v4003
        %v4086 = vunpack.c.l.b16 %v4004
        %v4087 = vunpack.c.h.b16 %v4004
        %v4088 = vunpack.c.l.b16 %v4005
        %v4089 = vunpack.c.h.b16 %v4005
        %v4090 = vunpack.c.l.b16 %v4006
        %v4091 = vunpack.c.h.b16 %v4006
        %v4092 = vunpack.c.l.b16 %v4007
        %v4093 = vunpack.c.h.b16 %v4007
        %v4094 = vunpack.c.l.b16 %v4008
        %v4095 = vunpack.c.h.b16 %v4008
        %v4096 = vunpack.c.l.b16 %v4009
        %v4097 = vunpack.c.h.b16 %v4009
        %v4098 = vunpack.c.l.b16 %v4010
        %v4099 = vunpack.c.h.b16 %v4010
        %v4100 = vunpack.c.l.b16 %v4011
        %v4101 = vunpack.c.h.b16 %v4011
        %v4102 = vunpack.c.l.b16 %v4012
        %v4103 = vunpack.c.h.b16 %v4012
        %v4104 = vunpack.c.l.b16 %v4013
        %v4105 = vunpack.c.h.b16 %v4013
        %v4106 = vunpack.c.l.b16 %v4014
        %v4107 = vunpack.c.h.b16 %v4014
        %v4108 = vunpack.c.l.b16 %v4015
        %v4109 = vunpack.c.h.b16 %v4015
        %v4110 = vunpack.c.l.b16 %v4016
        %v4111 = vunpack.c.h.b16 %v4016
        %v4112 = vunpack.c.l.b16 %v4017
        %v4113 = vunpack.c.h.b16 %v4017
        %v4114 = vunpack.c.l.b16 %v4018
        %v4115 = vunpack.c.h.b16 %v4018
        %v4116 = vunpack.c.l.b16 %v4019
        %v4117 = vunpack.c.h.b16 %v4019
        %v4118 = vunpack.c.l.b16 %v4020
        %v4119 = vunpack.c.h.b16 %v4020
        %v4120 = vunpack.c.l.b16 %v4021
        %v4121 = vunpack.c.h.b16 %v4021
        %v4122 = vunpack.c.l.b16 %v4022
        %v4123 = vunpack.c.h.b16 %v4022
        %v4124 = vunpack.c.l.b16 %v4023
        %v4125 = vunpack.c.h.b16 %v4023
        %v4126 = vunpack.c.l.b16 %v4024
        %v4127 = vunpack.c.h.b16 %v4024
        %v4128 = vunpack.c.l.b16 %v4025
        %v4129 = vunpack.c.h.b16 %v4025
        %v4130 = vunpack.c.l.b16 %v4026
        %v4131 = vunpack.c.h.b16 %v4026
        %v4132 = vunpack.c.l.b16 %v4027
        %v4133 = vunpack.c.h.b16 %v4027
        %v4134 = vunpack.c.l.b16 %v4028
        %v4135 = vunpack.c.h.b16 %v4028
        %v4136 = vunpack.c.l.b16 %v4029
        %v4137 = vunpack.c.h.b16 %v4029
        %v4138 = vpack.c.b16 %v4076, %v4074
        %v4139 = vpack.c.b16 %v4077, %v4075
        %v4140 = vpack.c.b16 %v4080, %v4078
        %v4141 = vpack.c.b16 %v4081, %v4079
        %v4142 = vpack.c.b16 %v4084, %v4082
        %v4143 = vpack.c.b16 %v4085, %v4083
        %v4144 = vpack.c.b16 %v4088, %v4086
        %v4145 = vpack.c.b16 %v4089, %v4087
        %v4146 = vpack.c.b16 %v4092, %v4090
        %v4147 = vpack.c.b16 %v4093, %v4091
        %v4148 = vpack.c.b16 %v4096, %v4094
        %v4149 = vpack.c.b16 %v4097, %v4095
        %v4150 = vpack.c.b16 %v4100, %v4098
        %v4151 = vpack.c.b16 %v4101, %v4099
        %v4152 = vpack.c.b16 %v4104, %v4102
        %v4153 = vpack.c.b16 %v4105, %v4103
        %v4154 = vpack.c.b16 %v4108, %v4106
        %v4155 = vpack.c.b16 %v4109, %v4107
        %v4156 = vpack.c.b16 %v4112, %v4110
        %v4157 = vpack.c.b16 %v4113, %v4111
        %v4158 = vpack.c.b16 %v4116, %v4114
        %v4159 = vpack.c.b16 %v4117, %v4115
        %v4160 = vpack.c.b16 %v4120, %v4118
        %v4161 = vpack.c.b16 %v4121, %v4119
        %v4162 = vpack.c.b16 %v4124, %v4122
        %v4163 = vpack.c.b16 %v4125, %v4123
        %v4164 = vpack.c.b16 %v4128, %v4126
        %v4165 = vpack.c.b16 %v4129, %v4127
        %v4166 = vpack.c.b16 %v4132, %v4130
        %v4167 = vpack.c.b16 %v4133, %v4131
        %v4168 = vpack.c.b16 %v4136, %v4134
        %v4169 = vpack.c.b16 %v4137, %v4135
        %4202 = vmatprep.subr.bf16.mxu0 %v4139
        %4203 = vmatpush1.bf16.msra.mxu0 %v4138
        %4204 = vmatprep.subr.bf16.mxu0 %v4141
        %4205 = vmatpush1.bf16.msra.mxu0 %v4140
        %4206 = vmatprep.subr.bf16.mxu0 %v4143
        %4207 = vmatpush1.bf16.msra.mxu0 %v4142
        %4208 = vmatprep.subr.bf16.mxu0 %v4145
        %4209 = vmatpush1.bf16.msra.mxu0 %v4144
        %4210 = vmatprep.subr.bf16.mxu0 %v4147
        %4211 = vmatpush1.bf16.msra.mxu0 %v4146
        %4212 = vmatprep.subr.bf16.mxu0 %v4149
        %4213 = vmatpush1.bf16.msra.mxu0 %v4148
        %4214 = vmatprep.subr.bf16.mxu0 %v4151
        %4215 = vmatpush1.bf16.msra.mxu0 %v4150
        %4216 = vmatprep.subr.bf16.mxu0 %v4153
        %4217 = vmatpush1.bf16.msra.mxu0 %v4152
        %4218 = vmatprep.subr.bf16.mxu0 %v4155
        %4219 = vmatpush1.bf16.msra.mxu0 %v4154
        %4220 = vmatprep.subr.bf16.mxu0 %v4157
        %4221 = vmatpush1.bf16.msra.mxu0 %v4156
        %4222 = vmatprep.subr.bf16.mxu0 %v4159
        %4223 = vmatpush1.bf16.msra.mxu0 %v4158
        %4224 = vmatprep.subr.bf16.mxu0 %v4161
        %4225 = vmatpush1.bf16.msra.mxu0 %v4160
        %4226 = vmatprep.subr.bf16.mxu0 %v4163
        %4227 = vmatpush1.bf16.msra.mxu0 %v4162
        %4228 = vmatprep.subr.bf16.mxu0 %v4165
        %4229 = vmatpush1.bf16.msra.mxu0 %v4164
        %4230 = vmatprep.subr.bf16.mxu0 %v4167
        %4231 = vmatpush1.bf16.msra.mxu0 %v4166
        %4232 = vmatprep.subr.bf16.mxu0 %v4169
        %4233 = vmatpush1.bf16.msra.mxu0 %v4168
        %4234 = vmatprep.mubr.bf16.mxu0 %v3997
        %4235 = vmatmul.mubr.bf16.gmra.mrb[0].mxu0 %v3996
        %v4236 = vpop.f32.mrb[0].mxu0
        %v4237 = vadd.f32 %v4035, %v4236
        %v4238 = vpop.f32.mrb[0].mxu0
        %v4239 = vadd.f32 %v4039, %v4238
        %v4240 = vpop.f32.mrb[0].mxu0
        %v4241 = vpop.f32.mrb[0].mxu0
        %4242 = vdwg.mxu0
        %v4243 = vadd.f32 %v4237, %v447
        %v4244 = vadd.f32 %v4239, %v448
        %4245 = vst [vmem:[%s442] sm:$0xff] %v4243
        %4246 = vst [vmem:[%s442 + $0x8] sm:$0xff] %v4244
        %s4247 = sand.u32 %s242, 1
        %s4248 = scalar_lea.sflag [#allocation4], %s4247
        %s4249 = sand.u32 %s242, 1
        %s4250 = smul.addr %s4249, 16
        %s4251 = scalar_lea.vmem [#allocation11], %s4250
        // Predicated region
        $region77: #{tpu_custom_call.1} parent=55 // pred_check
          %p4252 = pneg %p252
        $region78: #{tpu_custom_call.1} parent=55 // pred_check_branch
          %4254 = sbr.rel (%p4252) target = $region80
        $region79: #{tpu_custom_call.1} parent=55 // pred_region
          %s4256 = ssub.s32 256, 256
          %4257 = vsyncadd %s4248, %s4256
          %s4258 = smul.addr %s30, 2
          %s4259 = smul.addr %s4258, 128
          %s4260 = scalar_lea.hbm %s9, %s4259
          %s4262 = sshll.u32 %s4251, 4
          %s4263 = int_to_ptr.vmem [resolvable:$true] %s4262
          %4265 = dma.vmem_to_hbm [thread:$0]  %s4263, 256, %s4260, %s4248
        $region80: #{tpu_custom_call.1} parent=55 // pred_fallthru
          _
      $region56: #{tpu_custom_call.1} parent=5 // pred_fallthru
        _
      %p4266 = scmp.le.s32.totalorder 2, %s25
      // Predicated region
      $region81: #{tpu_custom_call.1} parent=5 // pred_check
        %p4267 = pneg %p4266
      $region82: #{tpu_custom_call.1} parent=5 // pred_check_branch
        %4269 = sbr.rel (%p4267) target = $region84
      $region83: #{tpu_custom_call.1} parent=5 // pred_region
        %s4270 = ssub.s32 %s25, 2
        // Predicated region
        $region85: #{tpu_custom_call.1} parent=83 // pred_check
          %p4271 = pneg %p258
        $region86: #{tpu_custom_call.1} parent=83 // pred_check_branch
          %4273 = sbr.rel (%p4271) target = $region88
        $region87: #{tpu_custom_call.1} parent=83 // pred_region
          %s4274 = sand.u32 %s243, 1
          %s4275 = scalar_lea.sflag [#allocation4], %s4274
          %s4276 = sand.u32 %s243, 1
          %s4277 = smul.addr %s4276, 16
          %s4278 = scalar_lea.vmem [#allocation11], %s4277
          %4279 = dma.done %s4275, 256
        $region88: #{tpu_custom_call.1} parent=83 // pred_fallthru
          _
      $region84: #{tpu_custom_call.1} parent=5 // pred_fallthru
        _
    $region6: #{tpu_custom_call.1} parent=1 // loop_footer
      %s29 = sadd.s32 1, %s25
    $region7: #{tpu_custom_call.1} parent=1 // loop_footer_branch
      %24 = sbr.rel target = $region3
    $region8: #{tpu_custom_call.1} parent=1 // loop_exit
      _
    %4280 = vsyncpa [#allocation3], 1
    %s4281 = scalar_lea.sflag [#allocation3], 1
    %4282 = vsyncpa %s4281, 1
    %4283 = vsyncpa [#allocation6], 1
    %s4284 = scalar_lea.sflag [#allocation6], 1
    %4285 = vsyncpa %s4284, 1
    %4286 = vsyncpa [#allocation9], 1
    %4287 = vsyncpa [#allocation4], 1
    %s4288 = scalar_lea.sflag [#allocation4], 1
    %4289 = vsyncpa %s4288, 1

</llo_original>
